<compile_context>
chip_gen: v7x
topology: tpu7x:2x2x1
jax: 0.10.0
libtpu: 0.0.40
codegen_flags: <defaults>
</compile_context>

<pallas_src>
import functools

import numpy as np
import jax
import jax.numpy as jnp
from jax import lax
from jax.experimental import pallas as pl
from jax.experimental.pallas import tpu as pltpu

GEMM_DTYPE = jnp.float32  # flip to jnp.bfloat16 on v6e/v7x for more MXU throughput
LANE = 128
_VMEM_LIMIT = 32 * 1024 * 1024  # safe on v5e/v6e/v7x


def _round_up(x, m):
    return ((x + m - 1) // m) * m


def _pad_to(a, shape):
    pads = [(0, t - s) for s, t in zip(a.shape, shape)]
    return jnp.pad(a, pads)


# ---------------------------------------------------------------------------
# Pallas kernels
# ---------------------------------------------------------------------------
def _conv_relu_pool_kernel(p_ref, w_ref, b_ref, o_ref):
    # p_ref: [4, m_tile, Kc]   (4 = the 2x2 pool-window sub-positions)
    # w_ref: [Kc, 128], b_ref: [1, 128], o_ref: [m_tile, 128]
    w = w_ref[...].astype(GEMM_DTYPE)
    b = b_ref[...]
    acc = None
    for s in range(4):  # static unroll; each dot is an MXU op, epilogue is VPU filler
        y = jnp.dot(p_ref[s].astype(GEMM_DTYPE), w,
                    preferred_element_type=jnp.float32) + b
        y = jnp.maximum(y, 0.0)                      # ReLU before pooling
        acc = y if acc is None else acc + y
    o_ref[...] = (acc * 0.25).astype(o_ref.dtype)    # 2x2 average pool


def _mlp_kernel(x_ref, w1_ref, b1_ref, w2_ref, b2_ref, w3_ref, b3_ref, o_ref):
    # Fused fc1 -> fc2 -> fc3; all weights resident in VMEM, lane dim = 128.
    h = jnp.dot(x_ref[...].astype(GEMM_DTYPE), w1_ref[...].astype(GEMM_DTYPE),
                preferred_element_type=jnp.float32) + b1_ref[...]
    h = jnp.maximum(h, 0.0)
    h = jnp.dot(h.astype(GEMM_DTYPE), w2_ref[...].astype(GEMM_DTYPE),
                preferred_element_type=jnp.float32) + b2_ref[...]
    h = jnp.maximum(h, 0.0)
    y = jnp.dot(h.astype(GEMM_DTYPE), w3_ref[...].astype(GEMM_DTYPE),
                preferred_element_type=jnp.float32) + b3_ref[...]
    o_ref[...] = y.astype(o_ref.dtype)


# ---------------------------------------------------------------------------
# Wrappers (im2col / layout glue stays in XLA; GEMM+ReLU+pool is the kernel)
# ---------------------------------------------------------------------------
def conv_relu_pool(x, w_mat, b_row, *, K):
    """x: [B, H, W, C] NHWC f32.  w_mat: [Kc_pad, 128] with rows in (ki, kj, c)
    order; b_row: [1, 128].  Returns avgpool2x2(relu(conv(x))) as [B, PH, PW, 128]
    (lane axis = zero-padded output channels)."""
    B, H, W, C = x.shape
    OH, OW = H - K + 1, W - K + 1
    PH, PW = OH // 2, OW // 2
    Kc = K * K * C
    Kc_pad = w_mat.shape[0]

    # im2col with contraction order (ki, kj, c) to match w_mat rows.
    cols = []
    for i in range(K):
        for j in range(K):
            cols.append(x[:, i:i + OH, j:j + OW, :])
    p = jnp.concatenate(cols, axis=-1)                       # [B, OH, OW, Kc]
    if Kc_pad > Kc:
        p = jnp.pad(p, ((0, 0), (0, 0), (0, 0), (0, Kc_pad - Kc)))

    # Group rows by 2x2 pool sub-position so pooling fuses into the GEMM epilogue.
    subs = [p[:, 0::2, 0::2, :], p[:, 0::2, 1::2, :],
            p[:, 1::2, 0::2, :], p[:, 1::2, 1::2, :]]
    M = B * PH * PW
    p4 = jnp.stack([s.reshape(M, Kc_pad) for s in subs], axis=0)   # [4, M, Kc_pad]

    m_tile = min(256, _round_up(M, 8))
    M_pad = _round_up(M, m_tile)
    if M_pad > M:
        p4 = jnp.pad(p4, ((0, 0), (0, M_pad - M), (0, 0)))

    out = pl.pallas_call(
        _conv_relu_pool_kernel,
        out_shape=jax.ShapeDtypeStruct((M_pad, LANE), jnp.float32),
        grid=(M_pad // m_tile,),
        in_specs=[
            pl.BlockSpec((4, m_tile, Kc_pad), lambda i: (0, i, 0)),
            pl.BlockSpec((Kc_pad, LANE), lambda i: (0, 0)),
            pl.BlockSpec((1, LANE), lambda i: (0, 0)),
        ],
        out_specs=pl.BlockSpec((m_tile, LANE), lambda i: (i, 0)),
        compiler_params=pltpu.CompilerParams(
            dimension_semantics=("parallel",),
            vmem_limit_bytes=_VMEM_LIMIT),
    )(p4, w_mat, b_row)
    return out[:M].reshape(B, PH, PW, LANE)


def fc_stack(x, w1, b1, w2, b2, w3, b3):
    """x: [B, 400] f32; weights pre-transposed to [K, 128] with zero padding.
    Returns logits [B, 10]."""
    B, Kin = x.shape
    b_tile = min(256, _round_up(B, 8))
    B_pad = _round_up(B, b_tile)
    if B_pad > B:
        x = jnp.pad(x, ((0, B_pad - B), (0, 0)))

    out = pl.pallas_call(
        _mlp_kernel,
        out_shape=jax.ShapeDtypeStruct((B_pad, LANE), jnp.float32),
        grid=(B_pad // b_tile,),
        in_specs=[
            pl.BlockSpec((b_tile, Kin), lambda i: (i, 0)),
            pl.BlockSpec(w1.shape, lambda i: (0, 0)),
            pl.BlockSpec((1, LANE), lambda i: (0, 0)),
            pl.BlockSpec(w2.shape, lambda i: (0, 0)),
            pl.BlockSpec((1, LANE), lambda i: (0, 0)),
            pl.BlockSpec(w3.shape, lambda i: (0, 0)),
            pl.BlockSpec((1, LANE), lambda i: (0, 0)),
        ],
        out_specs=pl.BlockSpec((b_tile, LANE), lambda i: (i, 0)),
        compiler_params=pltpu.CompilerParams(
            dimension_semantics=("parallel",),
            vmem_limit_bytes=_VMEM_LIMIT),
    )(x, w1, b1, w2, b2, w3, b3)
    return out[:B, :10]


# ---------------------------------------------------------------------------
# Parameter init (PyTorch-style) + one-time prep into kernel layout
# ---------------------------------------------------------------------------
def init_lenet5_params(key):
    def uconv(k, oc, ic, ks):
        bound = 1.0 / (ic * ks * ks) ** 0.5
        kw, kb = jax.random.split(k)
        w = jax.random.uniform(kw, (oc, ic, ks, ks), jnp.float32, -bound, bound)
        b = jax.random.uniform(kb, (oc,), jnp.float32, -bound, bound)
        return w, b

    def ulin(k, out_f, in_f):
        bound = 1.0 / in_f ** 0.5
        kw, kb = jax.random.split(k)
        w = jax.random.uniform(kw, (out_f, in_f), jnp.float32, -bound, bound)
        b = jax.random.uniform(kb, (out_f,), jnp.float32, -bound, bound)
        return w, b

    k1, k2, k3, k4, k5 = jax.random.split(key, 5)
    p = {}
    p["conv1_w"], p["conv1_b"] = uconv(k1, 6, 1, 5)
    p["conv2_w"], p["conv2_b"] = uconv(k2, 16, 6, 5)
    p["fc1_w"], p["fc1_b"] = ulin(k3, 120, 16 * 5 * 5)
    p["fc2_w"], p["fc2_b"] = ulin(k4, 84, 120)
    p["fc3_w"], p["fc3_b"] = ulin(k5, 10, 84)
    return p


def prepare_params(p):
    """One-time (outside jit): transpose/reorder/pad weights into kernel layout."""
    def conv_mat(w):
        OC, C, K, _ = w.shape
        m = jnp.transpose(w, (2, 3, 1, 0)).reshape(K * K * C, OC)   # rows = (ki,kj,c)
        return _pad_to(m, (_round_up(K * K * C, 8), LANE))

    def bias_row(b):
        return _pad_to(b.reshape(1, -1), (1, LANE))

    kp = {}
    kp["c1_w"], kp["c1_b"] = conv_mat(p["conv1_w"]), bias_row(p["conv1_b"])
    kp["c2_w"], kp["c2_b"] = conv_mat(p["conv2_w"]), bias_row(p["conv2_b"])

    # fc1 columns in PyTorch are flattened NCHW (c*25 + h*5 + w); our activations
    # are flattened NHWC (h*80 + w*16 + c).  Permute once so semantics match.
    perm = jnp.array([c * 25 + h * 5 + w
                      for h in range(5) for w in range(5) for c in range(16)],
                     dtype=jnp.int32)
    w1 = p["fc1_w"][:, perm].T                                      # [400, 120]
    kp["fc1_w"], kp["fc1_b"] = _pad_to(w1, (400, LANE)), bias_row(p["fc1_b"])
    kp["fc2_w"], kp["fc2_b"] = _pad_to(p["fc2_w"].T, (LANE, LANE)), bias_row(p["fc2_b"])
    kp["fc3_w"], kp["fc3_b"] = _pad_to(p["fc3_w"].T, (LANE, LANE)), bias_row(p["fc3_b"])
    return kp


# ---------------------------------------------------------------------------
# Forward pass (matches LeNet5.forward)
# ---------------------------------------------------------------------------
def lenet5_forward(kp, x_nchw):
    # x: [B, 1, 32, 32] f32 (PyTorch NCHW) -> NHWC internally, channel-last lanes.
    x = jnp.transpose(x_nchw, (0, 2, 3, 1)).astype(jnp.float32)     # [B, 32, 32, 1]
    B = x.shape[0]
    y = conv_relu_pool(x, kp["c1_w"], kp["c1_b"], K=5)              # [B, 14, 14, 128]
    y = conv_relu_pool(y[..., :6], kp["c2_w"], kp["c2_b"], K=5)     # [B, 5, 5, 128]
    feats = y[..., :16].reshape(B, 16 * 5 * 5)                      # NHWC flatten
    return fc_stack(feats, kp["fc1_w"], kp["fc1_b"],
                    kp["fc2_w"], kp["fc2_b"],
                    kp["fc3_w"], kp["fc3_b"])                       # [B, 10]


# ---------------------------------------------------------------------------
# Pure-JAX reference (for a sanity check of the Pallas path)
# ---------------------------------------------------------------------------
def lenet5_reference(p, x):
    dn = ("NCHW", "OIHW", "NCHW")
    hi = lax.Precision.HIGHEST

    def avgpool(y):
        return 0.25 * (y[:, :, 0::2, 0::2] + y[:, :, 0::2, 1::2]
                       + y[:, :, 1::2, 0::2] + y[:, :, 1::2, 1::2])

    y = lax.conv_general_dilated(x, p["conv1_w"], (1, 1), "VALID",
                                 dimension_numbers=dn, precision=hi)
    y = avgpool(jax.nn.relu(y + p["conv1_b"].reshape(1, -1, 1, 1)))
    y = lax.conv_general_dilated(y, p["conv2_w"], (1, 1), "VALID",
                                 dimension_numbers=dn, precision=hi)
    y = avgpool(jax.nn.relu(y + p["conv2_b"].reshape(1, -1, 1, 1)))
    y = y.reshape(y.shape[0], -1)
    y = jax.nn.relu(jnp.dot(y, p["fc1_w"].T, precision=hi) + p["fc1_b"])
    y = jax.nn.relu(jnp.dot(y, p["fc2_w"].T, precision=hi) + p["fc2_b"])
    return jnp.dot(y, p["fc3_w"].T, precision=hi) + p["fc3_b"]


if __name__ == "__main__":
    key = jax.random.PRNGKey(0)
    kp_key, kx = jax.random.split(key)
    params = init_lenet5_params(kp_key)
    kparams = prepare_params(params)                 # one-time weight prep, outside jit

    # LeNet-5 requires 32x32 spatial input (fixed by fc1's 16*5*5 fan-in).
    x = jax.random.normal(kx, (2, 1, 32, 32), dtype=jnp.float32)

    fwd = jax.jit(lenet5_forward)
    out = jax.block_until_ready(fwd(kparams, x))
    assert out.shape == (2, 10) and out.dtype == jnp.float32

    ref = jax.block_until_ready(lenet5_reference(params, x))
    np.testing.assert_allclose(np.asarray(out), np.asarray(ref), rtol=2e-2, atol=2e-2)

    print("KERNEL_OK")
</pallas_src>

<mosaic_0001>
module attributes {stable_mosaic.version = 11 : i64} {
  func.func @_conv_relu_pool_kernel(%arg0: i32, %arg1: memref<4x256x32xf32, #tpu.memory_space<vmem>>, %arg2: memref<32x128xf32, #tpu.memory_space<vmem>>, %arg3: memref<1x128xf32, #tpu.memory_space<vmem>>, %arg4: memref<256x128xf32, #tpu.memory_space<vmem>>) attributes {dimension_semantics = [#tpu.dimension_semantics<parallel>], iteration_bounds = array<i64: 2>, scalar_prefetch = 0 : i64, scratch_operands = 0 : i64, tpu.core_type = #tpu.core_type<tc>, window_params = [{transform_indices = @transform_0, window_bounds = array<i64: 4, 256, 32>}, {pipeline_mode = #tpu.pipeline_mode<synchronous>, transform_indices = @transform_1, window_bounds = array<i64: 32, 128>}, {pipeline_mode = #tpu.pipeline_mode<synchronous>, transform_indices = @transform_2, window_bounds = array<i64: 1, 128>}, {transform_indices = @transform_3, window_bounds = array<i64: 256, 128>}]} {
    %c0 = arith.constant 0 : index
    %c0_0 = arith.constant 0 : index
    %0 = vector.load %arg2[%c0, %c0_0] : memref<32x128xf32, #tpu.memory_space<vmem>>, vector<32x128xf32>
    %c0_1 = arith.constant 0 : index
    %c0_2 = arith.constant 0 : index
    %1 = vector.load %arg3[%c0_1, %c0_2] : memref<1x128xf32, #tpu.memory_space<vmem>>, vector<1x128xf32>
    %c0_3 = arith.constant 0 : index
    %c0_4 = arith.constant 0 : index
    %c0_5 = arith.constant 0 : index
    %2 = vector.load %arg1[%c0_3, %c0_4, %c0_5] : memref<4x256x32xf32, #tpu.memory_space<vmem>>, vector<1x256x32xf32>
    %3 = vector.shape_cast %2 : vector<1x256x32xf32> to vector<256x32xf32>
    %cst = arith.constant dense<0.000000e+00> : vector<256x128xf32>
    %4 = tpu.matmul %3, %0, %cst {dimension_numbers = #tpu.dot_dimension_numbers<[1], [0], [0], [1], [0, 0, 1, 1], [], []>} : vector<256x32xf32>, vector<32x128xf32>, vector<256x128xf32> -> vector<256x128xf32>
    %5 = vector.broadcast %1 : vector<1x128xf32> to vector<256x128xf32>
    %6 = arith.addf %4, %5 : vector<256x128xf32>
    %cst_6 = arith.constant 0.000000e+00 : f32
    %7 = vector.broadcast %cst_6 : f32 to vector<256x128xf32>
    %8 = arith.maximumf %6, %7 : vector<256x128xf32>
    %c1 = arith.constant 1 : index
    %c0_7 = arith.constant 0 : index
    %c0_8 = arith.constant 0 : index
    %9 = vector.load %arg1[%c1, %c0_7, %c0_8] : memref<4x256x32xf32, #tpu.memory_space<vmem>>, vector<1x256x32xf32>
    %10 = vector.shape_cast %9 : vector<1x256x32xf32> to vector<256x32xf32>
    %cst_9 = arith.constant dense<0.000000e+00> : vector<256x128xf32>
    %11 = tpu.matmul %10, %0, %cst_9 {dimension_numbers = #tpu.dot_dimension_numbers<[1], [0], [0], [1], [0, 0, 1, 1], [], []>} : vector<256x32xf32>, vector<32x128xf32>, vector<256x128xf32> -> vector<256x128xf32>
    %12 = vector.broadcast %1 : vector<1x128xf32> to vector<256x128xf32>
    %13 = arith.addf %11, %12 : vector<256x128xf32>
    %cst_10 = arith.constant 0.000000e+00 : f32
    %14 = vector.broadcast %cst_10 : f32 to vector<256x128xf32>
    %15 = arith.maximumf %13, %14 : vector<256x128xf32>
    %16 = arith.addf %8, %15 : vector<256x128xf32>
    %c2 = arith.constant 2 : index
    %c0_11 = arith.constant 0 : index
    %c0_12 = arith.constant 0 : index
    %17 = vector.load %arg1[%c2, %c0_11, %c0_12] : memref<4x256x32xf32, #tpu.memory_space<vmem>>, vector<1x256x32xf32>
    %18 = vector.shape_cast %17 : vector<1x256x32xf32> to vector<256x32xf32>
    %cst_13 = arith.constant dense<0.000000e+00> : vector<256x128xf32>
    %19 = tpu.matmul %18, %0, %cst_13 {dimension_numbers = #tpu.dot_dimension_numbers<[1], [0], [0], [1], [0, 0, 1, 1], [], []>} : vector<256x32xf32>, vector<32x128xf32>, vector<256x128xf32> -> vector<256x128xf32>
    %20 = vector.broadcast %1 : vector<1x128xf32> to vector<256x128xf32>
    %21 = arith.addf %19, %20 : vector<256x128xf32>
    %cst_14 = arith.constant 0.000000e+00 : f32
    %22 = vector.broadcast %cst_14 : f32 to vector<256x128xf32>
    %23 = arith.maximumf %21, %22 : vector<256x128xf32>
    %24 = arith.addf %16, %23 : vector<256x128xf32>
    %c3 = arith.constant 3 : index
    %c0_15 = arith.constant 0 : index
    %c0_16 = arith.constant 0 : index
    %25 = vector.load %arg1[%c3, %c0_15, %c0_16] : memref<4x256x32xf32, #tpu.memory_space<vmem>>, vector<1x256x32xf32>
    %26 = vector.shape_cast %25 : vector<1x256x32xf32> to vector<256x32xf32>
    %cst_17 = arith.constant dense<0.000000e+00> : vector<256x128xf32>
    %27 = tpu.matmul %26, %0, %cst_17 {dimension_numbers = #tpu.dot_dimension_numbers<[1], [0], [0], [1], [0, 0, 1, 1], [], []>} : vector<256x32xf32>, vector<32x128xf32>, vector<256x128xf32> -> vector<256x128xf32>
    %28 = vector.broadcast %1 : vector<1x128xf32> to vector<256x128xf32>
    %29 = arith.addf %27, %28 : vector<256x128xf32>
    %cst_18 = arith.constant 0.000000e+00 : f32
    %30 = vector.broadcast %cst_18 : f32 to vector<256x128xf32>
    %31 = arith.maximumf %29, %30 : vector<256x128xf32>
    %32 = arith.addf %24, %31 : vector<256x128xf32>
    %cst_19 = arith.constant 2.500000e-01 : f32
    %33 = vector.broadcast %cst_19 : f32 to vector<256x128xf32>
    %34 = arith.mulf %32, %33 : vector<256x128xf32>
    %c0_20 = arith.constant 0 : index
    %c0_21 = arith.constant 0 : index
    %35 = vector.load %arg4[%c0_20, %c0_21] : memref<256x128xf32, #tpu.memory_space<vmem>>, vector<256x128xf32>
    tpu.vector_store %arg4[%c0_20, %c0_21], %34 {strides = array<i32>} : memref<256x128xf32, #tpu.memory_space<vmem>>, vector<256x128xf32>,
    return
  }
  func.func @transform_0(%arg0: i32) -> (i32, i32, i32) {
    %c0_i32 = arith.constant 0 : i32
    %c0_i32_0 = arith.constant 0 : i32
    %c0_i32_1 = arith.constant 0 : i32
    return %c0_i32, %arg0, %c0_i32_0 : i32, i32, i32
  }
  func.func @transform_1(%arg0: i32) -> (i32, i32) {
    %c0_i32 = arith.constant 0 : i32
    %c0_i32_0 = arith.constant 0 : i32
    %c0_i32_1 = arith.constant 0 : i32
    return %c0_i32, %c0_i32_0 : i32, i32
  }
  func.func @transform_2(%arg0: i32) -> (i32, i32) {
    %c0_i32 = arith.constant 0 : i32
    %c0_i32_0 = arith.constant 0 : i32
    %c0_i32_1 = arith.constant 0 : i32
    return %c0_i32, %c0_i32_0 : i32, i32
  }
  func.func @transform_3(%arg0: i32) -> (i32, i32) {
    %c0_i32 = arith.constant 0 : i32
    %c0_i32_0 = arith.constant 0 : i32
    return %arg0, %c0_i32 : i32, i32
  }
}

module attributes {stable_mosaic.version = 11 : i64} {
  func.func @_conv_relu_pool_kernel(%arg0: i32, %arg1: memref<4x56x152xf32, #tpu.memory_space<vmem>>, %arg2: memref<152x128xf32, #tpu.memory_space<vmem>>, %arg3: memref<1x128xf32, #tpu.memory_space<vmem>>, %arg4: memref<56x128xf32, #tpu.memory_space<vmem>>) attributes {dimension_semantics = [#tpu.dimension_semantics<parallel>], iteration_bounds = array<i64: 1>, scalar_prefetch = 0 : i64, scratch_operands = 0 : i64, tpu.core_type = #tpu.core_type<tc>, window_params = [{transform_indices = @transform_0, window_bounds = array<i64: 4, 56, 152>}, {pipeline_mode = #tpu.pipeline_mode<synchronous>, transform_indices = @transform_1, window_bounds = array<i64: 152, 128>}, {pipeline_mode = #tpu.pipeline_mode<synchronous>, transform_indices = @transform_2, window_bounds = array<i64: 1, 128>}, {transform_indices = @transform_3, window_bounds = array<i64: 56, 128>}]} {
    %c0 = arith.constant 0 : index
    %c0_0 = arith.constant 0 : index
    %0 = vector.load %arg2[%c0, %c0_0] : memref<152x128xf32, #tpu.memory_space<vmem>>, vector<152x128xf32>
    %c0_1 = arith.constant 0 : index
    %c0_2 = arith.constant 0 : index
    %1 = vector.load %arg3[%c0_1, %c0_2] : memref<1x128xf32, #tpu.memory_space<vmem>>, vector<1x128xf32>
    %c0_3 = arith.constant 0 : index
    %c0_4 = arith.constant 0 : index
    %c0_5 = arith.constant 0 : index
    %2 = vector.load %arg1[%c0_3, %c0_4, %c0_5] : memref<4x56x152xf32, #tpu.memory_space<vmem>>, vector<1x56x152xf32>
    %3 = vector.shape_cast %2 : vector<1x56x152xf32> to vector<56x152xf32>
    %cst = arith.constant dense<0.000000e+00> : vector<56x128xf32>
    %4 = tpu.matmul %3, %0, %cst {dimension_numbers = #tpu.dot_dimension_numbers<[1], [0], [0], [1], [0, 0, 1, 1], [], []>} : vector<56x152xf32>, vector<152x128xf32>, vector<56x128xf32> -> vector<56x128xf32>
    %5 = vector.broadcast %1 : vector<1x128xf32> to vector<56x128xf32>
    %6 = arith.addf %4, %5 : vector<56x128xf32>
    %cst_6 = arith.constant 0.000000e+00 : f32
    %7 = vector.broadcast %cst_6 : f32 to vector<56x128xf32>
    %8 = arith.maximumf %6, %7 : vector<56x128xf32>
    %c1 = arith.constant 1 : index
    %c0_7 = arith.constant 0 : index
    %c0_8 = arith.constant 0 : index
    %9 = vector.load %arg1[%c1, %c0_7, %c0_8] : memref<4x56x152xf32, #tpu.memory_space<vmem>>, vector<1x56x152xf32>
    %10 = vector.shape_cast %9 : vector<1x56x152xf32> to vector<56x152xf32>
    %cst_9 = arith.constant dense<0.000000e+00> : vector<56x128xf32>
    %11 = tpu.matmul %10, %0, %cst_9 {dimension_numbers = #tpu.dot_dimension_numbers<[1], [0], [0], [1], [0, 0, 1, 1], [], []>} : vector<56x152xf32>, vector<152x128xf32>, vector<56x128xf32> -> vector<56x128xf32>
    %12 = vector.broadcast %1 : vector<1x128xf32> to vector<56x128xf32>
    %13 = arith.addf %11, %12 : vector<56x128xf32>
    %cst_10 = arith.constant 0.000000e+00 : f32
    %14 = vector.broadcast %cst_10 : f32 to vector<56x128xf32>
    %15 = arith.maximumf %13, %14 : vector<56x128xf32>
    %16 = arith.addf %8, %15 : vector<56x128xf32>
    %c2 = arith.constant 2 : index
    %c0_11 = arith.constant 0 : index
    %c0_12 = arith.constant 0 : index
    %17 = vector.load %arg1[%c2, %c0_11, %c0_12] : memref<4x56x152xf32, #tpu.memory_space<vmem>>, vector<1x56x152xf32>
    %18 = vector.shape_cast %17 : vector<1x56x152xf32> to vector<56x152xf32>
    %cst_13 = arith.constant dense<0.000000e+00> : vector<56x128xf32>
    %19 = tpu.matmul %18, %0, %cst_13 {dimension_numbers = #tpu.dot_dimension_numbers<[1], [0], [0], [1], [0, 0, 1, 1], [], []>} : vector<56x152xf32>, vector<152x128xf32>, vector<56x128xf32> -> vector<56x128xf32>
    %20 = vector.broadcast %1 : vector<1x128xf32> to vector<56x128xf32>
    %21 = arith.addf %19, %20 : vector<56x128xf32>
    %cst_14 = arith.constant 0.000000e+00 : f32
    %22 = vector.broadcast %cst_14 : f32 to vector<56x128xf32>
    %23 = arith.maximumf %21, %22 : vector<56x128xf32>
    %24 = arith.addf %16, %23 : vector<56x128xf32>
    %c3 = arith.constant 3 : index
    %c0_15 = arith.constant 0 : index
    %c0_16 = arith.constant 0 : index
    %25 = vector.load %arg1[%c3, %c0_15, %c0_16] : memref<4x56x152xf32, #tpu.memory_space<vmem>>, vector<1x56x152xf32>
    %26 = vector.shape_cast %25 : vector<1x56x152xf32> to vector<56x152xf32>
    %cst_17 = arith.constant dense<0.000000e+00> : vector<56x128xf32>
    %27 = tpu.matmul %26, %0, %cst_17 {dimension_numbers = #tpu.dot_dimension_numbers<[1], [0], [0], [1], [0, 0, 1, 1], [], []>} : vector<56x152xf32>, vector<152x128xf32>, vector<56x128xf32> -> vector<56x128xf32>
    %28 = vector.broadcast %1 : vector<1x128xf32> to vector<56x128xf32>
    %29 = arith.addf %27, %28 : vector<56x128xf32>
    %cst_18 = arith.constant 0.000000e+00 : f32
    %30 = vector.broadcast %cst_18 : f32 to vector<56x128xf32>
    %31 = arith.maximumf %29, %30 : vector<56x128xf32>
    %32 = arith.addf %24, %31 : vector<56x128xf32>
    %cst_19 = arith.constant 2.500000e-01 : f32
    %33 = vector.broadcast %cst_19 : f32 to vector<56x128xf32>
    %34 = arith.mulf %32, %33 : vector<56x128xf32>
    %c0_20 = arith.constant 0 : index
    %c0_21 = arith.constant 0 : index
    %35 = vector.load %arg4[%c0_20, %c0_21] : memref<56x128xf32, #tpu.memory_space<vmem>>, vector<56x128xf32>
    tpu.vector_store %arg4[%c0_20, %c0_21], %34 {strides = array<i32>} : memref<56x128xf32, #tpu.memory_space<vmem>>, vector<56x128xf32>,
    return
  }
  func.func @transform_0(%arg0: i32) -> (i32, i32, i32) {
    %c0_i32 = arith.constant 0 : i32
    %c0_i32_0 = arith.constant 0 : i32
    %c0_i32_1 = arith.constant 0 : i32
    return %c0_i32, %arg0, %c0_i32_0 : i32, i32, i32
  }
  func.func @transform_1(%arg0: i32) -> (i32, i32) {
    %c0_i32 = arith.constant 0 : i32
    %c0_i32_0 = arith.constant 0 : i32
    %c0_i32_1 = arith.constant 0 : i32
    return %c0_i32, %c0_i32_0 : i32, i32
  }
  func.func @transform_2(%arg0: i32) -> (i32, i32) {
    %c0_i32 = arith.constant 0 : i32
    %c0_i32_0 = arith.constant 0 : i32
    %c0_i32_1 = arith.constant 0 : i32
    return %c0_i32, %c0_i32_0 : i32, i32
  }
  func.func @transform_3(%arg0: i32) -> (i32, i32) {
    %c0_i32 = arith.constant 0 : i32
    %c0_i32_0 = arith.constant 0 : i32
    return %arg0, %c0_i32 : i32, i32
  }
}

module attributes {stable_mosaic.version = 11 : i64} {
  func.func @_mlp_kernel(%arg0: i32, %arg1: memref<8x400xf32, #tpu.memory_space<vmem>>, %arg2: memref<400x128xf32, #tpu.memory_space<vmem>>, %arg3: memref<1x128xf32, #tpu.memory_space<vmem>>, %arg4: memref<128x128xf32, #tpu.memory_space<vmem>>, %arg5: memref<1x128xf32, #tpu.memory_space<vmem>>, %arg6: memref<128x128xf32, #tpu.memory_space<vmem>>, %arg7: memref<1x128xf32, #tpu.memory_space<vmem>>, %arg8: memref<8x128xf32, #tpu.memory_space<vmem>>) attributes {dimension_semantics = [#tpu.dimension_semantics<parallel>], iteration_bounds = array<i64: 1>, scalar_prefetch = 0 : i64, scratch_operands = 0 : i64, tpu.core_type = #tpu.core_type<tc>, window_params = [{transform_indices = @transform_0, window_bounds = array<i64: 8, 400>}, {pipeline_mode = #tpu.pipeline_mode<synchronous>, transform_indices = @transform_1, window_bounds = array<i64: 400, 128>}, {pipeline_mode = #tpu.pipeline_mode<synchronous>, transform_indices = @transform_2, window_bounds = array<i64: 1, 128>}, {pipeline_mode = #tpu.pipeline_mode<synchronous>, transform_indices = @transform_3, window_bounds = array<i64: 128, 128>}, {pipeline_mode = #tpu.pipeline_mode<synchronous>, transform_indices = @transform_4, window_bounds = array<i64: 1, 128>}, {pipeline_mode = #tpu.pipeline_mode<synchronous>, transform_indices = @transform_5, window_bounds = array<i64: 128, 128>}, {pipeline_mode = #tpu.pipeline_mode<synchronous>, transform_indices = @transform_6, window_bounds = array<i64: 1, 128>}, {transform_indices = @transform_7, window_bounds = array<i64: 8, 128>}]} {
    %c0 = arith.constant 0 : index
    %c0_0 = arith.constant 0 : index
    %0 = vector.load %arg1[%c0, %c0_0] : memref<8x400xf32, #tpu.memory_space<vmem>>, vector<8x400xf32>
    %c0_1 = arith.constant 0 : index
    %c0_2 = arith.constant 0 : index
    %1 = vector.load %arg2[%c0_1, %c0_2] : memref<400x128xf32, #tpu.memory_space<vmem>>, vector<400x128xf32>
    %cst = arith.constant dense<0.000000e+00> : vector<8x128xf32>
    %2 = tpu.matmul %0, %1, %cst {dimension_numbers = #tpu.dot_dimension_numbers<[1], [0], [0], [1], [0, 0, 1, 1], [], []>} : vector<8x400xf32>, vector<400x128xf32>, vector<8x128xf32> -> vector<8x128xf32>
    %c0_3 = arith.constant 0 : index
    %c0_4 = arith.constant 0 : index
    %3 = vector.load %arg3[%c0_3, %c0_4] : memref<1x128xf32, #tpu.memory_space<vmem>>, vector<1x128xf32>
    %4 = vector.broadcast %3 : vector<1x128xf32> to vector<8x128xf32>
    %5 = arith.addf %2, %4 : vector<8x128xf32>
    %cst_5 = arith.constant 0.000000e+00 : f32
    %6 = vector.broadcast %cst_5 : f32 to vector<8x128xf32>
    %7 = arith.maximumf %5, %6 : vector<8x128xf32>
    %c0_6 = arith.constant 0 : index
    %c0_7 = arith.constant 0 : index
    %8 = vector.load %arg4[%c0_6, %c0_7] : memref<128x128xf32, #tpu.memory_space<vmem>>, vector<128x128xf32>
    %cst_8 = arith.constant dense<0.000000e+00> : vector<8x128xf32>
    %9 = tpu.matmul %7, %8, %cst_8 {dimension_numbers = #tpu.dot_dimension_numbers<[1], [0], [0], [1], [0, 0, 1, 1], [], []>} : vector<8x128xf32>, vector<128x128xf32>, vector<8x128xf32> -> vector<8x128xf32>
    %c0_9 = arith.constant 0 : index
    %c0_10 = arith.constant 0 : index
    %10 = vector.load %arg5[%c0_9, %c0_10] : memref<1x128xf32, #tpu.memory_space<vmem>>, vector<1x128xf32>
    %11 = vector.broadcast %10 : vector<1x128xf32> to vector<8x128xf32>
    %12 = arith.addf %9, %11 : vector<8x128xf32>
    %cst_11 = arith.constant 0.000000e+00 : f32
    %13 = vector.broadcast %cst_11 : f32 to vector<8x128xf32>
    %14 = arith.maximumf %12, %13 : vector<8x128xf32>
    %c0_12 = arith.constant 0 : index
    %c0_13 = arith.constant 0 : index
    %15 = vector.load %arg6[%c0_12, %c0_13] : memref<128x128xf32, #tpu.memory_space<vmem>>, vector<128x128xf32>
    %cst_14 = arith.constant dense<0.000000e+00> : vector<8x128xf32>
    %16 = tpu.matmul %14, %15, %cst_14 {dimension_numbers = #tpu.dot_dimension_numbers<[1], [0], [0], [1], [0, 0, 1, 1], [], []>} : vector<8x128xf32>, vector<128x128xf32>, vector<8x128xf32> -> vector<8x128xf32>
    %c0_15 = arith.constant 0 : index
    %c0_16 = arith.constant 0 : index
    %17 = vector.load %arg7[%c0_15, %c0_16] : memref<1x128xf32, #tpu.memory_space<vmem>>, vector<1x128xf32>
    %18 = vector.broadcast %17 : vector<1x128xf32> to vector<8x128xf32>
    %19 = arith.addf %16, %18 : vector<8x128xf32>
    %c0_17 = arith.constant 0 : index
    %c0_18 = arith.constant 0 : index
    %20 = vector.load %arg8[%c0_17, %c0_18] : memref<8x128xf32, #tpu.memory_space<vmem>>, vector<8x128xf32>
    tpu.vector_store %arg8[%c0_17, %c0_18], %19 {strides = array<i32>} : memref<8x128xf32, #tpu.memory_space<vmem>>, vector<8x128xf32>,
    return
  }
  func.func @transform_0(%arg0: i32) -> (i32, i32) {
    %c0_i32 = arith.constant 0 : i32
    %c0_i32_0 = arith.constant 0 : i32
    return %arg0, %c0_i32 : i32, i32
  }
  func.func @transform_1(%arg0: i32) -> (i32, i32) {
    %c0_i32 = arith.constant 0 : i32
    %c0_i32_0 = arith.constant 0 : i32
    %c0_i32_1 = arith.constant 0 : i32
    return %c0_i32, %c0_i32_0 : i32, i32
  }
  func.func @transform_2(%arg0: i32) -> (i32, i32) {
    %c0_i32 = arith.constant 0 : i32
    %c0_i32_0 = arith.constant 0 : i32
    %c0_i32_1 = arith.constant 0 : i32
    return %c0_i32, %c0_i32_0 : i32, i32
  }
  func.func @transform_3(%arg0: i32) -> (i32, i32) {
    %c0_i32 = arith.constant 0 : i32
    %c0_i32_0 = arith.constant 0 : i32
    %c0_i32_1 = arith.constant 0 : i32
    return %c0_i32, %c0_i32_0 : i32, i32
  }
  func.func @transform_4(%arg0: i32) -> (i32, i32) {
    %c0_i32 = arith.constant 0 : i32
    %c0_i32_0 = arith.constant 0 : i32
    %c0_i32_1 = arith.constant 0 : i32
    return %c0_i32, %c0_i32_0 : i32, i32
  }
  func.func @transform_5(%arg0: i32) -> (i32, i32) {
    %c0_i32 = arith.constant 0 : i32
    %c0_i32_0 = arith.constant 0 : i32
    %c0_i32_1 = arith.constant 0 : i32
    return %c0_i32, %c0_i32_0 : i32, i32
  }
  func.func @transform_6(%arg0: i32) -> (i32, i32) {
    %c0_i32 = arith.constant 0 : i32
    %c0_i32_0 = arith.constant 0 : i32
    %c0_i32_1 = arith.constant 0 : i32
    return %c0_i32, %c0_i32_0 : i32, i32
  }
  func.func @transform_7(%arg0: i32) -> (i32, i32) {
    %c0_i32 = arith.constant 0 : i32
    %c0_i32_0 = arith.constant 0 : i32
    return %arg0, %c0_i32 : i32, i32
  }
}

</mosaic_0001>

<llo_original>
// kernel: lenet5_forward.3
$region0: #{lenet5_forward.3}
  #allocation0 [shape = 'u32[]', space=smem, size = 0x4, offset = 0x4, fixed_abs, tag = 'smem constant byte address 0x4 - core index']
  #allocation1 [shape = 'u32[144,128]{1,0:T(1,128)}', space=vmem, size = 0x12000, scoped, tag = 'internal scratch']
  %s0 = inlined_call_operand.vmem [shape: f32[4,512,32], index: 0, kind: input, shape index: {}]
  %s1 = inlined_call_operand.vmem [shape: f32[32,128], index: 1, kind: input, shape index: {}]
  %s2 = inlined_call_operand.vmem [shape: f32[1,128], index: 2, kind: input, shape index: {}]
  %s3 = inlined_call_operand.vmem [shape: f32[512,128], index: 3, kind: output, shape index: {}]
  %s4 = sld [smem:[#allocation0]]
  $region83: #{lenet5_forward.3} parent=0
    _
  %s6 = ssub.s32 1, %s4
  %s7 = scalar_select 0, %s6, %s4
  $region1: #{lenet5_forward.3} parent=0
    #allocation2 [shape = 'u8[1048576]{0}', space=vmem, size = 0x100000, scoped, tag = 'input window, operand 0']
    loop: start=0, step=1, limit=4
    $region2: #{lenet5_forward.3} parent=1 // loop_pre_header
      _
    $region3: #{lenet5_forward.3} parent=1 // loop_header
      %s9 = sphi 0, %s13
      %p10 = scmp.ge.s32.totalorder %s9, 4
      %s19 = sphi 0, %s21
      %s22 = sphi 0, %s19
      %s23 = sphi 0, %s22
      %s39 = sphi 0, %s23
      %s43 = sphi 0, %s43
      %s45 = sphi 0, %s43
      %s46 = sphi 0, %s45
      %s60 = sphi 0, %s46
      %s64 = sphi 0, %s64
      %s66 = sphi 0, %s64
      %s67 = sphi 0, %s66
      %s81 = sphi 0, %s67
      %s87 = sphi 0, %s89
      %s90 = sphi 0, %s87
      %s91 = sphi 0, %s90
      %s107 = sphi 0, %s91
    $region4: #{lenet5_forward.3} parent=1 // loop_header_branch
      %12 = sbr.rel (%p10) target = $region8
    $region5: #{lenet5_forward.3} parent=1 // loop_body
      %s14 = ssub.s32 %s9, 1
      %s15 = ssub.s32 %s9, 2
      %s16 = sadd.s32 %s9, 1
      %s17 = ssub.s32 %s9, %s16
      %p18 = scmp.eq.s32.totalorder %s17, 0
      %s20 = sadd.s32 %s19, 1
      %s21 = scalar_select %p18, %s19, %s20
      %p24 = pneg %p18
      %p25 = scmp.eq.s32.totalorder %s9, 1
      %p26 = por %p24, %p25
      %p27 = scmp.ne.s32.totalorder %s19, %s22
      %p28 = scmp.eq.s32.totalorder %s9, 0
      %p29 = por %p27, %p28
      %p30 = scmp.ne.s32.totalorder %s19, %s22
      %p31 = scmp.eq.s32.totalorder %s14, 1
      %p32 = por %p30, %p31
      %p33 = scmp.ne.s32.totalorder %s22, %s23
      %p34 = scmp.eq.s32.totalorder %s14, 0
      %p35 = por %p33, %p34
      %p36 = scmp.ne.s32.totalorder %s22, %s23
      %p37 = scmp.eq.s32.totalorder %s15, 1
      %p38 = por %p36, %p37
      %p40 = scmp.ne.s32.totalorder %s23, %s39
      %p41 = scmp.eq.s32.totalorder %s15, 0
      %p42 = por %p40, %p41
      %s44 = sadd.s32 %s43, 1
      %p47 = scmp.eq.s32.totalorder %s9, 1
      %p48 = scmp.ne.s32.totalorder %s43, %s45
      %p49 = scmp.eq.s32.totalorder %s9, 0
      %p50 = por %p48, %p49
      %p51 = scmp.ne.s32.totalorder %s43, %s45
      %p52 = scmp.eq.s32.totalorder %s14, 1
      %p53 = por %p51, %p52
      %p54 = scmp.ne.s32.totalorder %s45, %s46
      %p55 = scmp.eq.s32.totalorder %s14, 0
      %p56 = por %p54, %p55
      %p57 = scmp.ne.s32.totalorder %s45, %s46
      %p58 = scmp.eq.s32.totalorder %s15, 1
      %p59 = por %p57, %p58
      %p61 = scmp.ne.s32.totalorder %s46, %s60
      %p62 = scmp.eq.s32.totalorder %s15, 0
      %p63 = por %p61, %p62
      %s65 = sadd.s32 %s64, 1
      %p68 = scmp.eq.s32.totalorder %s9, 1
      %p69 = scmp.ne.s32.totalorder %s64, %s66
      %p70 = scmp.eq.s32.totalorder %s9, 0
      %p71 = por %p69, %p70
      %p72 = scmp.ne.s32.totalorder %s64, %s66
      %p73 = scmp.eq.s32.totalorder %s14, 1
      %p74 = por %p72, %p73
      %p75 = scmp.ne.s32.totalorder %s66, %s67
      %p76 = scmp.eq.s32.totalorder %s14, 0
      %p77 = por %p75, %p76
      %p78 = scmp.ne.s32.totalorder %s66, %s67
      %p79 = scmp.eq.s32.totalorder %s15, 1
      %p80 = por %p78, %p79
      %p82 = scmp.ne.s32.totalorder %s67, %s81
      %p83 = scmp.eq.s32.totalorder %s15, 0
      %p84 = por %p82, %p83
      %s85 = ssub.s32 %s9, %s16
      %p86 = scmp.eq.s32.totalorder %s85, 0
      %s88 = sadd.s32 %s87, 1
      %s89 = scalar_select %p86, %s87, %s88
      %p92 = pneg %p86
      %p93 = scmp.eq.s32.totalorder %s9, 1
      %p94 = por %p92, %p93
      %p95 = scmp.ne.s32.totalorder %s87, %s90
      %p96 = scmp.eq.s32.totalorder %s9, 0
      %p97 = por %p95, %p96
      %p98 = scmp.ne.s32.totalorder %s87, %s90
      %p99 = scmp.eq.s32.totalorder %s14, 1
      %p100 = por %p98, %p99
      %p101 = scmp.ne.s32.totalorder %s90, %s91
      %p102 = scmp.eq.s32.totalorder %s14, 0
      %p103 = por %p101, %p102
      %p104 = scmp.ne.s32.totalorder %s90, %s91
      %p105 = scmp.eq.s32.totalorder %s15, 1
      %p106 = por %p104, %p105
      %p108 = scmp.ne.s32.totalorder %s91, %s107
      %p109 = scmp.eq.s32.totalorder %s15, 0
      %p110 = por %p108, %p109
      %p111 = scmp.le.s32.totalorder 1, %s9
      %p112 = scmp.lt.s32.totalorder %s9, 3
      %p113 = pnand %p111, %p112
      %p114 = pneg %p113
      // Predicated region
      $region9: #{lenet5_forward.3} parent=5 // pred_check
        _
      $region10: #{lenet5_forward.3} parent=5 // pred_check_branch
        %116 = sbr.rel (%p113) target = $region12
      $region11: #{lenet5_forward.3} parent=5 // pred_region
        %s117 = ssub.s32 %s9, 1
        // Predicated region
        $region13: #{lenet5_forward.3} parent=11 // pred_check
          %p118 = pneg %p56
        $region14: #{lenet5_forward.3} parent=11 // pred_check_branch
          %120 = sbr.rel (%p118) target = $region16
        $region15: #{lenet5_forward.3} parent=11 // pred_region
          _
        $region16: #{lenet5_forward.3} parent=11 // pred_fallthru
          _
        // Predicated region
        $region17: #{lenet5_forward.3} parent=11 // pred_check
          %p121 = pneg %p77
        $region18: #{lenet5_forward.3} parent=11 // pred_check_branch
          %123 = sbr.rel (%p121) target = $region20
        $region19: #{lenet5_forward.3} parent=11 // pred_region
          _
        $region20: #{lenet5_forward.3} parent=11 // pred_fallthru
          _
      $region12: #{lenet5_forward.3} parent=5 // pred_fallthru
        _
      %p124 = scmp.lt.s32.totalorder %s9, 2
      // Predicated region
      $region21: #{lenet5_forward.3} parent=5 // pred_check
        %p125 = pneg %p124
      $region22: #{lenet5_forward.3} parent=5 // pred_check_branch
        %127 = sbr.rel (%p125) target = $region24
      $region23: #{lenet5_forward.3} parent=5 // pred_region
        // Predicated region
        $region25: #{lenet5_forward.3} parent=23 // pred_check
          %p128 = pneg %p29
        $region26: #{lenet5_forward.3} parent=23 // pred_check_branch
          %130 = sbr.rel (%p128) target = $region28
        $region27: #{lenet5_forward.3} parent=23 // pred_region
          %s131 = sand.u32 %s19, 1
          %s132 = sand.u32 %s19, 1
          %s133 = smul.addr %s132, 1024
          %s134 = scalar_lea.vmem [#allocation2], %s133
          %s135 = smul.u32 32, %s9
          %s136 = smul.addr %s135, 8
          %s137 = scalar_lea.vmem %s0, %s136
          // Predicated region
          $region29: #{lenet5_forward.3} parent=27 // pred_check
            _
          $region30: #{lenet5_forward.3} parent=27 // pred_check_branch
            %139 = sbr.rel (0) target = $region32
          $region31: #{lenet5_forward.3} parent=27 // pred_region
            // Predicated region
            $region33: #{lenet5_forward.3} parent=31 // pred_check
              _
            $region34: #{lenet5_forward.3} parent=31 // pred_check_branch
              %141 = sbr.rel (0) target = $region36
            $region35: #{lenet5_forward.3} parent=31 // pred_region
              // Predicated region
              $region48: #{lenet5_forward.3} parent=35 // pred_check
                _
              $region49: #{lenet5_forward.3} parent=35 // pred_check_branch
                %410 = sbr.rel (0) target = $region51
              $region50: #{lenet5_forward.3} parent=35 // pred_region
                loop: start=0, step=1, limit=1
                $region52: #{lenet5_forward.3} parent=50 // loop_pre_header
                  _
                $region53: #{lenet5_forward.3} parent=50 // loop_header
                  %s412 = sphi 0, %s416
                  %p413 = scmp.ge.s32.totalorder %s412, 1
                  %s417 = sphi %s137, %s137
                  %s418 = sphi %s134, %s134
                $region54: #{lenet5_forward.3} parent=50 // loop_header_branch
                  %415 = sbr.rel (%p413) target = $region58
                $region55: #{lenet5_forward.3} parent=50 // loop_body
                  %v419 = vld [vmem:[%s417] sm:$0xff]
                  %420 = vst [vmem:[%s418] sm:$0xff] %v419
                  %v421 = vld [vmem:[%s417 + $0x8] sm:$0xff]
                  %422 = vst [vmem:[%s418 + $0x8] sm:$0xff] %v421
                  %v423 = vld [vmem:[%s417 + $0x10] sm:$0xff]
                  %424 = vst [vmem:[%s418 + $0x10] sm:$0xff] %v423
                  %v425 = vld [vmem:[%s417 + $0x18] sm:$0xff]
                  %426 = vst [vmem:[%s418 + $0x18] sm:$0xff] %v425
                  %v427 = vld [vmem:[%s417 + $0x20] sm:$0xff]
                  %428 = vst [vmem:[%s418 + $0x20] sm:$0xff] %v427
                  %v429 = vld [vmem:[%s417 + $0x28] sm:$0xff]
                  %430 = vst [vmem:[%s418 + $0x28] sm:$0xff] %v429
                  %v431 = vld [vmem:[%s417 + $0x30] sm:$0xff]
                  %432 = vst [vmem:[%s418 + $0x30] sm:$0xff] %v431
                  %v433 = vld [vmem:[%s417 + $0x38] sm:$0xff]
                  %434 = vst [vmem:[%s418 + $0x38] sm:$0xff] %v433
                  %v435 = vld [vmem:[%s417 + $0x40] sm:$0xff]
                  %436 = vst [vmem:[%s418 + $0x40] sm:$0xff] %v435
                  %v437 = vld [vmem:[%s417 + $0x48] sm:$0xff]
                  %438 = vst [vmem:[%s418 + $0x48] sm:$0xff] %v437
                  %v439 = vld [vmem:[%s417 + $0x50] sm:$0xff]
                  %440 = vst [vmem:[%s418 + $0x50] sm:$0xff] %v439
                  %v441 = vld [vmem:[%s417 + $0x58] sm:$0xff]
                  %442 = vst [vmem:[%s418 + $0x58] sm:$0xff] %v441
                  %v443 = vld [vmem:[%s417 + $0x60] sm:$0xff]
                  %444 = vst [vmem:[%s418 + $0x60] sm:$0xff] %v443
                  %v445 = vld [vmem:[%s417 + $0x68] sm:$0xff]
                  %446 = vst [vmem:[%s418 + $0x68] sm:$0xff] %v445
                  %v447 = vld [vmem:[%s417 + $0x70] sm:$0xff]
                  %448 = vst [vmem:[%s418 + $0x70] sm:$0xff] %v447
                  %v449 = vld [vmem:[%s417 + $0x78] sm:$0xff]
                  %450 = vst [vmem:[%s418 + $0x78] sm:$0xff] %v449
                  %v451 = vld [vmem:[%s417 + $0x80] sm:$0xff]
                  %452 = vst [vmem:[%s418 + $0x80] sm:$0xff] %v451
                  %v453 = vld [vmem:[%s417 + $0x88] sm:$0xff]
                  %454 = vst [vmem:[%s418 + $0x88] sm:$0xff] %v453
                  %v455 = vld [vmem:[%s417 + $0x90] sm:$0xff]
                  %456 = vst [vmem:[%s418 + $0x90] sm:$0xff] %v455
                  %v457 = vld [vmem:[%s417 + $0x98] sm:$0xff]
                  %458 = vst [vmem:[%s418 + $0x98] sm:$0xff] %v457
                  %v459 = vld [vmem:[%s417 + $0xa0] sm:$0xff]
                  %460 = vst [vmem:[%s418 + $0xa0] sm:$0xff] %v459
                  %v461 = vld [vmem:[%s417 + $0xa8] sm:$0xff]
                  %462 = vst [vmem:[%s418 + $0xa8] sm:$0xff] %v461
                  %v463 = vld [vmem:[%s417 + $0xb0] sm:$0xff]
                  %464 = vst [vmem:[%s418 + $0xb0] sm:$0xff] %v463
                  %v465 = vld [vmem:[%s417 + $0xb8] sm:$0xff]
                  %466 = vst [vmem:[%s418 + $0xb8] sm:$0xff] %v465
                  %v467 = vld [vmem:[%s417 + $0xc0] sm:$0xff]
                  %468 = vst [vmem:[%s418 + $0xc0] sm:$0xff] %v467
                  %v469 = vld [vmem:[%s417 + $0xc8] sm:$0xff]
                  %470 = vst [vmem:[%s418 + $0xc8] sm:$0xff] %v469
                  %v471 = vld [vmem:[%s417 + $0xd0] sm:$0xff]
                  %472 = vst [vmem:[%s418 + $0xd0] sm:$0xff] %v471
                  %v473 = vld [vmem:[%s417 + $0xd8] sm:$0xff]
                  %474 = vst [vmem:[%s418 + $0xd8] sm:$0xff] %v473
                  %v475 = vld [vmem:[%s417 + $0xe0] sm:$0xff]
                  %476 = vst [vmem:[%s418 + $0xe0] sm:$0xff] %v475
                  %v477 = vld [vmem:[%s417 + $0xe8] sm:$0xff]
                  %478 = vst [vmem:[%s418 + $0xe8] sm:$0xff] %v477
                  %v479 = vld [vmem:[%s417 + $0xf0] sm:$0xff]
                  %480 = vst [vmem:[%s418 + $0xf0] sm:$0xff] %v479
                  %v481 = vld [vmem:[%s417 + $0xf8] sm:$0xff]
                  %482 = vst [vmem:[%s418 + $0xf8] sm:$0xff] %v481
                  %v483 = vld [vmem:[%s417 + $0x200] sm:$0xff]
                  %484 = vst [vmem:[%s418 + $0x100] sm:$0xff] %v483
                  %v485 = vld [vmem:[%s417 + $0x208] sm:$0xff]
                  %486 = vst [vmem:[%s418 + $0x108] sm:$0xff] %v485
                  %v487 = vld [vmem:[%s417 + $0x210] sm:$0xff]
                  %488 = vst [vmem:[%s418 + $0x110] sm:$0xff] %v487
                  %v489 = vld [vmem:[%s417 + $0x218] sm:$0xff]
                  %490 = vst [vmem:[%s418 + $0x118] sm:$0xff] %v489
                  %v491 = vld [vmem:[%s417 + $0x220] sm:$0xff]
                  %492 = vst [vmem:[%s418 + $0x120] sm:$0xff] %v491
                  %v493 = vld [vmem:[%s417 + $0x228] sm:$0xff]
                  %494 = vst [vmem:[%s418 + $0x128] sm:$0xff] %v493
                  %v495 = vld [vmem:[%s417 + $0x230] sm:$0xff]
                  %496 = vst [vmem:[%s418 + $0x130] sm:$0xff] %v495
                  %v497 = vld [vmem:[%s417 + $0x238] sm:$0xff]
                  %498 = vst [vmem:[%s418 + $0x138] sm:$0xff] %v497
                  %v499 = vld [vmem:[%s417 + $0x240] sm:$0xff]
                  %500 = vst [vmem:[%s418 + $0x140] sm:$0xff] %v499
                  %v501 = vld [vmem:[%s417 + $0x248] sm:$0xff]
                  %502 = vst [vmem:[%s418 + $0x148] sm:$0xff] %v501
                  %v503 = vld [vmem:[%s417 + $0x250] sm:$0xff]
                  %504 = vst [vmem:[%s418 + $0x150] sm:$0xff] %v503
                  %v505 = vld [vmem:[%s417 + $0x258] sm:$0xff]
                  %506 = vst [vmem:[%s418 + $0x158] sm:$0xff] %v505
                  %v507 = vld [vmem:[%s417 + $0x260] sm:$0xff]
                  %508 = vst [vmem:[%s418 + $0x160] sm:$0xff] %v507
                  %v509 = vld [vmem:[%s417 + $0x268] sm:$0xff]
                  %510 = vst [vmem:[%s418 + $0x168] sm:$0xff] %v509
                  %v511 = vld [vmem:[%s417 + $0x270] sm:$0xff]
                  %512 = vst [vmem:[%s418 + $0x170] sm:$0xff] %v511
                  %v513 = vld [vmem:[%s417 + $0x278] sm:$0xff]
                  %514 = vst [vmem:[%s418 + $0x178] sm:$0xff] %v513
                  %v515 = vld [vmem:[%s417 + $0x280] sm:$0xff]
                  %516 = vst [vmem:[%s418 + $0x180] sm:$0xff] %v515
                  %v517 = vld [vmem:[%s417 + $0x288] sm:$0xff]
                  %518 = vst [vmem:[%s418 + $0x188] sm:$0xff] %v517
                  %v519 = vld [vmem:[%s417 + $0x290] sm:$0xff]
                  %520 = vst [vmem:[%s418 + $0x190] sm:$0xff] %v519
                  %v521 = vld [vmem:[%s417 + $0x298] sm:$0xff]
                  %522 = vst [vmem:[%s418 + $0x198] sm:$0xff] %v521
                  %v523 = vld [vmem:[%s417 + $0x2a0] sm:$0xff]
                  %524 = vst [vmem:[%s418 + $0x1a0] sm:$0xff] %v523
                  %v525 = vld [vmem:[%s417 + $0x2a8] sm:$0xff]
                  %526 = vst [vmem:[%s418 + $0x1a8] sm:$0xff] %v525
                  %v527 = vld [vmem:[%s417 + $0x2b0] sm:$0xff]
                  %528 = vst [vmem:[%s418 + $0x1b0] sm:$0xff] %v527
                  %v529 = vld [vmem:[%s417 + $0x2b8] sm:$0xff]
                  %530 = vst [vmem:[%s418 + $0x1b8] sm:$0xff] %v529
                  %v531 = vld [vmem:[%s417 + $0x2c0] sm:$0xff]
                  %532 = vst [vmem:[%s418 + $0x1c0] sm:$0xff] %v531
                  %v533 = vld [vmem:[%s417 + $0x2c8] sm:$0xff]
                  %534 = vst [vmem:[%s418 + $0x1c8] sm:$0xff] %v533
                  %v535 = vld [vmem:[%s417 + $0x2d0] sm:$0xff]
                  %536 = vst [vmem:[%s418 + $0x1d0] sm:$0xff] %v535
                  %v537 = vld [vmem:[%s417 + $0x2d8] sm:$0xff]
                  %538 = vst [vmem:[%s418 + $0x1d8] sm:$0xff] %v537
                  %v539 = vld [vmem:[%s417 + $0x2e0] sm:$0xff]
                  %540 = vst [vmem:[%s418 + $0x1e0] sm:$0xff] %v539
                  %v541 = vld [vmem:[%s417 + $0x2e8] sm:$0xff]
                  %542 = vst [vmem:[%s418 + $0x1e8] sm:$0xff] %v541
                  %v543 = vld [vmem:[%s417 + $0x2f0] sm:$0xff]
                  %544 = vst [vmem:[%s418 + $0x1f0] sm:$0xff] %v543
                  %v545 = vld [vmem:[%s417 + $0x2f8] sm:$0xff]
                  %546 = vst [vmem:[%s418 + $0x1f8] sm:$0xff] %v545
                  %v547 = vld [vmem:[%s417 + $0x400] sm:$0xff]
                  %548 = vst [vmem:[%s418 + $0x200] sm:$0xff] %v547
                  %v549 = vld [vmem:[%s417 + $0x408] sm:$0xff]
                  %550 = vst [vmem:[%s418 + $0x208] sm:$0xff] %v549
                  %v551 = vld [vmem:[%s417 + $0x410] sm:$0xff]
                  %552 = vst [vmem:[%s418 + $0x210] sm:$0xff] %v551
                  %v553 = vld [vmem:[%s417 + $0x418] sm:$0xff]
                  %554 = vst [vmem:[%s418 + $0x218] sm:$0xff] %v553
                  %v555 = vld [vmem:[%s417 + $0x420] sm:$0xff]
                  %556 = vst [vmem:[%s418 + $0x220] sm:$0xff] %v555
                  %v557 = vld [vmem:[%s417 + $0x428] sm:$0xff]
                  %558 = vst [vmem:[%s418 + $0x228] sm:$0xff] %v557
                  %v559 = vld [vmem:[%s417 + $0x430] sm:$0xff]
                  %560 = vst [vmem:[%s418 + $0x230] sm:$0xff] %v559
                  %v561 = vld [vmem:[%s417 + $0x438] sm:$0xff]
                  %562 = vst [vmem:[%s418 + $0x238] sm:$0xff] %v561
                  %v563 = vld [vmem:[%s417 + $0x440] sm:$0xff]
                  %564 = vst [vmem:[%s418 + $0x240] sm:$0xff] %v563
                  %v565 = vld [vmem:[%s417 + $0x448] sm:$0xff]
                  %566 = vst [vmem:[%s418 + $0x248] sm:$0xff] %v565
                  %v567 = vld [vmem:[%s417 + $0x450] sm:$0xff]
                  %568 = vst [vmem:[%s418 + $0x250] sm:$0xff] %v567
                  %v569 = vld [vmem:[%s417 + $0x458] sm:$0xff]
                  %570 = vst [vmem:[%s418 + $0x258] sm:$0xff] %v569
                  %v571 = vld [vmem:[%s417 + $0x460] sm:$0xff]
                  %572 = vst [vmem:[%s418 + $0x260] sm:$0xff] %v571
                  %v573 = vld [vmem:[%s417 + $0x468] sm:$0xff]
                  %574 = vst [vmem:[%s418 + $0x268] sm:$0xff] %v573
                  %v575 = vld [vmem:[%s417 + $0x470] sm:$0xff]
                  %576 = vst [vmem:[%s418 + $0x270] sm:$0xff] %v575
                  %v577 = vld [vmem:[%s417 + $0x478] sm:$0xff]
                  %578 = vst [vmem:[%s418 + $0x278] sm:$0xff] %v577
                  %v579 = vld [vmem:[%s417 + $0x480] sm:$0xff]
                  %580 = vst [vmem:[%s418 + $0x280] sm:$0xff] %v579
                  %v581 = vld [vmem:[%s417 + $0x488] sm:$0xff]
                  %582 = vst [vmem:[%s418 + $0x288] sm:$0xff] %v581
                  %v583 = vld [vmem:[%s417 + $0x490] sm:$0xff]
                  %584 = vst [vmem:[%s418 + $0x290] sm:$0xff] %v583
                  %v585 = vld [vmem:[%s417 + $0x498] sm:$0xff]
                  %586 = vst [vmem:[%s418 + $0x298] sm:$0xff] %v585
                  %v587 = vld [vmem:[%s417 + $0x4a0] sm:$0xff]
                  %588 = vst [vmem:[%s418 + $0x2a0] sm:$0xff] %v587
                  %v589 = vld [vmem:[%s417 + $0x4a8] sm:$0xff]
                  %590 = vst [vmem:[%s418 + $0x2a8] sm:$0xff] %v589
                  %v591 = vld [vmem:[%s417 + $0x4b0] sm:$0xff]
                  %592 = vst [vmem:[%s418 + $0x2b0] sm:$0xff] %v591
                  %v593 = vld [vmem:[%s417 + $0x4b8] sm:$0xff]
                  %594 = vst [vmem:[%s418 + $0x2b8] sm:$0xff] %v593
                  %v595 = vld [vmem:[%s417 + $0x4c0] sm:$0xff]
                  %596 = vst [vmem:[%s418 + $0x2c0] sm:$0xff] %v595
                  %v597 = vld [vmem:[%s417 + $0x4c8] sm:$0xff]
                  %598 = vst [vmem:[%s418 + $0x2c8] sm:$0xff] %v597
                  %v599 = vld [vmem:[%s417 + $0x4d0] sm:$0xff]
                  %600 = vst [vmem:[%s418 + $0x2d0] sm:$0xff] %v599
                  %v601 = vld [vmem:[%s417 + $0x4d8] sm:$0xff]
                  %602 = vst [vmem:[%s418 + $0x2d8] sm:$0xff] %v601
                  %v603 = vld [vmem:[%s417 + $0x4e0] sm:$0xff]
                  %604 = vst [vmem:[%s418 + $0x2e0] sm:$0xff] %v603
                  %v605 = vld [vmem:[%s417 + $0x4e8] sm:$0xff]
                  %606 = vst [vmem:[%s418 + $0x2e8] sm:$0xff] %v605
                  %v607 = vld [vmem:[%s417 + $0x4f0] sm:$0xff]
                  %608 = vst [vmem:[%s418 + $0x2f0] sm:$0xff] %v607
                  %v609 = vld [vmem:[%s417 + $0x4f8] sm:$0xff]
                  %610 = vst [vmem:[%s418 + $0x2f8] sm:$0xff] %v609
                  %v611 = vld [vmem:[%s417 + $0x600] sm:$0xff]
                  %612 = vst [vmem:[%s418 + $0x300] sm:$0xff] %v611
                  %v613 = vld [vmem:[%s417 + $0x608] sm:$0xff]
                  %614 = vst [vmem:[%s418 + $0x308] sm:$0xff] %v613
                  %v615 = vld [vmem:[%s417 + $0x610] sm:$0xff]
                  %616 = vst [vmem:[%s418 + $0x310] sm:$0xff] %v615
                  %v617 = vld [vmem:[%s417 + $0x618] sm:$0xff]
                  %618 = vst [vmem:[%s418 + $0x318] sm:$0xff] %v617
                  %v619 = vld [vmem:[%s417 + $0x620] sm:$0xff]
                  %620 = vst [vmem:[%s418 + $0x320] sm:$0xff] %v619
                  %v621 = vld [vmem:[%s417 + $0x628] sm:$0xff]
                  %622 = vst [vmem:[%s418 + $0x328] sm:$0xff] %v621
                  %v623 = vld [vmem:[%s417 + $0x630] sm:$0xff]
                  %624 = vst [vmem:[%s418 + $0x330] sm:$0xff] %v623
                  %v625 = vld [vmem:[%s417 + $0x638] sm:$0xff]
                  %626 = vst [vmem:[%s418 + $0x338] sm:$0xff] %v625
                  %v627 = vld [vmem:[%s417 + $0x640] sm:$0xff]
                  %628 = vst [vmem:[%s418 + $0x340] sm:$0xff] %v627
                  %v629 = vld [vmem:[%s417 + $0x648] sm:$0xff]
                  %630 = vst [vmem:[%s418 + $0x348] sm:$0xff] %v629
                  %v631 = vld [vmem:[%s417 + $0x650] sm:$0xff]
                  %632 = vst [vmem:[%s418 + $0x350] sm:$0xff] %v631
                  %v633 = vld [vmem:[%s417 + $0x658] sm:$0xff]
                  %634 = vst [vmem:[%s418 + $0x358] sm:$0xff] %v633
                  %v635 = vld [vmem:[%s417 + $0x660] sm:$0xff]
                  %636 = vst [vmem:[%s418 + $0x360] sm:$0xff] %v635
                  %v637 = vld [vmem:[%s417 + $0x668] sm:$0xff]
                  %638 = vst [vmem:[%s418 + $0x368] sm:$0xff] %v637
                  %v639 = vld [vmem:[%s417 + $0x670] sm:$0xff]
                  %640 = vst [vmem:[%s418 + $0x370] sm:$0xff] %v639
                  %v641 = vld [vmem:[%s417 + $0x678] sm:$0xff]
                  %642 = vst [vmem:[%s418 + $0x378] sm:$0xff] %v641
                  %v643 = vld [vmem:[%s417 + $0x680] sm:$0xff]
                  %644 = vst [vmem:[%s418 + $0x380] sm:$0xff] %v643
                  %v645 = vld [vmem:[%s417 + $0x688] sm:$0xff]
                  %646 = vst [vmem:[%s418 + $0x388] sm:$0xff] %v645
                  %v647 = vld [vmem:[%s417 + $0x690] sm:$0xff]
                  %648 = vst [vmem:[%s418 + $0x390] sm:$0xff] %v647
                  %v649 = vld [vmem:[%s417 + $0x698] sm:$0xff]
                  %650 = vst [vmem:[%s418 + $0x398] sm:$0xff] %v649
                  %v651 = vld [vmem:[%s417 + $0x6a0] sm:$0xff]
                  %652 = vst [vmem:[%s418 + $0x3a0] sm:$0xff] %v651
                  %v653 = vld [vmem:[%s417 + $0x6a8] sm:$0xff]
                  %654 = vst [vmem:[%s418 + $0x3a8] sm:$0xff] %v653
                  %v655 = vld [vmem:[%s417 + $0x6b0] sm:$0xff]
                  %656 = vst [vmem:[%s418 + $0x3b0] sm:$0xff] %v655
                  %v657 = vld [vmem:[%s417 + $0x6b8] sm:$0xff]
                  %658 = vst [vmem:[%s418 + $0x3b8] sm:$0xff] %v657
                  %v659 = vld [vmem:[%s417 + $0x6c0] sm:$0xff]
                  %660 = vst [vmem:[%s418 + $0x3c0] sm:$0xff] %v659
                  %v661 = vld [vmem:[%s417 + $0x6c8] sm:$0xff]
                  %662 = vst [vmem:[%s418 + $0x3c8] sm:$0xff] %v661
                  %v663 = vld [vmem:[%s417 + $0x6d0] sm:$0xff]
                  %664 = vst [vmem:[%s418 + $0x3d0] sm:$0xff] %v663
                  %v665 = vld [vmem:[%s417 + $0x6d8] sm:$0xff]
                  %666 = vst [vmem:[%s418 + $0x3d8] sm:$0xff] %v665
                  %v667 = vld [vmem:[%s417 + $0x6e0] sm:$0xff]
                  %668 = vst [vmem:[%s418 + $0x3e0] sm:$0xff] %v667
                  %v669 = vld [vmem:[%s417 + $0x6e8] sm:$0xff]
                  %670 = vst [vmem:[%s418 + $0x3e8] sm:$0xff] %v669
                  %v671 = vld [vmem:[%s417 + $0x6f0] sm:$0xff]
                  %672 = vst [vmem:[%s418 + $0x3f0] sm:$0xff] %v671
                  %v673 = vld [vmem:[%s417 + $0x6f8] sm:$0xff]
                  %674 = vst [vmem:[%s418 + $0x3f8] sm:$0xff] %v673
                $region56: #{lenet5_forward.3} parent=50 // loop_footer
                  %s416 = sadd.s32 1, %s412
                $region57: #{lenet5_forward.3} parent=50 // loop_footer_branch
                  %411 = sbr.rel target = $region53
                $region58: #{lenet5_forward.3} parent=50 // loop_exit
                  _
              $region51: #{lenet5_forward.3} parent=35 // pred_fallthru
                _
              // Predicated region
              $region59: #{lenet5_forward.3} parent=35 // pred_check
                _
              $region60: #{lenet5_forward.3} parent=35 // pred_check_branch
                %676 = sbr.rel target = $region62
              $region61: #{lenet5_forward.3} parent=35 // pred_region
                _
              $region62: #{lenet5_forward.3} parent=35 // pred_fallthru
                _
            $region36: #{lenet5_forward.3} parent=31 // pred_fallthru
              _
            // Predicated region
            $region37: #{lenet5_forward.3} parent=31 // pred_check
              _
            $region38: #{lenet5_forward.3} parent=31 // pred_check_branch
              %143 = sbr.rel target = $region40
            $region39: #{lenet5_forward.3} parent=31 // pred_region
              loop: start=0, step=1, limit=1
              $region41: #{lenet5_forward.3} parent=39 // loop_pre_header
                _
              $region42: #{lenet5_forward.3} parent=39 // loop_header
                %s146 = sphi 0, %s150
                %p147 = scmp.ge.s32.totalorder %s146, 1
                %s151 = sphi %s137, %s137
                %s152 = sphi %s134, %s134
              $region43: #{lenet5_forward.3} parent=39 // loop_header_branch
                %149 = sbr.rel (%p147) target = $region47
              $region44: #{lenet5_forward.3} parent=39 // loop_body
                %v153 = vld [vmem:[%s151] sm:$0xff]
                %154 = vst [vmem:[%s152] sm:$0xff] %v153
                %v155 = vld [vmem:[%s151 + $0x8] sm:$0xff]
                %156 = vst [vmem:[%s152 + $0x8] sm:$0xff] %v155
                %v157 = vld [vmem:[%s151 + $0x10] sm:$0xff]
                %158 = vst [vmem:[%s152 + $0x10] sm:$0xff] %v157
                %v159 = vld [vmem:[%s151 + $0x18] sm:$0xff]
                %160 = vst [vmem:[%s152 + $0x18] sm:$0xff] %v159
                %v161 = vld [vmem:[%s151 + $0x20] sm:$0xff]
                %162 = vst [vmem:[%s152 + $0x20] sm:$0xff] %v161
                %v163 = vld [vmem:[%s151 + $0x28] sm:$0xff]
                %164 = vst [vmem:[%s152 + $0x28] sm:$0xff] %v163
                %v165 = vld [vmem:[%s151 + $0x30] sm:$0xff]
                %166 = vst [vmem:[%s152 + $0x30] sm:$0xff] %v165
                %v167 = vld [vmem:[%s151 + $0x38] sm:$0xff]
                %168 = vst [vmem:[%s152 + $0x38] sm:$0xff] %v167
                %v169 = vld [vmem:[%s151 + $0x40] sm:$0xff]
                %170 = vst [vmem:[%s152 + $0x40] sm:$0xff] %v169
                %v171 = vld [vmem:[%s151 + $0x48] sm:$0xff]
                %172 = vst [vmem:[%s152 + $0x48] sm:$0xff] %v171
                %v173 = vld [vmem:[%s151 + $0x50] sm:$0xff]
                %174 = vst [vmem:[%s152 + $0x50] sm:$0xff] %v173
                %v175 = vld [vmem:[%s151 + $0x58] sm:$0xff]
                %176 = vst [vmem:[%s152 + $0x58] sm:$0xff] %v175
                %v177 = vld [vmem:[%s151 + $0x60] sm:$0xff]
                %178 = vst [vmem:[%s152 + $0x60] sm:$0xff] %v177
                %v179 = vld [vmem:[%s151 + $0x68] sm:$0xff]
                %180 = vst [vmem:[%s152 + $0x68] sm:$0xff] %v179
                %v181 = vld [vmem:[%s151 + $0x70] sm:$0xff]
                %182 = vst [vmem:[%s152 + $0x70] sm:$0xff] %v181
                %v183 = vld [vmem:[%s151 + $0x78] sm:$0xff]
                %184 = vst [vmem:[%s152 + $0x78] sm:$0xff] %v183
                %v185 = vld [vmem:[%s151 + $0x80] sm:$0xff]
                %186 = vst [vmem:[%s152 + $0x80] sm:$0xff] %v185
                %v187 = vld [vmem:[%s151 + $0x88] sm:$0xff]
                %188 = vst [vmem:[%s152 + $0x88] sm:$0xff] %v187
                %v189 = vld [vmem:[%s151 + $0x90] sm:$0xff]
                %190 = vst [vmem:[%s152 + $0x90] sm:$0xff] %v189
                %v191 = vld [vmem:[%s151 + $0x98] sm:$0xff]
                %192 = vst [vmem:[%s152 + $0x98] sm:$0xff] %v191
                %v193 = vld [vmem:[%s151 + $0xa0] sm:$0xff]
                %194 = vst [vmem:[%s152 + $0xa0] sm:$0xff] %v193
                %v195 = vld [vmem:[%s151 + $0xa8] sm:$0xff]
                %196 = vst [vmem:[%s152 + $0xa8] sm:$0xff] %v195
                %v197 = vld [vmem:[%s151 + $0xb0] sm:$0xff]
                %198 = vst [vmem:[%s152 + $0xb0] sm:$0xff] %v197
                %v199 = vld [vmem:[%s151 + $0xb8] sm:$0xff]
                %200 = vst [vmem:[%s152 + $0xb8] sm:$0xff] %v199
                %v201 = vld [vmem:[%s151 + $0xc0] sm:$0xff]
                %202 = vst [vmem:[%s152 + $0xc0] sm:$0xff] %v201
                %v203 = vld [vmem:[%s151 + $0xc8] sm:$0xff]
                %204 = vst [vmem:[%s152 + $0xc8] sm:$0xff] %v203
                %v205 = vld [vmem:[%s151 + $0xd0] sm:$0xff]
                %206 = vst [vmem:[%s152 + $0xd0] sm:$0xff] %v205
                %v207 = vld [vmem:[%s151 + $0xd8] sm:$0xff]
                %208 = vst [vmem:[%s152 + $0xd8] sm:$0xff] %v207
                %v209 = vld [vmem:[%s151 + $0xe0] sm:$0xff]
                %210 = vst [vmem:[%s152 + $0xe0] sm:$0xff] %v209
                %v211 = vld [vmem:[%s151 + $0xe8] sm:$0xff]
                %212 = vst [vmem:[%s152 + $0xe8] sm:$0xff] %v211
                %v213 = vld [vmem:[%s151 + $0xf0] sm:$0xff]
                %214 = vst [vmem:[%s152 + $0xf0] sm:$0xff] %v213
                %v215 = vld [vmem:[%s151 + $0xf8] sm:$0xff]
                %216 = vst [vmem:[%s152 + $0xf8] sm:$0xff] %v215
                %v217 = vld [vmem:[%s151 + $0x200] sm:$0xff]
                %218 = vst [vmem:[%s152 + $0x100] sm:$0xff] %v217
                %v219 = vld [vmem:[%s151 + $0x208] sm:$0xff]
                %220 = vst [vmem:[%s152 + $0x108] sm:$0xff] %v219
                %v221 = vld [vmem:[%s151 + $0x210] sm:$0xff]
                %222 = vst [vmem:[%s152 + $0x110] sm:$0xff] %v221
                %v223 = vld [vmem:[%s151 + $0x218] sm:$0xff]
                %224 = vst [vmem:[%s152 + $0x118] sm:$0xff] %v223
                %v225 = vld [vmem:[%s151 + $0x220] sm:$0xff]
                %226 = vst [vmem:[%s152 + $0x120] sm:$0xff] %v225
                %v227 = vld [vmem:[%s151 + $0x228] sm:$0xff]
                %228 = vst [vmem:[%s152 + $0x128] sm:$0xff] %v227
                %v229 = vld [vmem:[%s151 + $0x230] sm:$0xff]
                %230 = vst [vmem:[%s152 + $0x130] sm:$0xff] %v229
                %v231 = vld [vmem:[%s151 + $0x238] sm:$0xff]
                %232 = vst [vmem:[%s152 + $0x138] sm:$0xff] %v231
                %v233 = vld [vmem:[%s151 + $0x240] sm:$0xff]
                %234 = vst [vmem:[%s152 + $0x140] sm:$0xff] %v233
                %v235 = vld [vmem:[%s151 + $0x248] sm:$0xff]
                %236 = vst [vmem:[%s152 + $0x148] sm:$0xff] %v235
                %v237 = vld [vmem:[%s151 + $0x250] sm:$0xff]
                %238 = vst [vmem:[%s152 + $0x150] sm:$0xff] %v237
                %v239 = vld [vmem:[%s151 + $0x258] sm:$0xff]
                %240 = vst [vmem:[%s152 + $0x158] sm:$0xff] %v239
                %v241 = vld [vmem:[%s151 + $0x260] sm:$0xff]
                %242 = vst [vmem:[%s152 + $0x160] sm:$0xff] %v241
                %v243 = vld [vmem:[%s151 + $0x268] sm:$0xff]
                %244 = vst [vmem:[%s152 + $0x168] sm:$0xff] %v243
                %v245 = vld [vmem:[%s151 + $0x270] sm:$0xff]
                %246 = vst [vmem:[%s152 + $0x170] sm:$0xff] %v245
                %v247 = vld [vmem:[%s151 + $0x278] sm:$0xff]
                %248 = vst [vmem:[%s152 + $0x178] sm:$0xff] %v247
                %v249 = vld [vmem:[%s151 + $0x280] sm:$0xff]
                %250 = vst [vmem:[%s152 + $0x180] sm:$0xff] %v249
                %v251 = vld [vmem:[%s151 + $0x288] sm:$0xff]
                %252 = vst [vmem:[%s152 + $0x188] sm:$0xff] %v251
                %v253 = vld [vmem:[%s151 + $0x290] sm:$0xff]
                %254 = vst [vmem:[%s152 + $0x190] sm:$0xff] %v253
                %v255 = vld [vmem:[%s151 + $0x298] sm:$0xff]
                %256 = vst [vmem:[%s152 + $0x198] sm:$0xff] %v255
                %v257 = vld [vmem:[%s151 + $0x2a0] sm:$0xff]
                %258 = vst [vmem:[%s152 + $0x1a0] sm:$0xff] %v257
                %v259 = vld [vmem:[%s151 + $0x2a8] sm:$0xff]
                %260 = vst [vmem:[%s152 + $0x1a8] sm:$0xff] %v259
                %v261 = vld [vmem:[%s151 + $0x2b0] sm:$0xff]
                %262 = vst [vmem:[%s152 + $0x1b0] sm:$0xff] %v261
                %v263 = vld [vmem:[%s151 + $0x2b8] sm:$0xff]
                %264 = vst [vmem:[%s152 + $0x1b8] sm:$0xff] %v263
                %v265 = vld [vmem:[%s151 + $0x2c0] sm:$0xff]
                %266 = vst [vmem:[%s152 + $0x1c0] sm:$0xff] %v265
                %v267 = vld [vmem:[%s151 + $0x2c8] sm:$0xff]
                %268 = vst [vmem:[%s152 + $0x1c8] sm:$0xff] %v267
                %v269 = vld [vmem:[%s151 + $0x2d0] sm:$0xff]
                %270 = vst [vmem:[%s152 + $0x1d0] sm:$0xff] %v269
                %v271 = vld [vmem:[%s151 + $0x2d8] sm:$0xff]
                %272 = vst [vmem:[%s152 + $0x1d8] sm:$0xff] %v271
                %v273 = vld [vmem:[%s151 + $0x2e0] sm:$0xff]
                %274 = vst [vmem:[%s152 + $0x1e0] sm:$0xff] %v273
                %v275 = vld [vmem:[%s151 + $0x2e8] sm:$0xff]
                %276 = vst [vmem:[%s152 + $0x1e8] sm:$0xff] %v275
                %v277 = vld [vmem:[%s151 + $0x2f0] sm:$0xff]
                %278 = vst [vmem:[%s152 + $0x1f0] sm:$0xff] %v277
                %v279 = vld [vmem:[%s151 + $0x2f8] sm:$0xff]
                %280 = vst [vmem:[%s152 + $0x1f8] sm:$0xff] %v279
                %v281 = vld [vmem:[%s151 + $0x400] sm:$0xff]
                %282 = vst [vmem:[%s152 + $0x200] sm:$0xff] %v281
                %v283 = vld [vmem:[%s151 + $0x408] sm:$0xff]
                %284 = vst [vmem:[%s152 + $0x208] sm:$0xff] %v283
                %v285 = vld [vmem:[%s151 + $0x410] sm:$0xff]
                %286 = vst [vmem:[%s152 + $0x210] sm:$0xff] %v285
                %v287 = vld [vmem:[%s151 + $0x418] sm:$0xff]
                %288 = vst [vmem:[%s152 + $0x218] sm:$0xff] %v287
                %v289 = vld [vmem:[%s151 + $0x420] sm:$0xff]
                %290 = vst [vmem:[%s152 + $0x220] sm:$0xff] %v289
                %v291 = vld [vmem:[%s151 + $0x428] sm:$0xff]
                %292 = vst [vmem:[%s152 + $0x228] sm:$0xff] %v291
                %v293 = vld [vmem:[%s151 + $0x430] sm:$0xff]
                %294 = vst [vmem:[%s152 + $0x230] sm:$0xff] %v293
                %v295 = vld [vmem:[%s151 + $0x438] sm:$0xff]
                %296 = vst [vmem:[%s152 + $0x238] sm:$0xff] %v295
                %v297 = vld [vmem:[%s151 + $0x440] sm:$0xff]
                %298 = vst [vmem:[%s152 + $0x240] sm:$0xff] %v297
                %v299 = vld [vmem:[%s151 + $0x448] sm:$0xff]
                %300 = vst [vmem:[%s152 + $0x248] sm:$0xff] %v299
                %v301 = vld [vmem:[%s151 + $0x450] sm:$0xff]
                %302 = vst [vmem:[%s152 + $0x250] sm:$0xff] %v301
                %v303 = vld [vmem:[%s151 + $0x458] sm:$0xff]
                %304 = vst [vmem:[%s152 + $0x258] sm:$0xff] %v303
                %v305 = vld [vmem:[%s151 + $0x460] sm:$0xff]
                %306 = vst [vmem:[%s152 + $0x260] sm:$0xff] %v305
                %v307 = vld [vmem:[%s151 + $0x468] sm:$0xff]
                %308 = vst [vmem:[%s152 + $0x268] sm:$0xff] %v307
                %v309 = vld [vmem:[%s151 + $0x470] sm:$0xff]
                %310 = vst [vmem:[%s152 + $0x270] sm:$0xff] %v309
                %v311 = vld [vmem:[%s151 + $0x478] sm:$0xff]
                %312 = vst [vmem:[%s152 + $0x278] sm:$0xff] %v311
                %v313 = vld [vmem:[%s151 + $0x480] sm:$0xff]
                %314 = vst [vmem:[%s152 + $0x280] sm:$0xff] %v313
                %v315 = vld [vmem:[%s151 + $0x488] sm:$0xff]
                %316 = vst [vmem:[%s152 + $0x288] sm:$0xff] %v315
                %v317 = vld [vmem:[%s151 + $0x490] sm:$0xff]
                %318 = vst [vmem:[%s152 + $0x290] sm:$0xff] %v317
                %v319 = vld [vmem:[%s151 + $0x498] sm:$0xff]
                %320 = vst [vmem:[%s152 + $0x298] sm:$0xff] %v319
                %v321 = vld [vmem:[%s151 + $0x4a0] sm:$0xff]
                %322 = vst [vmem:[%s152 + $0x2a0] sm:$0xff] %v321
                %v323 = vld [vmem:[%s151 + $0x4a8] sm:$0xff]
                %324 = vst [vmem:[%s152 + $0x2a8] sm:$0xff] %v323
                %v325 = vld [vmem:[%s151 + $0x4b0] sm:$0xff]
                %326 = vst [vmem:[%s152 + $0x2b0] sm:$0xff] %v325
                %v327 = vld [vmem:[%s151 + $0x4b8] sm:$0xff]
                %328 = vst [vmem:[%s152 + $0x2b8] sm:$0xff] %v327
                %v329 = vld [vmem:[%s151 + $0x4c0] sm:$0xff]
                %330 = vst [vmem:[%s152 + $0x2c0] sm:$0xff] %v329
                %v331 = vld [vmem:[%s151 + $0x4c8] sm:$0xff]
                %332 = vst [vmem:[%s152 + $0x2c8] sm:$0xff] %v331
                %v333 = vld [vmem:[%s151 + $0x4d0] sm:$0xff]
                %334 = vst [vmem:[%s152 + $0x2d0] sm:$0xff] %v333
                %v335 = vld [vmem:[%s151 + $0x4d8] sm:$0xff]
                %336 = vst [vmem:[%s152 + $0x2d8] sm:$0xff] %v335
                %v337 = vld [vmem:[%s151 + $0x4e0] sm:$0xff]
                %338 = vst [vmem:[%s152 + $0x2e0] sm:$0xff] %v337
                %v339 = vld [vmem:[%s151 + $0x4e8] sm:$0xff]
                %340 = vst [vmem:[%s152 + $0x2e8] sm:$0xff] %v339
                %v341 = vld [vmem:[%s151 + $0x4f0] sm:$0xff]
                %342 = vst [vmem:[%s152 + $0x2f0] sm:$0xff] %v341
                %v343 = vld [vmem:[%s151 + $0x4f8] sm:$0xff]
                %344 = vst [vmem:[%s152 + $0x2f8] sm:$0xff] %v343
                %v345 = vld [vmem:[%s151 + $0x600] sm:$0xff]
                %346 = vst [vmem:[%s152 + $0x300] sm:$0xff] %v345
                %v347 = vld [vmem:[%s151 + $0x608] sm:$0xff]
                %348 = vst [vmem:[%s152 + $0x308] sm:$0xff] %v347
                %v349 = vld [vmem:[%s151 + $0x610] sm:$0xff]
                %350 = vst [vmem:[%s152 + $0x310] sm:$0xff] %v349
                %v351 = vld [vmem:[%s151 + $0x618] sm:$0xff]
                %352 = vst [vmem:[%s152 + $0x318] sm:$0xff] %v351
                %v353 = vld [vmem:[%s151 + $0x620] sm:$0xff]
                %354 = vst [vmem:[%s152 + $0x320] sm:$0xff] %v353
                %v355 = vld [vmem:[%s151 + $0x628] sm:$0xff]
                %356 = vst [vmem:[%s152 + $0x328] sm:$0xff] %v355
                %v357 = vld [vmem:[%s151 + $0x630] sm:$0xff]
                %358 = vst [vmem:[%s152 + $0x330] sm:$0xff] %v357
                %v359 = vld [vmem:[%s151 + $0x638] sm:$0xff]
                %360 = vst [vmem:[%s152 + $0x338] sm:$0xff] %v359
                %v361 = vld [vmem:[%s151 + $0x640] sm:$0xff]
                %362 = vst [vmem:[%s152 + $0x340] sm:$0xff] %v361
                %v363 = vld [vmem:[%s151 + $0x648] sm:$0xff]
                %364 = vst [vmem:[%s152 + $0x348] sm:$0xff] %v363
                %v365 = vld [vmem:[%s151 + $0x650] sm:$0xff]
                %366 = vst [vmem:[%s152 + $0x350] sm:$0xff] %v365
                %v367 = vld [vmem:[%s151 + $0x658] sm:$0xff]
                %368 = vst [vmem:[%s152 + $0x358] sm:$0xff] %v367
                %v369 = vld [vmem:[%s151 + $0x660] sm:$0xff]
                %370 = vst [vmem:[%s152 + $0x360] sm:$0xff] %v369
                %v371 = vld [vmem:[%s151 + $0x668] sm:$0xff]
                %372 = vst [vmem:[%s152 + $0x368] sm:$0xff] %v371
                %v373 = vld [vmem:[%s151 + $0x670] sm:$0xff]
                %374 = vst [vmem:[%s152 + $0x370] sm:$0xff] %v373
                %v375 = vld [vmem:[%s151 + $0x678] sm:$0xff]
                %376 = vst [vmem:[%s152 + $0x378] sm:$0xff] %v375
                %v377 = vld [vmem:[%s151 + $0x680] sm:$0xff]
                %378 = vst [vmem:[%s152 + $0x380] sm:$0xff] %v377
                %v379 = vld [vmem:[%s151 + $0x688] sm:$0xff]
                %380 = vst [vmem:[%s152 + $0x388] sm:$0xff] %v379
                %v381 = vld [vmem:[%s151 + $0x690] sm:$0xff]
                %382 = vst [vmem:[%s152 + $0x390] sm:$0xff] %v381
                %v383 = vld [vmem:[%s151 + $0x698] sm:$0xff]
                %384 = vst [vmem:[%s152 + $0x398] sm:$0xff] %v383
                %v385 = vld [vmem:[%s151 + $0x6a0] sm:$0xff]
                %386 = vst [vmem:[%s152 + $0x3a0] sm:$0xff] %v385
                %v387 = vld [vmem:[%s151 + $0x6a8] sm:$0xff]
                %388 = vst [vmem:[%s152 + $0x3a8] sm:$0xff] %v387
                %v389 = vld [vmem:[%s151 + $0x6b0] sm:$0xff]
                %390 = vst [vmem:[%s152 + $0x3b0] sm:$0xff] %v389
                %v391 = vld [vmem:[%s151 + $0x6b8] sm:$0xff]
                %392 = vst [vmem:[%s152 + $0x3b8] sm:$0xff] %v391
                %v393 = vld [vmem:[%s151 + $0x6c0] sm:$0xff]
                %394 = vst [vmem:[%s152 + $0x3c0] sm:$0xff] %v393
                %v395 = vld [vmem:[%s151 + $0x6c8] sm:$0xff]
                %396 = vst [vmem:[%s152 + $0x3c8] sm:$0xff] %v395
                %v397 = vld [vmem:[%s151 + $0x6d0] sm:$0xff]
                %398 = vst [vmem:[%s152 + $0x3d0] sm:$0xff] %v397
                %v399 = vld [vmem:[%s151 + $0x6d8] sm:$0xff]
                %400 = vst [vmem:[%s152 + $0x3d8] sm:$0xff] %v399
                %v401 = vld [vmem:[%s151 + $0x6e0] sm:$0xff]
                %402 = vst [vmem:[%s152 + $0x3e0] sm:$0xff] %v401
                %v403 = vld [vmem:[%s151 + $0x6e8] sm:$0xff]
                %404 = vst [vmem:[%s152 + $0x3e8] sm:$0xff] %v403
                %v405 = vld [vmem:[%s151 + $0x6f0] sm:$0xff]
                %406 = vst [vmem:[%s152 + $0x3f0] sm:$0xff] %v405
                %v407 = vld [vmem:[%s151 + $0x6f8] sm:$0xff]
                %408 = vst [vmem:[%s152 + $0x3f8] sm:$0xff] %v407
              $region45: #{lenet5_forward.3} parent=39 // loop_footer
                %s150 = sadd.s32 1, %s146
              $region46: #{lenet5_forward.3} parent=39 // loop_footer_branch
                %145 = sbr.rel target = $region42
              $region47: #{lenet5_forward.3} parent=39 // loop_exit
                _
            $region40: #{lenet5_forward.3} parent=31 // pred_fallthru
              _
          $region32: #{lenet5_forward.3} parent=27 // pred_fallthru
            _
          %677 = vnop
        $region28: #{lenet5_forward.3} parent=23 // pred_fallthru
          _
      $region24: #{lenet5_forward.3} parent=5 // pred_fallthru
        _
      %p678 = scmp.le.s32.totalorder 1, %s9
      %p679 = scmp.lt.s32.totalorder %s9, 3
      %p680 = pnand %p678, %p679
      %p681 = pneg %p680
      // Predicated region
      $region63: #{lenet5_forward.3} parent=5 // pred_check
        _
      $region64: #{lenet5_forward.3} parent=5 // pred_check_branch
        %683 = sbr.rel (%p680) target = $region66
      $region65: #{lenet5_forward.3} parent=5 // pred_region
        %s684 = ssub.s32 %s9, 1
        %s685 = sand.u32 %s22, 1
        %s686 = sand.u32 %s22, 1
        %s687 = smul.addr %s686, 1024
        %s688 = scalar_lea.vmem [#allocation2], %s687
        // Predicated region
        $region67: #{lenet5_forward.3} parent=65 // pred_check
          %p689 = pneg %p35
        $region68: #{lenet5_forward.3} parent=65 // pred_check_branch
          %691 = sbr.rel (%p689) target = $region70
        $region69: #{lenet5_forward.3} parent=65 // pred_region
          _
        $region70: #{lenet5_forward.3} parent=65 // pred_fallthru
          _
        %s692 = sand.u32 %s22, 1
        %s693 = sand.u32 %s22, 1
        %s694 = smul.addr %s693, 1024
        %s695 = scalar_lea.vmem [#allocation2], %s694
        %p696 = pneg %p35
        %p697 = pneg %p32
        %p698 = pneg %p56
        %p699 = pneg %p53
        %p700 = pneg %p77
        %p701 = pneg %p74
        %p702 = pneg %p103
        %p703 = pneg %p100
        %s704 = smul.u32 32, %s14
        %p705 = scmp.lt.s32.totalorder %s704, 63
        %s706 = scalar_select %p705, %s704, 63
        %s707 = smul.addr %s706, 8
        %s708 = scalar_lea.vmem %s3, %s707
        %s709 = smul.u32 32, %s14
        %s710 = smul.u32 32, %s14
        %p711 = scmp.lt.s32.totalorder %s710, 63
        %s712 = scalar_select %p711, %s710, 63
        %s713 = smul.addr %s712, 8
        %s714 = scalar_lea.vmem %s3, %s713
        %s715 = smul.u32 32, %s14
        %v716 = vld [vmem:[%s1] sm:$0xff]
        %v717 = vld [vmem:[%s1 + $0x8] sm:$0xff]
        %v718 = vld [vmem:[%s1 + $0x10] sm:$0xff]
        %v719 = vld [vmem:[%s1 + $0x18] sm:$0xff]
        %v720 = vld [vmem:[%s2] sm:$0x1]
        %v721 = vld [vmem:[%s688] sm:$0xff]
        %v722 = vld [vmem:[%s688 + $0x8] sm:$0xff]
        %v723 = vld [vmem:[%s688 + $0x10] sm:$0xff]
        %v724 = vld [vmem:[%s688 + $0x18] sm:$0xff]
        %v725 = vld [vmem:[%s688 + $0x20] sm:$0xff]
        %v726 = vld [vmem:[%s688 + $0x28] sm:$0xff]
        %v727 = vld [vmem:[%s688 + $0x30] sm:$0xff]
        %v728 = vld [vmem:[%s688 + $0x38] sm:$0xff]
        %v729 = vld [vmem:[%s688 + $0x40] sm:$0xff]
        %v730 = vld [vmem:[%s688 + $0x48] sm:$0xff]
        %v731 = vld [vmem:[%s688 + $0x50] sm:$0xff]
        %v732 = vld [vmem:[%s688 + $0x58] sm:$0xff]
        %v733 = vld [vmem:[%s688 + $0x60] sm:$0xff]
        %v734 = vld [vmem:[%s688 + $0x68] sm:$0xff]
        %v735 = vld [vmem:[%s688 + $0x70] sm:$0xff]
        %v736 = vld [vmem:[%s688 + $0x78] sm:$0xff]
        %v737 = vld [vmem:[%s688 + $0x80] sm:$0xff]
        %v738 = vld [vmem:[%s688 + $0x88] sm:$0xff]
        %v739 = vld [vmem:[%s688 + $0x90] sm:$0xff]
        %v740 = vld [vmem:[%s688 + $0x98] sm:$0xff]
        %v741 = vld [vmem:[%s688 + $0xa0] sm:$0xff]
        %v742 = vld [vmem:[%s688 + $0xa8] sm:$0xff]
        %v743 = vld [vmem:[%s688 + $0xb0] sm:$0xff]
        %v744 = vld [vmem:[%s688 + $0xb8] sm:$0xff]
        %v745 = vld [vmem:[%s688 + $0xc0] sm:$0xff]
        %v746 = vld [vmem:[%s688 + $0xc8] sm:$0xff]
        %v747 = vld [vmem:[%s688 + $0xd0] sm:$0xff]
        %v748 = vld [vmem:[%s688 + $0xd8] sm:$0xff]
        %v749 = vld [vmem:[%s688 + $0xe0] sm:$0xff]
        %v750 = vld [vmem:[%s688 + $0xe8] sm:$0xff]
        %v751 = vld [vmem:[%s688 + $0xf0] sm:$0xff]
        %v752 = vld [vmem:[%s688 + $0xf8] sm:$0xff]
        %v754 = vlaneseq
        %v755 = vshrl.u32 %v754, 7
        %v756 = vsub.s32 0, %v755
        %v757 = vrot.slane %v720, %v756
        %vm759 = vcmask 261120
        %v761 = vsel %vm759, %v721, 0
        %v764 = vsel %vm759, %v722, 0
        %v767 = vsel %vm759, %v723, 0
        %v770 = vsel %vm759, %v724, 0
        %v773 = vsel %vm759, %v725, 0
        %v776 = vsel %vm759, %v726, 0
        %v779 = vsel %vm759, %v727, 0
        %v782 = vsel %vm759, %v728, 0
        %v785 = vsel %vm759, %v729, 0
        %v788 = vsel %vm759, %v730, 0
        %v791 = vsel %vm759, %v731, 0
        %v794 = vsel %vm759, %v732, 0
        %v797 = vsel %vm759, %v733, 0
        %v800 = vsel %vm759, %v734, 0
        %v803 = vsel %vm759, %v735, 0
        %v806 = vsel %vm759, %v736, 0
        %v809 = vsel %vm759, %v737, 0
        %v812 = vsel %vm759, %v738, 0
        %v815 = vsel %vm759, %v739, 0
        %v818 = vsel %vm759, %v740, 0
        %v821 = vsel %vm759, %v741, 0
        %v824 = vsel %vm759, %v742, 0
        %v827 = vsel %vm759, %v743, 0
        %v830 = vsel %vm759, %v744, 0
        %v833 = vsel %vm759, %v745, 0
        %v836 = vsel %vm759, %v746, 0
        %v839 = vsel %vm759, %v747, 0
        %v842 = vsel %vm759, %v748, 0
        %v845 = vsel %vm759, %v749, 0
        %v848 = vsel %vm759, %v750, 0
        %v851 = vsel %vm759, %v751, 0
        %v854 = vsel %vm759, %v752, 0
        %856 = vmatprep.subr.mxu0 0.0
        %857 = vmatpush1.msra.mxu0 %v716
        %858 = vmatprep.subr.mxu0 0.0
        %859 = vmatpush1.msra.mxu0 %v717
        %860 = vmatprep.subr.mxu0 0.0
        %861 = vmatpush1.msra.mxu0 %v718
        %862 = vmatprep.subr.mxu0 0.0
        %863 = vmatpush1.msra.mxu0 %v719
        %864 = vmatprep.subr.mxu0 0.0
        %865 = vmatpush1.msra.mxu0 0.0
        %866 = vmatprep.subr.mxu0 0.0
        %867 = vmatpush1.msra.mxu0 0.0
        %868 = vmatprep.subr.mxu0 0.0
        %869 = vmatpush1.msra.mxu0 0.0
        %870 = vmatprep.subr.mxu0 0.0
        %871 = vmatpush1.msra.mxu0 0.0
        %872 = vmatprep.subr.mxu0 0.0
        %873 = vmatpush1.msra.mxu0 0.0
        %874 = vmatprep.subr.mxu0 0.0
        %875 = vmatpush1.msra.mxu0 0.0
        %876 = vmatprep.subr.mxu0 0.0
        %877 = vmatpush1.msra.mxu0 0.0
        %878 = vmatprep.subr.mxu0 0.0
        %879 = vmatpush1.msra.mxu0 0.0
        %880 = vmatprep.subr.mxu0 0.0
        %881 = vmatpush1.msra.mxu0 0.0
        %882 = vmatprep.subr.mxu0 0.0
        %883 = vmatpush1.msra.mxu0 0.0
        %884 = vmatprep.subr.mxu0 0.0
        %885 = vmatpush1.msra.mxu0 0.0
        %886 = vmatprep.subr.mxu0 0.0
        %887 = vmatpush1.msra.mxu0 0.0
        %888 = vmatprep.subr.mxu0 0.0
        %889 = vmatpush1.msra.mxu0 0.0
        %890 = vmatprep.subr.mxu0 0.0
        %891 = vmatpush1.msra.mxu0 0.0
        %892 = vmatprep.subr.mxu0 0.0
        %893 = vmatpush1.msra.mxu0 0.0
        %894 = vmatprep.subr.mxu0 0.0
        %895 = vmatpush1.msra.mxu0 0.0
        %896 = vmatprep.subr.mxu0 0.0
        %897 = vmatpush1.msra.mxu0 0.0
        %898 = vmatprep.subr.mxu0 0.0
        %899 = vmatpush1.msra.mxu0 0.0
        %900 = vmatprep.subr.mxu0 0.0
        %901 = vmatpush1.msra.mxu0 0.0
        %902 = vmatprep.subr.mxu0 0.0
        %903 = vmatpush1.msra.mxu0 0.0
        %904 = vmatprep.subr.mxu0 0.0
        %905 = vmatpush1.msra.mxu0 0.0
        %906 = vmatprep.subr.mxu0 0.0
        %907 = vmatpush1.msra.mxu0 0.0
        %908 = vmatprep.subr.mxu0 0.0
        %909 = vmatpush1.msra.mxu0 0.0
        %910 = vmatprep.subr.mxu0 0.0
        %911 = vmatpush1.msra.mxu0 0.0
        %912 = vmatprep.subr.mxu0 0.0
        %913 = vmatpush1.msra.mxu0 0.0
        %914 = vmatprep.subr.mxu0 0.0
        %915 = vmatpush1.msra.mxu0 0.0
        %916 = vmatprep.subr.mxu0 0.0
        %917 = vmatpush1.msra.mxu0 0.0
        %918 = vmatprep.subr.mxu0 0.0
        %919 = vmatpush1.msra.mxu0 0.0
        %920 = vmatprep.mubr.f32.mxu0 0.0
        %921 = vmatmul.mubr.f32.gmra.mrb[0].mxu0 %v761
        %v922 = vpop.f32.mrb[0].mxu0
        %v923 = vadd.f32 %v757, %v922
        %v924 = vpop.f32.mrb[0].mxu0
        %925 = vmatprep.mubr.f32.mxu0 0.0
        %926 = vmatmul.mubr.f32.gmra.mrb[0].mxu0 %v764
        %v927 = vpop.f32.mrb[0].mxu0
        %v928 = vadd.f32 %v757, %v927
        %v929 = vpop.f32.mrb[0].mxu0
        %930 = vmatprep.mubr.f32.mxu0 0.0
        %931 = vmatmul.mubr.f32.gmra.mrb[0].mxu0 %v767
        %v932 = vpop.f32.mrb[0].mxu0
        %v933 = vadd.f32 %v757, %v932
        %v934 = vpop.f32.mrb[0].mxu0
        %935 = vmatprep.mubr.f32.mxu0 0.0
        %936 = vmatmul.mubr.f32.gmra.mrb[0].mxu0 %v770
        %v937 = vpop.f32.mrb[0].mxu0
        %v938 = vadd.f32 %v757, %v937
        %v939 = vpop.f32.mrb[0].mxu0
        %940 = vmatprep.mubr.f32.mxu0 0.0
        %941 = vmatmul.mubr.f32.gmra.mrb[0].mxu0 %v773
        %v942 = vpop.f32.mrb[0].mxu0
        %v943 = vadd.f32 %v757, %v942
        %v944 = vpop.f32.mrb[0].mxu0
        %945 = vmatprep.mubr.f32.mxu0 0.0
        %946 = vmatmul.mubr.f32.gmra.mrb[0].mxu0 %v776
        %v947 = vpop.f32.mrb[0].mxu0
        %v948 = vadd.f32 %v757, %v947
        %v949 = vpop.f32.mrb[0].mxu0
        %950 = vmatprep.mubr.f32.mxu0 0.0
        %951 = vmatmul.mubr.f32.gmra.mrb[0].mxu0 %v779
        %v952 = vpop.f32.mrb[0].mxu0
        %v953 = vadd.f32 %v757, %v952
        %v954 = vpop.f32.mrb[0].mxu0
        %955 = vmatprep.mubr.f32.mxu0 0.0
        %956 = vmatmul.mubr.f32.gmra.mrb[0].mxu0 %v782
        %v957 = vpop.f32.mrb[0].mxu0
        %v958 = vadd.f32 %v757, %v957
        %v959 = vpop.f32.mrb[0].mxu0
        %960 = vmatprep.mubr.f32.mxu0 0.0
        %961 = vmatmul.mubr.f32.gmra.mrb[0].mxu0 %v785
        %v962 = vpop.f32.mrb[0].mxu0
        %v963 = vadd.f32 %v757, %v962
        %v964 = vpop.f32.mrb[0].mxu0
        %965 = vmatprep.mubr.f32.mxu0 0.0
        %966 = vmatmul.mubr.f32.gmra.mrb[0].mxu0 %v788
        %v967 = vpop.f32.mrb[0].mxu0
        %v968 = vadd.f32 %v757, %v967
        %v969 = vpop.f32.mrb[0].mxu0
        %970 = vmatprep.mubr.f32.mxu0 0.0
        %971 = vmatmul.mubr.f32.gmra.mrb[0].mxu0 %v791
        %v972 = vpop.f32.mrb[0].mxu0
        %v973 = vadd.f32 %v757, %v972
        %v974 = vpop.f32.mrb[0].mxu0
        %975 = vmatprep.mubr.f32.mxu0 0.0
        %976 = vmatmul.mubr.f32.gmra.mrb[0].mxu0 %v794
        %v977 = vpop.f32.mrb[0].mxu0
        %v978 = vadd.f32 %v757, %v977
        %v979 = vpop.f32.mrb[0].mxu0
        %980 = vmatprep.mubr.f32.mxu0 0.0
        %981 = vmatmul.mubr.f32.gmra.mrb[0].mxu0 %v797
        %v982 = vpop.f32.mrb[0].mxu0
        %v983 = vadd.f32 %v757, %v982
        %v984 = vpop.f32.mrb[0].mxu0
        %985 = vmatprep.mubr.f32.mxu0 0.0
        %986 = vmatmul.mubr.f32.gmra.mrb[0].mxu0 %v800
        %v987 = vpop.f32.mrb[0].mxu0
        %v988 = vadd.f32 %v757, %v987
        %v989 = vpop.f32.mrb[0].mxu0
        %990 = vmatprep.mubr.f32.mxu0 0.0
        %991 = vmatmul.mubr.f32.gmra.mrb[0].mxu0 %v803
        %v992 = vpop.f32.mrb[0].mxu0
        %v993 = vadd.f32 %v757, %v992
        %v994 = vpop.f32.mrb[0].mxu0
        %995 = vmatprep.mubr.f32.mxu0 0.0
        %996 = vmatmul.mubr.f32.gmra.mrb[0].mxu0 %v806
        %v997 = vpop.f32.mrb[0].mxu0
        %v998 = vadd.f32 %v757, %v997
        %v999 = vpop.f32.mrb[0].mxu0
        %1000 = vmatprep.mubr.f32.mxu0 0.0
        %1001 = vmatmul.mubr.f32.gmra.mrb[0].mxu0 %v809
        %v1002 = vpop.f32.mrb[0].mxu0
        %v1003 = vadd.f32 %v757, %v1002
        %v1004 = vpop.f32.mrb[0].mxu0
        %1005 = vmatprep.mubr.f32.mxu0 0.0
        %1006 = vmatmul.mubr.f32.gmra.mrb[0].mxu0 %v812
        %v1007 = vpop.f32.mrb[0].mxu0
        %v1008 = vadd.f32 %v757, %v1007
        %v1009 = vpop.f32.mrb[0].mxu0
        %1010 = vmatprep.mubr.f32.mxu0 0.0
        %1011 = vmatmul.mubr.f32.gmra.mrb[0].mxu0 %v815
        %v1012 = vpop.f32.mrb[0].mxu0
        %v1013 = vadd.f32 %v757, %v1012
        %v1014 = vpop.f32.mrb[0].mxu0
        %1015 = vmatprep.mubr.f32.mxu0 0.0
        %1016 = vmatmul.mubr.f32.gmra.mrb[0].mxu0 %v818
        %v1017 = vpop.f32.mrb[0].mxu0
        %v1018 = vadd.f32 %v757, %v1017
        %v1019 = vpop.f32.mrb[0].mxu0
        %1020 = vmatprep.mubr.f32.mxu0 0.0
        %1021 = vmatmul.mubr.f32.gmra.mrb[0].mxu0 %v821
        %v1022 = vpop.f32.mrb[0].mxu0
        %v1023 = vadd.f32 %v757, %v1022
        %v1024 = vpop.f32.mrb[0].mxu0
        %1025 = vmatprep.mubr.f32.mxu0 0.0
        %1026 = vmatmul.mubr.f32.gmra.mrb[0].mxu0 %v824
        %v1027 = vpop.f32.mrb[0].mxu0
        %v1028 = vadd.f32 %v757, %v1027
        %v1029 = vpop.f32.mrb[0].mxu0
        %1030 = vmatprep.mubr.f32.mxu0 0.0
        %1031 = vmatmul.mubr.f32.gmra.mrb[0].mxu0 %v827
        %v1032 = vpop.f32.mrb[0].mxu0
        %v1033 = vadd.f32 %v757, %v1032
        %v1034 = vpop.f32.mrb[0].mxu0
        %1035 = vmatprep.mubr.f32.mxu0 0.0
        %1036 = vmatmul.mubr.f32.gmra.mrb[0].mxu0 %v830
        %v1037 = vpop.f32.mrb[0].mxu0
        %v1038 = vadd.f32 %v757, %v1037
        %v1039 = vpop.f32.mrb[0].mxu0
        %1040 = vmatprep.mubr.f32.mxu0 0.0
        %1041 = vmatmul.mubr.f32.gmra.mrb[0].mxu0 %v833
        %v1042 = vpop.f32.mrb[0].mxu0
        %v1043 = vadd.f32 %v757, %v1042
        %v1044 = vpop.f32.mrb[0].mxu0
        %1045 = vmatprep.mubr.f32.mxu0 0.0
        %1046 = vmatmul.mubr.f32.gmra.mrb[0].mxu0 %v836
        %v1047 = vpop.f32.mrb[0].mxu0
        %v1048 = vadd.f32 %v757, %v1047
        %v1049 = vpop.f32.mrb[0].mxu0
        %1050 = vmatprep.mubr.f32.mxu0 0.0
        %1051 = vmatmul.mubr.f32.gmra.mrb[0].mxu0 %v839
        %v1052 = vpop.f32.mrb[0].mxu0
        %v1053 = vadd.f32 %v757, %v1052
        %v1054 = vpop.f32.mrb[0].mxu0
        %1055 = vmatprep.mubr.f32.mxu0 0.0
        %1056 = vmatmul.mubr.f32.gmra.mrb[0].mxu0 %v842
        %v1057 = vpop.f32.mrb[0].mxu0
        %v1058 = vadd.f32 %v757, %v1057
        %v1059 = vpop.f32.mrb[0].mxu0
        %1060 = vmatprep.mubr.f32.mxu0 0.0
        %1061 = vmatmul.mubr.f32.gmra.mrb[0].mxu0 %v845
        %v1062 = vpop.f32.mrb[0].mxu0
        %v1063 = vadd.f32 %v757, %v1062
        %v1064 = vpop.f32.mrb[0].mxu0
        %1065 = vmatprep.mubr.f32.mxu0 0.0
        %1066 = vmatmul.mubr.f32.gmra.mrb[0].mxu0 %v848
        %v1067 = vpop.f32.mrb[0].mxu0
        %v1068 = vadd.f32 %v757, %v1067
        %v1069 = vpop.f32.mrb[0].mxu0
        %1070 = vmatprep.mubr.f32.mxu0 0.0
        %1071 = vmatmul.mubr.f32.gmra.mrb[0].mxu0 %v851
        %v1072 = vpop.f32.mrb[0].mxu0
        %v1073 = vadd.f32 %v757, %v1072
        %v1074 = vpop.f32.mrb[0].mxu0
        %1075 = vmatprep.mubr.f32.mxu0 0.0
        %1076 = vmatmul.mubr.f32.gmra.mrb[0].mxu0 %v854
        %v1077 = vpop.f32.mrb[0].mxu0
        %v1078 = vadd.f32 %v757, %v1077
        %v1079 = vpop.f32.mrb[0].mxu0
        %1080 = vdwg.mxu0
        %v1081 = vmax.f32 %v923, 0.0
        %v1082 = vmax.f32 %v928, 0.0
        %v1083 = vmax.f32 %v933, 0.0
        %v1084 = vmax.f32 %v938, 0.0
        %v1085 = vmax.f32 %v943, 0.0
        %v1086 = vmax.f32 %v948, 0.0
        %v1087 = vmax.f32 %v953, 0.0
        %v1088 = vmax.f32 %v958, 0.0
        %v1089 = vmax.f32 %v963, 0.0
        %v1090 = vmax.f32 %v968, 0.0
        %v1091 = vmax.f32 %v973, 0.0
        %v1092 = vmax.f32 %v978, 0.0
        %v1093 = vmax.f32 %v983, 0.0
        %v1094 = vmax.f32 %v988, 0.0
        %v1095 = vmax.f32 %v993, 0.0
        %v1096 = vmax.f32 %v998, 0.0
        %v1097 = vmax.f32 %v1003, 0.0
        %v1098 = vmax.f32 %v1008, 0.0
        %v1099 = vmax.f32 %v1013, 0.0
        %v1100 = vmax.f32 %v1018, 0.0
        %v1101 = vmax.f32 %v1023, 0.0
        %v1102 = vmax.f32 %v1028, 0.0
        %v1103 = vmax.f32 %v1033, 0.0
        %v1104 = vmax.f32 %v1038, 0.0
        %v1105 = vmax.f32 %v1043, 0.0
        %v1106 = vmax.f32 %v1048, 0.0
        %v1107 = vmax.f32 %v1053, 0.0
        %v1108 = vmax.f32 %v1058, 0.0
        %v1109 = vmax.f32 %v1063, 0.0
        %v1110 = vmax.f32 %v1068, 0.0
        %v1111 = vmax.f32 %v1073, 0.0
        %v1112 = vmax.f32 %v1078, 0.0
        %s1113 = scalar_lea.vmem %s688, 256 [#allocation2]
        %v1114 = vld [vmem:[%s1113] sm:$0xff]
        %v1115 = vld [vmem:[%s1113 + $0x8] sm:$0xff]
        %v1116 = vld [vmem:[%s1113 + $0x10] sm:$0xff]
        %v1117 = vld [vmem:[%s1113 + $0x18] sm:$0xff]
        %v1118 = vld [vmem:[%s1113 + $0x20] sm:$0xff]
        %v1119 = vld [vmem:[%s1113 + $0x28] sm:$0xff]
        %v1120 = vld [vmem:[%s1113 + $0x30] sm:$0xff]
        %v1121 = vld [vmem:[%s1113 + $0x38] sm:$0xff]
        %v1122 = vld [vmem:[%s1113 + $0x40] sm:$0xff]
        %v1123 = vld [vmem:[%s1113 + $0x48] sm:$0xff]
        %v1124 = vld [vmem:[%s1113 + $0x50] sm:$0xff]
        %v1125 = vld [vmem:[%s1113 + $0x58] sm:$0xff]
        %v1126 = vld [vmem:[%s1113 + $0x60] sm:$0xff]
        %v1127 = vld [vmem:[%s1113 + $0x68] sm:$0xff]
        %v1128 = vld [vmem:[%s1113 + $0x70] sm:$0xff]
        %v1129 = vld [vmem:[%s1113 + $0x78] sm:$0xff]
        %v1130 = vld [vmem:[%s1113 + $0x80] sm:$0xff]
        %v1131 = vld [vmem:[%s1113 + $0x88] sm:$0xff]
        %v1132 = vld [vmem:[%s1113 + $0x90] sm:$0xff]
        %v1133 = vld [vmem:[%s1113 + $0x98] sm:$0xff]
        %v1134 = vld [vmem:[%s1113 + $0xa0] sm:$0xff]
        %v1135 = vld [vmem:[%s1113 + $0xa8] sm:$0xff]
        %v1136 = vld [vmem:[%s1113 + $0xb0] sm:$0xff]
        %v1137 = vld [vmem:[%s1113 + $0xb8] sm:$0xff]
        %v1138 = vld [vmem:[%s1113 + $0xc0] sm:$0xff]
        %v1139 = vld [vmem:[%s1113 + $0xc8] sm:$0xff]
        %v1140 = vld [vmem:[%s1113 + $0xd0] sm:$0xff]
        %v1141 = vld [vmem:[%s1113 + $0xd8] sm:$0xff]
        %v1142 = vld [vmem:[%s1113 + $0xe0] sm:$0xff]
        %v1143 = vld [vmem:[%s1113 + $0xe8] sm:$0xff]
        %v1144 = vld [vmem:[%s1113 + $0xf0] sm:$0xff]
        %v1145 = vld [vmem:[%s1113 + $0xf8] sm:$0xff]
        %v1147 = vsel %vm759, %v1114, 0
        %v1150 = vsel %vm759, %v1115, 0
        %v1153 = vsel %vm759, %v1116, 0
        %v1156 = vsel %vm759, %v1117, 0
        %v1159 = vsel %vm759, %v1118, 0
        %v1162 = vsel %vm759, %v1119, 0
        %v1165 = vsel %vm759, %v1120, 0
        %v1168 = vsel %vm759, %v1121, 0
        %v1171 = vsel %vm759, %v1122, 0
        %v1174 = vsel %vm759, %v1123, 0
        %v1177 = vsel %vm759, %v1124, 0
        %v1180 = vsel %vm759, %v1125, 0
        %v1183 = vsel %vm759, %v1126, 0
        %v1186 = vsel %vm759, %v1127, 0
        %v1189 = vsel %vm759, %v1128, 0
        %v1192 = vsel %vm759, %v1129, 0
        %v1195 = vsel %vm759, %v1130, 0
        %v1198 = vsel %vm759, %v1131, 0
        %v1201 = vsel %vm759, %v1132, 0
        %v1204 = vsel %vm759, %v1133, 0
        %v1207 = vsel %vm759, %v1134, 0
        %v1210 = vsel %vm759, %v1135, 0
        %v1213 = vsel %vm759, %v1136, 0
        %v1216 = vsel %vm759, %v1137, 0
        %v1219 = vsel %vm759, %v1138, 0
        %v1222 = vsel %vm759, %v1139, 0
        %v1225 = vsel %vm759, %v1140, 0
        %v1228 = vsel %vm759, %v1141, 0
        %v1231 = vsel %vm759, %v1142, 0
        %v1234 = vsel %vm759, %v1143, 0
        %v1237 = vsel %vm759, %v1144, 0
        %v1240 = vsel %vm759, %v1145, 0
        %1242 = vmatprep.subr.mxu0 0.0
        %1243 = vmatpush1.msra.mxu0 %v716
        %1244 = vmatprep.subr.mxu0 0.0
        %1245 = vmatpush1.msra.mxu0 %v717
        %1246 = vmatprep.subr.mxu0 0.0
        %1247 = vmatpush1.msra.mxu0 %v718
        %1248 = vmatprep.subr.mxu0 0.0
        %1249 = vmatpush1.msra.mxu0 %v719
        %1250 = vmatprep.subr.mxu0 0.0
        %1251 = vmatpush1.msra.mxu0 0.0
        %1252 = vmatprep.subr.mxu0 0.0
        %1253 = vmatpush1.msra.mxu0 0.0
        %1254 = vmatprep.subr.mxu0 0.0
        %1255 = vmatpush1.msra.mxu0 0.0
        %1256 = vmatprep.subr.mxu0 0.0
        %1257 = vmatpush1.msra.mxu0 0.0
        %1258 = vmatprep.subr.mxu0 0.0
        %1259 = vmatpush1.msra.mxu0 0.0
        %1260 = vmatprep.subr.mxu0 0.0
        %1261 = vmatpush1.msra.mxu0 0.0
        %1262 = vmatprep.subr.mxu0 0.0
        %1263 = vmatpush1.msra.mxu0 0.0
        %1264 = vmatprep.subr.mxu0 0.0
        %1265 = vmatpush1.msra.mxu0 0.0
        %1266 = vmatprep.subr.mxu0 0.0
        %1267 = vmatpush1.msra.mxu0 0.0
        %1268 = vmatprep.subr.mxu0 0.0
        %1269 = vmatpush1.msra.mxu0 0.0
        %1270 = vmatprep.subr.mxu0 0.0
        %1271 = vmatpush1.msra.mxu0 0.0
        %1272 = vmatprep.subr.mxu0 0.0
        %1273 = vmatpush1.msra.mxu0 0.0
        %1274 = vmatprep.subr.mxu0 0.0
        %1275 = vmatpush1.msra.mxu0 0.0
        %1276 = vmatprep.subr.mxu0 0.0
        %1277 = vmatpush1.msra.mxu0 0.0
        %1278 = vmatprep.subr.mxu0 0.0
        %1279 = vmatpush1.msra.mxu0 0.0
        %1280 = vmatprep.subr.mxu0 0.0
        %1281 = vmatpush1.msra.mxu0 0.0
        %1282 = vmatprep.subr.mxu0 0.0
        %1283 = vmatpush1.msra.mxu0 0.0
        %1284 = vmatprep.subr.mxu0 0.0
        %1285 = vmatpush1.msra.mxu0 0.0
        %1286 = vmatprep.subr.mxu0 0.0
        %1287 = vmatpush1.msra.mxu0 0.0
        %1288 = vmatprep.subr.mxu0 0.0
        %1289 = vmatpush1.msra.mxu0 0.0
        %1290 = vmatprep.subr.mxu0 0.0
        %1291 = vmatpush1.msra.mxu0 0.0
        %1292 = vmatprep.subr.mxu0 0.0
        %1293 = vmatpush1.msra.mxu0 0.0
        %1294 = vmatprep.subr.mxu0 0.0
        %1295 = vmatpush1.msra.mxu0 0.0
        %1296 = vmatprep.subr.mxu0 0.0
        %1297 = vmatpush1.msra.mxu0 0.0
        %1298 = vmatprep.subr.mxu0 0.0
        %1299 = vmatpush1.msra.mxu0 0.0
        %1300 = vmatprep.subr.mxu0 0.0
        %1301 = vmatpush1.msra.mxu0 0.0
        %1302 = vmatprep.subr.mxu0 0.0
        %1303 = vmatpush1.msra.mxu0 0.0
        %1304 = vmatprep.subr.mxu0 0.0
        %1305 = vmatpush1.msra.mxu0 0.0
        %1306 = vmatprep.mubr.f32.mxu0 0.0
        %1307 = vmatmul.mubr.f32.gmra.mrb[0].mxu0 %v1147
        %v1308 = vpop.f32.mrb[0].mxu0
        %v1309 = vadd.f32 %v757, %v1308
        %v1310 = vpop.f32.mrb[0].mxu0
        %1311 = vmatprep.mubr.f32.mxu0 0.0
        %1312 = vmatmul.mubr.f32.gmra.mrb[0].mxu0 %v1150
        %v1313 = vpop.f32.mrb[0].mxu0
        %v1314 = vadd.f32 %v757, %v1313
        %v1315 = vpop.f32.mrb[0].mxu0
        %1316 = vmatprep.mubr.f32.mxu0 0.0
        %1317 = vmatmul.mubr.f32.gmra.mrb[0].mxu0 %v1153
        %v1318 = vpop.f32.mrb[0].mxu0
        %v1319 = vadd.f32 %v757, %v1318
        %v1320 = vpop.f32.mrb[0].mxu0
        %1321 = vmatprep.mubr.f32.mxu0 0.0
        %1322 = vmatmul.mubr.f32.gmra.mrb[0].mxu0 %v1156
        %v1323 = vpop.f32.mrb[0].mxu0
        %v1324 = vadd.f32 %v757, %v1323
        %v1325 = vpop.f32.mrb[0].mxu0
        %1326 = vmatprep.mubr.f32.mxu0 0.0
        %1327 = vmatmul.mubr.f32.gmra.mrb[0].mxu0 %v1159
        %v1328 = vpop.f32.mrb[0].mxu0
        %v1329 = vadd.f32 %v757, %v1328
        %v1330 = vpop.f32.mrb[0].mxu0
        %1331 = vmatprep.mubr.f32.mxu0 0.0
        %1332 = vmatmul.mubr.f32.gmra.mrb[0].mxu0 %v1162
        %v1333 = vpop.f32.mrb[0].mxu0
        %v1334 = vadd.f32 %v757, %v1333
        %v1335 = vpop.f32.mrb[0].mxu0
        %1336 = vmatprep.mubr.f32.mxu0 0.0
        %1337 = vmatmul.mubr.f32.gmra.mrb[0].mxu0 %v1165
        %v1338 = vpop.f32.mrb[0].mxu0
        %v1339 = vadd.f32 %v757, %v1338
        %v1340 = vpop.f32.mrb[0].mxu0
        %1341 = vmatprep.mubr.f32.mxu0 0.0
        %1342 = vmatmul.mubr.f32.gmra.mrb[0].mxu0 %v1168
        %v1343 = vpop.f32.mrb[0].mxu0
        %v1344 = vadd.f32 %v757, %v1343
        %v1345 = vpop.f32.mrb[0].mxu0
        %1346 = vmatprep.mubr.f32.mxu0 0.0
        %1347 = vmatmul.mubr.f32.gmra.mrb[0].mxu0 %v1171
        %v1348 = vpop.f32.mrb[0].mxu0
        %v1349 = vadd.f32 %v757, %v1348
        %v1350 = vpop.f32.mrb[0].mxu0
        %1351 = vmatprep.mubr.f32.mxu0 0.0
        %1352 = vmatmul.mubr.f32.gmra.mrb[0].mxu0 %v1174
        %v1353 = vpop.f32.mrb[0].mxu0
        %v1354 = vadd.f32 %v757, %v1353
        %v1355 = vpop.f32.mrb[0].mxu0
        %1356 = vmatprep.mubr.f32.mxu0 0.0
        %1357 = vmatmul.mubr.f32.gmra.mrb[0].mxu0 %v1177
        %v1358 = vpop.f32.mrb[0].mxu0
        %v1359 = vadd.f32 %v757, %v1358
        %v1360 = vpop.f32.mrb[0].mxu0
        %1361 = vmatprep.mubr.f32.mxu0 0.0
        %1362 = vmatmul.mubr.f32.gmra.mrb[0].mxu0 %v1180
        %v1363 = vpop.f32.mrb[0].mxu0
        %v1364 = vadd.f32 %v757, %v1363
        %v1365 = vpop.f32.mrb[0].mxu0
        %1366 = vmatprep.mubr.f32.mxu0 0.0
        %1367 = vmatmul.mubr.f32.gmra.mrb[0].mxu0 %v1183
        %v1368 = vpop.f32.mrb[0].mxu0
        %v1369 = vadd.f32 %v757, %v1368
        %v1370 = vpop.f32.mrb[0].mxu0
        %1371 = vmatprep.mubr.f32.mxu0 0.0
        %1372 = vmatmul.mubr.f32.gmra.mrb[0].mxu0 %v1186
        %v1373 = vpop.f32.mrb[0].mxu0
        %v1374 = vadd.f32 %v757, %v1373
        %v1375 = vpop.f32.mrb[0].mxu0
        %1376 = vmatprep.mubr.f32.mxu0 0.0
        %1377 = vmatmul.mubr.f32.gmra.mrb[0].mxu0 %v1189
        %v1378 = vpop.f32.mrb[0].mxu0
        %v1379 = vadd.f32 %v757, %v1378
        %v1380 = vpop.f32.mrb[0].mxu0
        %1381 = vmatprep.mubr.f32.mxu0 0.0
        %1382 = vmatmul.mubr.f32.gmra.mrb[0].mxu0 %v1192
        %v1383 = vpop.f32.mrb[0].mxu0
        %v1384 = vadd.f32 %v757, %v1383
        %v1385 = vpop.f32.mrb[0].mxu0
        %1386 = vmatprep.mubr.f32.mxu0 0.0
        %1387 = vmatmul.mubr.f32.gmra.mrb[0].mxu0 %v1195
        %v1388 = vpop.f32.mrb[0].mxu0
        %v1389 = vadd.f32 %v757, %v1388
        %v1390 = vpop.f32.mrb[0].mxu0
        %1391 = vmatprep.mubr.f32.mxu0 0.0
        %1392 = vmatmul.mubr.f32.gmra.mrb[0].mxu0 %v1198
        %v1393 = vpop.f32.mrb[0].mxu0
        %v1394 = vadd.f32 %v757, %v1393
        %v1395 = vpop.f32.mrb[0].mxu0
        %1396 = vmatprep.mubr.f32.mxu0 0.0
        %1397 = vmatmul.mubr.f32.gmra.mrb[0].mxu0 %v1201
        %v1398 = vpop.f32.mrb[0].mxu0
        %v1399 = vadd.f32 %v757, %v1398
        %v1400 = vpop.f32.mrb[0].mxu0
        %1401 = vmatprep.mubr.f32.mxu0 0.0
        %1402 = vmatmul.mubr.f32.gmra.mrb[0].mxu0 %v1204
        %v1403 = vpop.f32.mrb[0].mxu0
        %v1404 = vadd.f32 %v757, %v1403
        %v1405 = vpop.f32.mrb[0].mxu0
        %1406 = vmatprep.mubr.f32.mxu0 0.0
        %1407 = vmatmul.mubr.f32.gmra.mrb[0].mxu0 %v1207
        %v1408 = vpop.f32.mrb[0].mxu0
        %v1409 = vadd.f32 %v757, %v1408
        %v1410 = vpop.f32.mrb[0].mxu0
        %1411 = vmatprep.mubr.f32.mxu0 0.0
        %1412 = vmatmul.mubr.f32.gmra.mrb[0].mxu0 %v1210
        %v1413 = vpop.f32.mrb[0].mxu0
        %v1414 = vadd.f32 %v757, %v1413
        %v1415 = vpop.f32.mrb[0].mxu0
        %1416 = vmatprep.mubr.f32.mxu0 0.0
        %1417 = vmatmul.mubr.f32.gmra.mrb[0].mxu0 %v1213
        %v1418 = vpop.f32.mrb[0].mxu0
        %v1419 = vadd.f32 %v757, %v1418
        %v1420 = vpop.f32.mrb[0].mxu0
        %1421 = vmatprep.mubr.f32.mxu0 0.0
        %1422 = vmatmul.mubr.f32.gmra.mrb[0].mxu0 %v1216
        %v1423 = vpop.f32.mrb[0].mxu0
        %v1424 = vadd.f32 %v757, %v1423
        %v1425 = vpop.f32.mrb[0].mxu0
        %1426 = vmatprep.mubr.f32.mxu0 0.0
        %1427 = vmatmul.mubr.f32.gmra.mrb[0].mxu0 %v1219
        %v1428 = vpop.f32.mrb[0].mxu0
        %v1429 = vadd.f32 %v757, %v1428
        %v1430 = vpop.f32.mrb[0].mxu0
        %1431 = vmatprep.mubr.f32.mxu0 0.0
        %1432 = vmatmul.mubr.f32.gmra.mrb[0].mxu0 %v1222
        %v1433 = vpop.f32.mrb[0].mxu0
        %v1434 = vadd.f32 %v757, %v1433
        %v1435 = vpop.f32.mrb[0].mxu0
        %1436 = vmatprep.mubr.f32.mxu0 0.0
        %1437 = vmatmul.mubr.f32.gmra.mrb[0].mxu0 %v1225
        %v1438 = vpop.f32.mrb[0].mxu0
        %v1439 = vadd.f32 %v757, %v1438
        %v1440 = vpop.f32.mrb[0].mxu0
        %1441 = vmatprep.mubr.f32.mxu0 0.0
        %1442 = vmatmul.mubr.f32.gmra.mrb[0].mxu0 %v1228
        %v1443 = vpop.f32.mrb[0].mxu0
        %v1444 = vadd.f32 %v757, %v1443
        %v1445 = vpop.f32.mrb[0].mxu0
        %1446 = vmatprep.mubr.f32.mxu0 0.0
        %1447 = vmatmul.mubr.f32.gmra.mrb[0].mxu0 %v1231
        %v1448 = vpop.f32.mrb[0].mxu0
        %v1449 = vadd.f32 %v757, %v1448
        %v1450 = vpop.f32.mrb[0].mxu0
        %1451 = vmatprep.mubr.f32.mxu0 0.0
        %1452 = vmatmul.mubr.f32.gmra.mrb[0].mxu0 %v1234
        %v1453 = vpop.f32.mrb[0].mxu0
        %v1454 = vadd.f32 %v757, %v1453
        %v1455 = vpop.f32.mrb[0].mxu0
        %1456 = vmatprep.mubr.f32.mxu0 0.0
        %1457 = vmatmul.mubr.f32.gmra.mrb[0].mxu0 %v1237
        %v1458 = vpop.f32.mrb[0].mxu0
        %v1459 = vadd.f32 %v757, %v1458
        %v1460 = vpop.f32.mrb[0].mxu0
        %1461 = vmatprep.mubr.f32.mxu0 0.0
        %1462 = vmatmul.mubr.f32.gmra.mrb[0].mxu0 %v1240
        %v1463 = vpop.f32.mrb[0].mxu0
        %v1464 = vadd.f32 %v757, %v1463
        %v1465 = vpop.f32.mrb[0].mxu0
        %1466 = vdwg.mxu0
        %v1467 = vmax.f32 %v1309, 0.0
        %v1468 = vmax.f32 %v1314, 0.0
        %v1469 = vmax.f32 %v1319, 0.0
        %v1470 = vmax.f32 %v1324, 0.0
        %v1471 = vmax.f32 %v1329, 0.0
        %v1472 = vmax.f32 %v1334, 0.0
        %v1473 = vmax.f32 %v1339, 0.0
        %v1474 = vmax.f32 %v1344, 0.0
        %v1475 = vmax.f32 %v1349, 0.0
        %v1476 = vmax.f32 %v1354, 0.0
        %v1477 = vmax.f32 %v1359, 0.0
        %v1478 = vmax.f32 %v1364, 0.0
        %v1479 = vmax.f32 %v1369, 0.0
        %v1480 = vmax.f32 %v1374, 0.0
        %v1481 = vmax.f32 %v1379, 0.0
        %v1482 = vmax.f32 %v1384, 0.0
        %v1483 = vmax.f32 %v1389, 0.0
        %v1484 = vmax.f32 %v1394, 0.0
        %v1485 = vmax.f32 %v1399, 0.0
        %v1486 = vmax.f32 %v1404, 0.0
        %v1487 = vmax.f32 %v1409, 0.0
        %v1488 = vmax.f32 %v1414, 0.0
        %v1489 = vmax.f32 %v1419, 0.0
        %v1490 = vmax.f32 %v1424, 0.0
        %v1491 = vmax.f32 %v1429, 0.0
        %v1492 = vmax.f32 %v1434, 0.0
        %v1493 = vmax.f32 %v1439, 0.0
        %v1494 = vmax.f32 %v1444, 0.0
        %v1495 = vmax.f32 %v1449, 0.0
        %v1496 = vmax.f32 %v1454, 0.0
        %v1497 = vmax.f32 %v1459, 0.0
        %v1498 = vmax.f32 %v1464, 0.0
        %v1499 = vadd.f32 %v1081, %v1467
        %v1500 = vadd.f32 %v1082, %v1468
        %v1501 = vadd.f32 %v1083, %v1469
        %v1502 = vadd.f32 %v1084, %v1470
        %v1503 = vadd.f32 %v1085, %v1471
        %v1504 = vadd.f32 %v1086, %v1472
        %v1505 = vadd.f32 %v1087, %v1473
        %v1506 = vadd.f32 %v1088, %v1474
        %v1507 = vadd.f32 %v1089, %v1475
        %v1508 = vadd.f32 %v1090, %v1476
        %v1509 = vadd.f32 %v1091, %v1477
        %v1510 = vadd.f32 %v1092, %v1478
        %v1511 = vadd.f32 %v1093, %v1479
        %v1512 = vadd.f32 %v1094, %v1480
        %v1513 = vadd.f32 %v1095, %v1481
        %v1514 = vadd.f32 %v1096, %v1482
        %v1515 = vadd.f32 %v1097, %v1483
        %v1516 = vadd.f32 %v1098, %v1484
        %v1517 = vadd.f32 %v1099, %v1485
        %v1518 = vadd.f32 %v1100, %v1486
        %v1519 = vadd.f32 %v1101, %v1487
        %v1520 = vadd.f32 %v1102, %v1488
        %v1521 = vadd.f32 %v1103, %v1489
        %v1522 = vadd.f32 %v1104, %v1490
        %v1523 = vadd.f32 %v1105, %v1491
        %v1524 = vadd.f32 %v1106, %v1492
        %v1525 = vadd.f32 %v1107, %v1493
        %v1526 = vadd.f32 %v1108, %v1494
        %v1527 = vadd.f32 %v1109, %v1495
        %v1528 = vadd.f32 %v1110, %v1496
        %v1529 = vadd.f32 %v1111, %v1497
        %v1530 = vadd.f32 %v1112, %v1498
        %s1531 = scalar_lea.vmem %s688, 512 [#allocation2]
        %v1532 = vld [vmem:[%s1531] sm:$0xff]
        %v1533 = vld [vmem:[%s1531 + $0x8] sm:$0xff]
        %v1534 = vld [vmem:[%s1531 + $0x10] sm:$0xff]
        %v1535 = vld [vmem:[%s1531 + $0x18] sm:$0xff]
        %v1536 = vld [vmem:[%s1531 + $0x20] sm:$0xff]
        %v1537 = vld [vmem:[%s1531 + $0x28] sm:$0xff]
        %v1538 = vld [vmem:[%s1531 + $0x30] sm:$0xff]
        %v1539 = vld [vmem:[%s1531 + $0x38] sm:$0xff]
        %v1540 = vld [vmem:[%s1531 + $0x40] sm:$0xff]
        %v1541 = vld [vmem:[%s1531 + $0x48] sm:$0xff]
        %v1542 = vld [vmem:[%s1531 + $0x50] sm:$0xff]
        %v1543 = vld [vmem:[%s1531 + $0x58] sm:$0xff]
        %v1544 = vld [vmem:[%s1531 + $0x60] sm:$0xff]
        %v1545 = vld [vmem:[%s1531 + $0x68] sm:$0xff]
        %v1546 = vld [vmem:[%s1531 + $0x70] sm:$0xff]
        %v1547 = vld [vmem:[%s1531 + $0x78] sm:$0xff]
        %v1548 = vld [vmem:[%s1531 + $0x80] sm:$0xff]
        %v1549 = vld [vmem:[%s1531 + $0x88] sm:$0xff]
        %v1550 = vld [vmem:[%s1531 + $0x90] sm:$0xff]
        %v1551 = vld [vmem:[%s1531 + $0x98] sm:$0xff]
        %v1552 = vld [vmem:[%s1531 + $0xa0] sm:$0xff]
        %v1553 = vld [vmem:[%s1531 + $0xa8] sm:$0xff]
        %v1554 = vld [vmem:[%s1531 + $0xb0] sm:$0xff]
        %v1555 = vld [vmem:[%s1531 + $0xb8] sm:$0xff]
        %v1556 = vld [vmem:[%s1531 + $0xc0] sm:$0xff]
        %v1557 = vld [vmem:[%s1531 + $0xc8] sm:$0xff]
        %v1558 = vld [vmem:[%s1531 + $0xd0] sm:$0xff]
        %v1559 = vld [vmem:[%s1531 + $0xd8] sm:$0xff]
        %v1560 = vld [vmem:[%s1531 + $0xe0] sm:$0xff]
        %v1561 = vld [vmem:[%s1531 + $0xe8] sm:$0xff]
        %v1562 = vld [vmem:[%s1531 + $0xf0] sm:$0xff]
        %v1563 = vld [vmem:[%s1531 + $0xf8] sm:$0xff]
        %v1565 = vsel %vm759, %v1532, 0
        %v1568 = vsel %vm759, %v1533, 0
        %v1571 = vsel %vm759, %v1534, 0
        %v1574 = vsel %vm759, %v1535, 0
        %v1577 = vsel %vm759, %v1536, 0
        %v1580 = vsel %vm759, %v1537, 0
        %v1583 = vsel %vm759, %v1538, 0
        %v1586 = vsel %vm759, %v1539, 0
        %v1589 = vsel %vm759, %v1540, 0
        %v1592 = vsel %vm759, %v1541, 0
        %v1595 = vsel %vm759, %v1542, 0
        %v1598 = vsel %vm759, %v1543, 0
        %v1601 = vsel %vm759, %v1544, 0
        %v1604 = vsel %vm759, %v1545, 0
        %v1607 = vsel %vm759, %v1546, 0
        %v1610 = vsel %vm759, %v1547, 0
        %v1613 = vsel %vm759, %v1548, 0
        %v1616 = vsel %vm759, %v1549, 0
        %v1619 = vsel %vm759, %v1550, 0
        %v1622 = vsel %vm759, %v1551, 0
        %v1625 = vsel %vm759, %v1552, 0
        %v1628 = vsel %vm759, %v1553, 0
        %v1631 = vsel %vm759, %v1554, 0
        %v1634 = vsel %vm759, %v1555, 0
        %v1637 = vsel %vm759, %v1556, 0
        %v1640 = vsel %vm759, %v1557, 0
        %v1643 = vsel %vm759, %v1558, 0
        %v1646 = vsel %vm759, %v1559, 0
        %v1649 = vsel %vm759, %v1560, 0
        %v1652 = vsel %vm759, %v1561, 0
        %v1655 = vsel %vm759, %v1562, 0
        %v1658 = vsel %vm759, %v1563, 0
        %1660 = vmatprep.subr.mxu0 0.0
        %1661 = vmatpush1.msra.mxu0 %v716
        %1662 = vmatprep.subr.mxu0 0.0
        %1663 = vmatpush1.msra.mxu0 %v717
        %1664 = vmatprep.subr.mxu0 0.0
        %1665 = vmatpush1.msra.mxu0 %v718
        %1666 = vmatprep.subr.mxu0 0.0
        %1667 = vmatpush1.msra.mxu0 %v719
        %1668 = vmatprep.subr.mxu0 0.0
        %1669 = vmatpush1.msra.mxu0 0.0
        %1670 = vmatprep.subr.mxu0 0.0
        %1671 = vmatpush1.msra.mxu0 0.0
        %1672 = vmatprep.subr.mxu0 0.0
        %1673 = vmatpush1.msra.mxu0 0.0
        %1674 = vmatprep.subr.mxu0 0.0
        %1675 = vmatpush1.msra.mxu0 0.0
        %1676 = vmatprep.subr.mxu0 0.0
        %1677 = vmatpush1.msra.mxu0 0.0
        %1678 = vmatprep.subr.mxu0 0.0
        %1679 = vmatpush1.msra.mxu0 0.0
        %1680 = vmatprep.subr.mxu0 0.0
        %1681 = vmatpush1.msra.mxu0 0.0
        %1682 = vmatprep.subr.mxu0 0.0
        %1683 = vmatpush1.msra.mxu0 0.0
        %1684 = vmatprep.subr.mxu0 0.0
        %1685 = vmatpush1.msra.mxu0 0.0
        %1686 = vmatprep.subr.mxu0 0.0
        %1687 = vmatpush1.msra.mxu0 0.0
        %1688 = vmatprep.subr.mxu0 0.0
        %1689 = vmatpush1.msra.mxu0 0.0
        %1690 = vmatprep.subr.mxu0 0.0
        %1691 = vmatpush1.msra.mxu0 0.0
        %1692 = vmatprep.subr.mxu0 0.0
        %1693 = vmatpush1.msra.mxu0 0.0
        %1694 = vmatprep.subr.mxu0 0.0
        %1695 = vmatpush1.msra.mxu0 0.0
        %1696 = vmatprep.subr.mxu0 0.0
        %1697 = vmatpush1.msra.mxu0 0.0
        %1698 = vmatprep.subr.mxu0 0.0
        %1699 = vmatpush1.msra.mxu0 0.0
        %1700 = vmatprep.subr.mxu0 0.0
        %1701 = vmatpush1.msra.mxu0 0.0
        %1702 = vmatprep.subr.mxu0 0.0
        %1703 = vmatpush1.msra.mxu0 0.0
        %1704 = vmatprep.subr.mxu0 0.0
        %1705 = vmatpush1.msra.mxu0 0.0
        %1706 = vmatprep.subr.mxu0 0.0
        %1707 = vmatpush1.msra.mxu0 0.0
        %1708 = vmatprep.subr.mxu0 0.0
        %1709 = vmatpush1.msra.mxu0 0.0
        %1710 = vmatprep.subr.mxu0 0.0
        %1711 = vmatpush1.msra.mxu0 0.0
        %1712 = vmatprep.subr.mxu0 0.0
        %1713 = vmatpush1.msra.mxu0 0.0
        %1714 = vmatprep.subr.mxu0 0.0
        %1715 = vmatpush1.msra.mxu0 0.0
        %1716 = vmatprep.subr.mxu0 0.0
        %1717 = vmatpush1.msra.mxu0 0.0
        %1718 = vmatprep.subr.mxu0 0.0
        %1719 = vmatpush1.msra.mxu0 0.0
        %1720 = vmatprep.subr.mxu0 0.0
        %1721 = vmatpush1.msra.mxu0 0.0
        %1722 = vmatprep.subr.mxu0 0.0
        %1723 = vmatpush1.msra.mxu0 0.0
        %1724 = vmatprep.mubr.f32.mxu0 0.0
        %1725 = vmatmul.mubr.f32.gmra.mrb[0].mxu0 %v1565
        %v1726 = vpop.f32.mrb[0].mxu0
        %v1727 = vadd.f32 %v757, %v1726
        %v1728 = vpop.f32.mrb[0].mxu0
        %1729 = vmatprep.mubr.f32.mxu0 0.0
        %1730 = vmatmul.mubr.f32.gmra.mrb[0].mxu0 %v1568
        %v1731 = vpop.f32.mrb[0].mxu0
        %v1732 = vadd.f32 %v757, %v1731
        %v1733 = vpop.f32.mrb[0].mxu0
        %1734 = vmatprep.mubr.f32.mxu0 0.0
        %1735 = vmatmul.mubr.f32.gmra.mrb[0].mxu0 %v1571
        %v1736 = vpop.f32.mrb[0].mxu0
        %v1737 = vadd.f32 %v757, %v1736
        %v1738 = vpop.f32.mrb[0].mxu0
        %1739 = vmatprep.mubr.f32.mxu0 0.0
        %1740 = vmatmul.mubr.f32.gmra.mrb[0].mxu0 %v1574
        %v1741 = vpop.f32.mrb[0].mxu0
        %v1742 = vadd.f32 %v757, %v1741
        %v1743 = vpop.f32.mrb[0].mxu0
        %1744 = vmatprep.mubr.f32.mxu0 0.0
        %1745 = vmatmul.mubr.f32.gmra.mrb[0].mxu0 %v1577
        %v1746 = vpop.f32.mrb[0].mxu0
        %v1747 = vadd.f32 %v757, %v1746
        %v1748 = vpop.f32.mrb[0].mxu0
        %1749 = vmatprep.mubr.f32.mxu0 0.0
        %1750 = vmatmul.mubr.f32.gmra.mrb[0].mxu0 %v1580
        %v1751 = vpop.f32.mrb[0].mxu0
        %v1752 = vadd.f32 %v757, %v1751
        %v1753 = vpop.f32.mrb[0].mxu0
        %1754 = vmatprep.mubr.f32.mxu0 0.0
        %1755 = vmatmul.mubr.f32.gmra.mrb[0].mxu0 %v1583
        %v1756 = vpop.f32.mrb[0].mxu0
        %v1757 = vadd.f32 %v757, %v1756
        %v1758 = vpop.f32.mrb[0].mxu0
        %1759 = vmatprep.mubr.f32.mxu0 0.0
        %1760 = vmatmul.mubr.f32.gmra.mrb[0].mxu0 %v1586
        %v1761 = vpop.f32.mrb[0].mxu0
        %v1762 = vadd.f32 %v757, %v1761
        %v1763 = vpop.f32.mrb[0].mxu0
        %1764 = vmatprep.mubr.f32.mxu0 0.0
        %1765 = vmatmul.mubr.f32.gmra.mrb[0].mxu0 %v1589
        %v1766 = vpop.f32.mrb[0].mxu0
        %v1767 = vadd.f32 %v757, %v1766
        %v1768 = vpop.f32.mrb[0].mxu0
        %1769 = vmatprep.mubr.f32.mxu0 0.0
        %1770 = vmatmul.mubr.f32.gmra.mrb[0].mxu0 %v1592
        %v1771 = vpop.f32.mrb[0].mxu0
        %v1772 = vadd.f32 %v757, %v1771
        %v1773 = vpop.f32.mrb[0].mxu0
        %1774 = vmatprep.mubr.f32.mxu0 0.0
        %1775 = vmatmul.mubr.f32.gmra.mrb[0].mxu0 %v1595
        %v1776 = vpop.f32.mrb[0].mxu0
        %v1777 = vadd.f32 %v757, %v1776
        %v1778 = vpop.f32.mrb[0].mxu0
        %1779 = vmatprep.mubr.f32.mxu0 0.0
        %1780 = vmatmul.mubr.f32.gmra.mrb[0].mxu0 %v1598
        %v1781 = vpop.f32.mrb[0].mxu0
        %v1782 = vadd.f32 %v757, %v1781
        %v1783 = vpop.f32.mrb[0].mxu0
        %1784 = vmatprep.mubr.f32.mxu0 0.0
        %1785 = vmatmul.mubr.f32.gmra.mrb[0].mxu0 %v1601
        %v1786 = vpop.f32.mrb[0].mxu0
        %v1787 = vadd.f32 %v757, %v1786
        %v1788 = vpop.f32.mrb[0].mxu0
        %1789 = vmatprep.mubr.f32.mxu0 0.0
        %1790 = vmatmul.mubr.f32.gmra.mrb[0].mxu0 %v1604
        %v1791 = vpop.f32.mrb[0].mxu0
        %v1792 = vadd.f32 %v757, %v1791
        %v1793 = vpop.f32.mrb[0].mxu0
        %1794 = vmatprep.mubr.f32.mxu0 0.0
        %1795 = vmatmul.mubr.f32.gmra.mrb[0].mxu0 %v1607
        %v1796 = vpop.f32.mrb[0].mxu0
        %v1797 = vadd.f32 %v757, %v1796
        %v1798 = vpop.f32.mrb[0].mxu0
        %1799 = vmatprep.mubr.f32.mxu0 0.0
        %1800 = vmatmul.mubr.f32.gmra.mrb[0].mxu0 %v1610
        %v1801 = vpop.f32.mrb[0].mxu0
        %v1802 = vadd.f32 %v757, %v1801
        %v1803 = vpop.f32.mrb[0].mxu0
        %1804 = vmatprep.mubr.f32.mxu0 0.0
        %1805 = vmatmul.mubr.f32.gmra.mrb[0].mxu0 %v1613
        %v1806 = vpop.f32.mrb[0].mxu0
        %v1807 = vadd.f32 %v757, %v1806
        %v1808 = vpop.f32.mrb[0].mxu0
        %1809 = vmatprep.mubr.f32.mxu0 0.0
        %1810 = vmatmul.mubr.f32.gmra.mrb[0].mxu0 %v1616
        %v1811 = vpop.f32.mrb[0].mxu0
        %v1812 = vadd.f32 %v757, %v1811
        %v1813 = vpop.f32.mrb[0].mxu0
        %1814 = vmatprep.mubr.f32.mxu0 0.0
        %1815 = vmatmul.mubr.f32.gmra.mrb[0].mxu0 %v1619
        %v1816 = vpop.f32.mrb[0].mxu0
        %v1817 = vadd.f32 %v757, %v1816
        %v1818 = vpop.f32.mrb[0].mxu0
        %1819 = vmatprep.mubr.f32.mxu0 0.0
        %1820 = vmatmul.mubr.f32.gmra.mrb[0].mxu0 %v1622
        %v1821 = vpop.f32.mrb[0].mxu0
        %v1822 = vadd.f32 %v757, %v1821
        %v1823 = vpop.f32.mrb[0].mxu0
        %1824 = vmatprep.mubr.f32.mxu0 0.0
        %1825 = vmatmul.mubr.f32.gmra.mrb[0].mxu0 %v1625
        %v1826 = vpop.f32.mrb[0].mxu0
        %v1827 = vadd.f32 %v757, %v1826
        %v1828 = vpop.f32.mrb[0].mxu0
        %1829 = vmatprep.mubr.f32.mxu0 0.0
        %1830 = vmatmul.mubr.f32.gmra.mrb[0].mxu0 %v1628
        %v1831 = vpop.f32.mrb[0].mxu0
        %v1832 = vadd.f32 %v757, %v1831
        %v1833 = vpop.f32.mrb[0].mxu0
        %1834 = vmatprep.mubr.f32.mxu0 0.0
        %1835 = vmatmul.mubr.f32.gmra.mrb[0].mxu0 %v1631
        %v1836 = vpop.f32.mrb[0].mxu0
        %v1837 = vadd.f32 %v757, %v1836
        %v1838 = vpop.f32.mrb[0].mxu0
        %1839 = vmatprep.mubr.f32.mxu0 0.0
        %1840 = vmatmul.mubr.f32.gmra.mrb[0].mxu0 %v1634
        %v1841 = vpop.f32.mrb[0].mxu0
        %v1842 = vadd.f32 %v757, %v1841
        %v1843 = vpop.f32.mrb[0].mxu0
        %1844 = vmatprep.mubr.f32.mxu0 0.0
        %1845 = vmatmul.mubr.f32.gmra.mrb[0].mxu0 %v1637
        %v1846 = vpop.f32.mrb[0].mxu0
        %v1847 = vadd.f32 %v757, %v1846
        %v1848 = vpop.f32.mrb[0].mxu0
        %1849 = vmatprep.mubr.f32.mxu0 0.0
        %1850 = vmatmul.mubr.f32.gmra.mrb[0].mxu0 %v1640
        %v1851 = vpop.f32.mrb[0].mxu0
        %v1852 = vadd.f32 %v757, %v1851
        %v1853 = vpop.f32.mrb[0].mxu0
        %1854 = vmatprep.mubr.f32.mxu0 0.0
        %1855 = vmatmul.mubr.f32.gmra.mrb[0].mxu0 %v1643
        %v1856 = vpop.f32.mrb[0].mxu0
        %v1857 = vadd.f32 %v757, %v1856
        %v1858 = vpop.f32.mrb[0].mxu0
        %1859 = vmatprep.mubr.f32.mxu0 0.0
        %1860 = vmatmul.mubr.f32.gmra.mrb[0].mxu0 %v1646
        %v1861 = vpop.f32.mrb[0].mxu0
        %v1862 = vadd.f32 %v757, %v1861
        %v1863 = vpop.f32.mrb[0].mxu0
        %1864 = vmatprep.mubr.f32.mxu0 0.0
        %1865 = vmatmul.mubr.f32.gmra.mrb[0].mxu0 %v1649
        %v1866 = vpop.f32.mrb[0].mxu0
        %v1867 = vadd.f32 %v757, %v1866
        %v1868 = vpop.f32.mrb[0].mxu0
        %1869 = vmatprep.mubr.f32.mxu0 0.0
        %1870 = vmatmul.mubr.f32.gmra.mrb[0].mxu0 %v1652
        %v1871 = vpop.f32.mrb[0].mxu0
        %v1872 = vadd.f32 %v757, %v1871
        %v1873 = vpop.f32.mrb[0].mxu0
        %1874 = vmatprep.mubr.f32.mxu0 0.0
        %1875 = vmatmul.mubr.f32.gmra.mrb[0].mxu0 %v1655
        %v1876 = vpop.f32.mrb[0].mxu0
        %v1877 = vadd.f32 %v757, %v1876
        %v1878 = vpop.f32.mrb[0].mxu0
        %1879 = vmatprep.mubr.f32.mxu0 0.0
        %1880 = vmatmul.mubr.f32.gmra.mrb[0].mxu0 %v1658
        %v1881 = vpop.f32.mrb[0].mxu0
        %v1882 = vadd.f32 %v757, %v1881
        %v1883 = vpop.f32.mrb[0].mxu0
        %1884 = vdwg.mxu0
        %v1885 = vmax.f32 %v1727, 0.0
        %v1886 = vmax.f32 %v1732, 0.0
        %v1887 = vmax.f32 %v1737, 0.0
        %v1888 = vmax.f32 %v1742, 0.0
        %v1889 = vmax.f32 %v1747, 0.0
        %v1890 = vmax.f32 %v1752, 0.0
        %v1891 = vmax.f32 %v1757, 0.0
        %v1892 = vmax.f32 %v1762, 0.0
        %v1893 = vmax.f32 %v1767, 0.0
        %v1894 = vmax.f32 %v1772, 0.0
        %v1895 = vmax.f32 %v1777, 0.0
        %v1896 = vmax.f32 %v1782, 0.0
        %v1897 = vmax.f32 %v1787, 0.0
        %v1898 = vmax.f32 %v1792, 0.0
        %v1899 = vmax.f32 %v1797, 0.0
        %v1900 = vmax.f32 %v1802, 0.0
        %v1901 = vmax.f32 %v1807, 0.0
        %v1902 = vmax.f32 %v1812, 0.0
        %v1903 = vmax.f32 %v1817, 0.0
        %v1904 = vmax.f32 %v1822, 0.0
        %v1905 = vmax.f32 %v1827, 0.0
        %v1906 = vmax.f32 %v1832, 0.0
        %v1907 = vmax.f32 %v1837, 0.0
        %v1908 = vmax.f32 %v1842, 0.0
        %v1909 = vmax.f32 %v1847, 0.0
        %v1910 = vmax.f32 %v1852, 0.0
        %v1911 = vmax.f32 %v1857, 0.0
        %v1912 = vmax.f32 %v1862, 0.0
        %v1913 = vmax.f32 %v1867, 0.0
        %v1914 = vmax.f32 %v1872, 0.0
        %v1915 = vmax.f32 %v1877, 0.0
        %v1916 = vmax.f32 %v1882, 0.0
        %v1917 = vadd.f32 %v1499, %v1885
        %v1918 = vadd.f32 %v1500, %v1886
        %v1919 = vadd.f32 %v1501, %v1887
        %v1920 = vadd.f32 %v1502, %v1888
        %v1921 = vadd.f32 %v1503, %v1889
        %v1922 = vadd.f32 %v1504, %v1890
        %v1923 = vadd.f32 %v1505, %v1891
        %v1924 = vadd.f32 %v1506, %v1892
        %v1925 = vadd.f32 %v1507, %v1893
        %v1926 = vadd.f32 %v1508, %v1894
        %v1927 = vadd.f32 %v1509, %v1895
        %v1928 = vadd.f32 %v1510, %v1896
        %v1929 = vadd.f32 %v1511, %v1897
        %v1930 = vadd.f32 %v1512, %v1898
        %v1931 = vadd.f32 %v1513, %v1899
        %v1932 = vadd.f32 %v1514, %v1900
        %v1933 = vadd.f32 %v1515, %v1901
        %v1934 = vadd.f32 %v1516, %v1902
        %v1935 = vadd.f32 %v1517, %v1903
        %v1936 = vadd.f32 %v1518, %v1904
        %v1937 = vadd.f32 %v1519, %v1905
        %v1938 = vadd.f32 %v1520, %v1906
        %v1939 = vadd.f32 %v1521, %v1907
        %v1940 = vadd.f32 %v1522, %v1908
        %v1941 = vadd.f32 %v1523, %v1909
        %v1942 = vadd.f32 %v1524, %v1910
        %v1943 = vadd.f32 %v1525, %v1911
        %v1944 = vadd.f32 %v1526, %v1912
        %v1945 = vadd.f32 %v1527, %v1913
        %v1946 = vadd.f32 %v1528, %v1914
        %v1947 = vadd.f32 %v1529, %v1915
        %v1948 = vadd.f32 %v1530, %v1916
        %s1949 = scalar_lea.vmem %s688, 768 [#allocation2]
        %v1950 = vld [vmem:[%s1949] sm:$0xff]
        %v1951 = vld [vmem:[%s1949 + $0x8] sm:$0xff]
        %v1952 = vld [vmem:[%s1949 + $0x10] sm:$0xff]
        %v1953 = vld [vmem:[%s1949 + $0x18] sm:$0xff]
        %v1954 = vld [vmem:[%s1949 + $0x20] sm:$0xff]
        %v1955 = vld [vmem:[%s1949 + $0x28] sm:$0xff]
        %v1956 = vld [vmem:[%s1949 + $0x30] sm:$0xff]
        %v1957 = vld [vmem:[%s1949 + $0x38] sm:$0xff]
        %v1958 = vld [vmem:[%s1949 + $0x40] sm:$0xff]
        %v1959 = vld [vmem:[%s1949 + $0x48] sm:$0xff]
        %v1960 = vld [vmem:[%s1949 + $0x50] sm:$0xff]
        %v1961 = vld [vmem:[%s1949 + $0x58] sm:$0xff]
        %v1962 = vld [vmem:[%s1949 + $0x60] sm:$0xff]
        %v1963 = vld [vmem:[%s1949 + $0x68] sm:$0xff]
        %v1964 = vld [vmem:[%s1949 + $0x70] sm:$0xff]
        %v1965 = vld [vmem:[%s1949 + $0x78] sm:$0xff]
        %v1966 = vld [vmem:[%s1949 + $0x80] sm:$0xff]
        %v1967 = vld [vmem:[%s1949 + $0x88] sm:$0xff]
        %v1968 = vld [vmem:[%s1949 + $0x90] sm:$0xff]
        %v1969 = vld [vmem:[%s1949 + $0x98] sm:$0xff]
        %v1970 = vld [vmem:[%s1949 + $0xa0] sm:$0xff]
        %v1971 = vld [vmem:[%s1949 + $0xa8] sm:$0xff]
        %v1972 = vld [vmem:[%s1949 + $0xb0] sm:$0xff]
        %v1973 = vld [vmem:[%s1949 + $0xb8] sm:$0xff]
        %v1974 = vld [vmem:[%s1949 + $0xc0] sm:$0xff]
        %v1975 = vld [vmem:[%s1949 + $0xc8] sm:$0xff]
        %v1976 = vld [vmem:[%s1949 + $0xd0] sm:$0xff]
        %v1977 = vld [vmem:[%s1949 + $0xd8] sm:$0xff]
        %v1978 = vld [vmem:[%s1949 + $0xe0] sm:$0xff]
        %v1979 = vld [vmem:[%s1949 + $0xe8] sm:$0xff]
        %v1980 = vld [vmem:[%s1949 + $0xf0] sm:$0xff]
        %v1981 = vld [vmem:[%s1949 + $0xf8] sm:$0xff]
        %v1983 = vsel %vm759, %v1950, 0
        %v1986 = vsel %vm759, %v1951, 0
        %v1989 = vsel %vm759, %v1952, 0
        %v1992 = vsel %vm759, %v1953, 0
        %v1995 = vsel %vm759, %v1954, 0
        %v1998 = vsel %vm759, %v1955, 0
        %v2001 = vsel %vm759, %v1956, 0
        %v2004 = vsel %vm759, %v1957, 0
        %v2007 = vsel %vm759, %v1958, 0
        %v2010 = vsel %vm759, %v1959, 0
        %v2013 = vsel %vm759, %v1960, 0
        %v2016 = vsel %vm759, %v1961, 0
        %v2019 = vsel %vm759, %v1962, 0
        %v2022 = vsel %vm759, %v1963, 0
        %v2025 = vsel %vm759, %v1964, 0
        %v2028 = vsel %vm759, %v1965, 0
        %v2031 = vsel %vm759, %v1966, 0
        %v2034 = vsel %vm759, %v1967, 0
        %v2037 = vsel %vm759, %v1968, 0
        %v2040 = vsel %vm759, %v1969, 0
        %v2043 = vsel %vm759, %v1970, 0
        %v2046 = vsel %vm759, %v1971, 0
        %v2049 = vsel %vm759, %v1972, 0
        %v2052 = vsel %vm759, %v1973, 0
        %v2055 = vsel %vm759, %v1974, 0
        %v2058 = vsel %vm759, %v1975, 0
        %v2061 = vsel %vm759, %v1976, 0
        %v2064 = vsel %vm759, %v1977, 0
        %v2067 = vsel %vm759, %v1978, 0
        %v2070 = vsel %vm759, %v1979, 0
        %v2073 = vsel %vm759, %v1980, 0
        %v2076 = vsel %vm759, %v1981, 0
        %2078 = vmatprep.subr.mxu0 0.0
        %2079 = vmatpush1.msra.mxu0 %v716
        %2080 = vmatprep.subr.mxu0 0.0
        %2081 = vmatpush1.msra.mxu0 %v717
        %2082 = vmatprep.subr.mxu0 0.0
        %2083 = vmatpush1.msra.mxu0 %v718
        %2084 = vmatprep.subr.mxu0 0.0
        %2085 = vmatpush1.msra.mxu0 %v719
        %2086 = vmatprep.subr.mxu0 0.0
        %2087 = vmatpush1.msra.mxu0 0.0
        %2088 = vmatprep.subr.mxu0 0.0
        %2089 = vmatpush1.msra.mxu0 0.0
        %2090 = vmatprep.subr.mxu0 0.0
        %2091 = vmatpush1.msra.mxu0 0.0
        %2092 = vmatprep.subr.mxu0 0.0
        %2093 = vmatpush1.msra.mxu0 0.0
        %2094 = vmatprep.subr.mxu0 0.0
        %2095 = vmatpush1.msra.mxu0 0.0
        %2096 = vmatprep.subr.mxu0 0.0
        %2097 = vmatpush1.msra.mxu0 0.0
        %2098 = vmatprep.subr.mxu0 0.0
        %2099 = vmatpush1.msra.mxu0 0.0
        %2100 = vmatprep.subr.mxu0 0.0
        %2101 = vmatpush1.msra.mxu0 0.0
        %2102 = vmatprep.subr.mxu0 0.0
        %2103 = vmatpush1.msra.mxu0 0.0
        %2104 = vmatprep.subr.mxu0 0.0
        %2105 = vmatpush1.msra.mxu0 0.0
        %2106 = vmatprep.subr.mxu0 0.0
        %2107 = vmatpush1.msra.mxu0 0.0
        %2108 = vmatprep.subr.mxu0 0.0
        %2109 = vmatpush1.msra.mxu0 0.0
        %2110 = vmatprep.subr.mxu0 0.0
        %2111 = vmatpush1.msra.mxu0 0.0
        %2112 = vmatprep.subr.mxu0 0.0
        %2113 = vmatpush1.msra.mxu0 0.0
        %2114 = vmatprep.subr.mxu0 0.0
        %2115 = vmatpush1.msra.mxu0 0.0
        %2116 = vmatprep.subr.mxu0 0.0
        %2117 = vmatpush1.msra.mxu0 0.0
        %2118 = vmatprep.subr.mxu0 0.0
        %2119 = vmatpush1.msra.mxu0 0.0
        %2120 = vmatprep.subr.mxu0 0.0
        %2121 = vmatpush1.msra.mxu0 0.0
        %2122 = vmatprep.subr.mxu0 0.0
        %2123 = vmatpush1.msra.mxu0 0.0
        %2124 = vmatprep.subr.mxu0 0.0
        %2125 = vmatpush1.msra.mxu0 0.0
        %2126 = vmatprep.subr.mxu0 0.0
        %2127 = vmatpush1.msra.mxu0 0.0
        %2128 = vmatprep.subr.mxu0 0.0
        %2129 = vmatpush1.msra.mxu0 0.0
        %2130 = vmatprep.subr.mxu0 0.0
        %2131 = vmatpush1.msra.mxu0 0.0
        %2132 = vmatprep.subr.mxu0 0.0
        %2133 = vmatpush1.msra.mxu0 0.0
        %2134 = vmatprep.subr.mxu0 0.0
        %2135 = vmatpush1.msra.mxu0 0.0
        %2136 = vmatprep.subr.mxu0 0.0
        %2137 = vmatpush1.msra.mxu0 0.0
        %2138 = vmatprep.subr.mxu0 0.0
        %2139 = vmatpush1.msra.mxu0 0.0
        %2140 = vmatprep.subr.mxu0 0.0
        %2141 = vmatpush1.msra.mxu0 0.0
        %2142 = vmatprep.mubr.f32.mxu0 0.0
        %2143 = vmatmul.mubr.f32.gmra.mrb[0].mxu0 %v1983
        %v2144 = vpop.f32.mrb[0].mxu0
        %v2145 = vadd.f32 %v757, %v2144
        %v2146 = vpop.f32.mrb[0].mxu0
        %2147 = vmatprep.mubr.f32.mxu0 0.0
        %2148 = vmatmul.mubr.f32.gmra.mrb[0].mxu0 %v1986
        %v2149 = vpop.f32.mrb[0].mxu0
        %v2150 = vadd.f32 %v757, %v2149
        %v2151 = vpop.f32.mrb[0].mxu0
        %2152 = vmatprep.mubr.f32.mxu0 0.0
        %2153 = vmatmul.mubr.f32.gmra.mrb[0].mxu0 %v1989
        %v2154 = vpop.f32.mrb[0].mxu0
        %v2155 = vadd.f32 %v757, %v2154
        %v2156 = vpop.f32.mrb[0].mxu0
        %2157 = vmatprep.mubr.f32.mxu0 0.0
        %2158 = vmatmul.mubr.f32.gmra.mrb[0].mxu0 %v1992
        %v2159 = vpop.f32.mrb[0].mxu0
        %v2160 = vadd.f32 %v757, %v2159
        %v2161 = vpop.f32.mrb[0].mxu0
        %2162 = vmatprep.mubr.f32.mxu0 0.0
        %2163 = vmatmul.mubr.f32.gmra.mrb[0].mxu0 %v1995
        %v2164 = vpop.f32.mrb[0].mxu0
        %v2165 = vadd.f32 %v757, %v2164
        %v2166 = vpop.f32.mrb[0].mxu0
        %2167 = vmatprep.mubr.f32.mxu0 0.0
        %2168 = vmatmul.mubr.f32.gmra.mrb[0].mxu0 %v1998
        %v2169 = vpop.f32.mrb[0].mxu0
        %v2170 = vadd.f32 %v757, %v2169
        %v2171 = vpop.f32.mrb[0].mxu0
        %2172 = vmatprep.mubr.f32.mxu0 0.0
        %2173 = vmatmul.mubr.f32.gmra.mrb[0].mxu0 %v2001
        %v2174 = vpop.f32.mrb[0].mxu0
        %v2175 = vadd.f32 %v757, %v2174
        %v2176 = vpop.f32.mrb[0].mxu0
        %2177 = vmatprep.mubr.f32.mxu0 0.0
        %2178 = vmatmul.mubr.f32.gmra.mrb[0].mxu0 %v2004
        %v2179 = vpop.f32.mrb[0].mxu0
        %v2180 = vadd.f32 %v757, %v2179
        %v2181 = vpop.f32.mrb[0].mxu0
        %2182 = vmatprep.mubr.f32.mxu0 0.0
        %2183 = vmatmul.mubr.f32.gmra.mrb[0].mxu0 %v2007
        %v2184 = vpop.f32.mrb[0].mxu0
        %v2185 = vadd.f32 %v757, %v2184
        %v2186 = vpop.f32.mrb[0].mxu0
        %2187 = vmatprep.mubr.f32.mxu0 0.0
        %2188 = vmatmul.mubr.f32.gmra.mrb[0].mxu0 %v2010
        %v2189 = vpop.f32.mrb[0].mxu0
        %v2190 = vadd.f32 %v757, %v2189
        %v2191 = vpop.f32.mrb[0].mxu0
        %2192 = vmatprep.mubr.f32.mxu0 0.0
        %2193 = vmatmul.mubr.f32.gmra.mrb[0].mxu0 %v2013
        %v2194 = vpop.f32.mrb[0].mxu0
        %v2195 = vadd.f32 %v757, %v2194
        %v2196 = vpop.f32.mrb[0].mxu0
        %2197 = vmatprep.mubr.f32.mxu0 0.0
        %2198 = vmatmul.mubr.f32.gmra.mrb[0].mxu0 %v2016
        %v2199 = vpop.f32.mrb[0].mxu0
        %v2200 = vadd.f32 %v757, %v2199
        %v2201 = vpop.f32.mrb[0].mxu0
        %2202 = vmatprep.mubr.f32.mxu0 0.0
        %2203 = vmatmul.mubr.f32.gmra.mrb[0].mxu0 %v2019
        %v2204 = vpop.f32.mrb[0].mxu0
        %v2205 = vadd.f32 %v757, %v2204
        %v2206 = vpop.f32.mrb[0].mxu0
        %2207 = vmatprep.mubr.f32.mxu0 0.0
        %2208 = vmatmul.mubr.f32.gmra.mrb[0].mxu0 %v2022
        %v2209 = vpop.f32.mrb[0].mxu0
        %v2210 = vadd.f32 %v757, %v2209
        %v2211 = vpop.f32.mrb[0].mxu0
        %2212 = vmatprep.mubr.f32.mxu0 0.0
        %2213 = vmatmul.mubr.f32.gmra.mrb[0].mxu0 %v2025
        %v2214 = vpop.f32.mrb[0].mxu0
        %v2215 = vadd.f32 %v757, %v2214
        %v2216 = vpop.f32.mrb[0].mxu0
        %2217 = vmatprep.mubr.f32.mxu0 0.0
        %2218 = vmatmul.mubr.f32.gmra.mrb[0].mxu0 %v2028
        %v2219 = vpop.f32.mrb[0].mxu0
        %v2220 = vadd.f32 %v757, %v2219
        %v2221 = vpop.f32.mrb[0].mxu0
        %2222 = vmatprep.mubr.f32.mxu0 0.0
        %2223 = vmatmul.mubr.f32.gmra.mrb[0].mxu0 %v2031
        %v2224 = vpop.f32.mrb[0].mxu0
        %v2225 = vadd.f32 %v757, %v2224
        %v2226 = vpop.f32.mrb[0].mxu0
        %2227 = vmatprep.mubr.f32.mxu0 0.0
        %2228 = vmatmul.mubr.f32.gmra.mrb[0].mxu0 %v2034
        %v2229 = vpop.f32.mrb[0].mxu0
        %v2230 = vadd.f32 %v757, %v2229
        %v2231 = vpop.f32.mrb[0].mxu0
        %2232 = vmatprep.mubr.f32.mxu0 0.0
        %2233 = vmatmul.mubr.f32.gmra.mrb[0].mxu0 %v2037
        %v2234 = vpop.f32.mrb[0].mxu0
        %v2235 = vadd.f32 %v757, %v2234
        %v2236 = vpop.f32.mrb[0].mxu0
        %2237 = vmatprep.mubr.f32.mxu0 0.0
        %2238 = vmatmul.mubr.f32.gmra.mrb[0].mxu0 %v2040
        %v2239 = vpop.f32.mrb[0].mxu0
        %v2240 = vadd.f32 %v757, %v2239
        %v2241 = vpop.f32.mrb[0].mxu0
        %2242 = vmatprep.mubr.f32.mxu0 0.0
        %2243 = vmatmul.mubr.f32.gmra.mrb[0].mxu0 %v2043
        %v2244 = vpop.f32.mrb[0].mxu0
        %v2245 = vadd.f32 %v757, %v2244
        %v2246 = vpop.f32.mrb[0].mxu0
        %2247 = vmatprep.mubr.f32.mxu0 0.0
        %2248 = vmatmul.mubr.f32.gmra.mrb[0].mxu0 %v2046
        %v2249 = vpop.f32.mrb[0].mxu0
        %v2250 = vadd.f32 %v757, %v2249
        %v2251 = vpop.f32.mrb[0].mxu0
        %2252 = vmatprep.mubr.f32.mxu0 0.0
        %2253 = vmatmul.mubr.f32.gmra.mrb[0].mxu0 %v2049
        %v2254 = vpop.f32.mrb[0].mxu0
        %v2255 = vadd.f32 %v757, %v2254
        %v2256 = vpop.f32.mrb[0].mxu0
        %2257 = vmatprep.mubr.f32.mxu0 0.0
        %2258 = vmatmul.mubr.f32.gmra.mrb[0].mxu0 %v2052
        %v2259 = vpop.f32.mrb[0].mxu0
        %v2260 = vadd.f32 %v757, %v2259
        %v2261 = vpop.f32.mrb[0].mxu0
        %2262 = vmatprep.mubr.f32.mxu0 0.0
        %2263 = vmatmul.mubr.f32.gmra.mrb[0].mxu0 %v2055
        %v2264 = vpop.f32.mrb[0].mxu0
        %v2265 = vadd.f32 %v757, %v2264
        %v2266 = vpop.f32.mrb[0].mxu0
        %2267 = vmatprep.mubr.f32.mxu0 0.0
        %2268 = vmatmul.mubr.f32.gmra.mrb[0].mxu0 %v2058
        %v2269 = vpop.f32.mrb[0].mxu0
        %v2270 = vadd.f32 %v757, %v2269
        %v2271 = vpop.f32.mrb[0].mxu0
        %2272 = vmatprep.mubr.f32.mxu0 0.0
        %2273 = vmatmul.mubr.f32.gmra.mrb[0].mxu0 %v2061
        %v2274 = vpop.f32.mrb[0].mxu0
        %v2275 = vadd.f32 %v757, %v2274
        %v2276 = vpop.f32.mrb[0].mxu0
        %2277 = vmatprep.mubr.f32.mxu0 0.0
        %2278 = vmatmul.mubr.f32.gmra.mrb[0].mxu0 %v2064
        %v2279 = vpop.f32.mrb[0].mxu0
        %v2280 = vadd.f32 %v757, %v2279
        %v2281 = vpop.f32.mrb[0].mxu0
        %2282 = vmatprep.mubr.f32.mxu0 0.0
        %2283 = vmatmul.mubr.f32.gmra.mrb[0].mxu0 %v2067
        %v2284 = vpop.f32.mrb[0].mxu0
        %v2285 = vadd.f32 %v757, %v2284
        %v2286 = vpop.f32.mrb[0].mxu0
        %2287 = vmatprep.mubr.f32.mxu0 0.0
        %2288 = vmatmul.mubr.f32.gmra.mrb[0].mxu0 %v2070
        %v2289 = vpop.f32.mrb[0].mxu0
        %v2290 = vadd.f32 %v757, %v2289
        %v2291 = vpop.f32.mrb[0].mxu0
        %2292 = vmatprep.mubr.f32.mxu0 0.0
        %2293 = vmatmul.mubr.f32.gmra.mrb[0].mxu0 %v2073
        %v2294 = vpop.f32.mrb[0].mxu0
        %v2295 = vadd.f32 %v757, %v2294
        %v2296 = vpop.f32.mrb[0].mxu0
        %2297 = vmatprep.mubr.f32.mxu0 0.0
        %2298 = vmatmul.mubr.f32.gmra.mrb[0].mxu0 %v2076
        %v2299 = vpop.f32.mrb[0].mxu0
        %v2300 = vadd.f32 %v757, %v2299
        %v2301 = vpop.f32.mrb[0].mxu0
        %2302 = vdwg.mxu0
        %v2303 = vmax.f32 %v2145, 0.0
        %v2304 = vmax.f32 %v2150, 0.0
        %v2305 = vmax.f32 %v2155, 0.0
        %v2306 = vmax.f32 %v2160, 0.0
        %v2307 = vmax.f32 %v2165, 0.0
        %v2308 = vmax.f32 %v2170, 0.0
        %v2309 = vmax.f32 %v2175, 0.0
        %v2310 = vmax.f32 %v2180, 0.0
        %v2311 = vmax.f32 %v2185, 0.0
        %v2312 = vmax.f32 %v2190, 0.0
        %v2313 = vmax.f32 %v2195, 0.0
        %v2314 = vmax.f32 %v2200, 0.0
        %v2315 = vmax.f32 %v2205, 0.0
        %v2316 = vmax.f32 %v2210, 0.0
        %v2317 = vmax.f32 %v2215, 0.0
        %v2318 = vmax.f32 %v2220, 0.0
        %v2319 = vmax.f32 %v2225, 0.0
        %v2320 = vmax.f32 %v2230, 0.0
        %v2321 = vmax.f32 %v2235, 0.0
        %v2322 = vmax.f32 %v2240, 0.0
        %v2323 = vmax.f32 %v2245, 0.0
        %v2324 = vmax.f32 %v2250, 0.0
        %v2325 = vmax.f32 %v2255, 0.0
        %v2326 = vmax.f32 %v2260, 0.0
        %v2327 = vmax.f32 %v2265, 0.0
        %v2328 = vmax.f32 %v2270, 0.0
        %v2329 = vmax.f32 %v2275, 0.0
        %v2330 = vmax.f32 %v2280, 0.0
        %v2331 = vmax.f32 %v2285, 0.0
        %v2332 = vmax.f32 %v2290, 0.0
        %v2333 = vmax.f32 %v2295, 0.0
        %v2334 = vmax.f32 %v2300, 0.0
        %v2335 = vadd.f32 %v1917, %v2303
        %v2336 = vadd.f32 %v1918, %v2304
        %v2337 = vadd.f32 %v1919, %v2305
        %v2338 = vadd.f32 %v1920, %v2306
        %v2339 = vadd.f32 %v1921, %v2307
        %v2340 = vadd.f32 %v1922, %v2308
        %v2341 = vadd.f32 %v1923, %v2309
        %v2342 = vadd.f32 %v1924, %v2310
        %v2343 = vadd.f32 %v1925, %v2311
        %v2344 = vadd.f32 %v1926, %v2312
        %v2345 = vadd.f32 %v1927, %v2313
        %v2346 = vadd.f32 %v1928, %v2314
        %v2347 = vadd.f32 %v1929, %v2315
        %v2348 = vadd.f32 %v1930, %v2316
        %v2349 = vadd.f32 %v1931, %v2317
        %v2350 = vadd.f32 %v1932, %v2318
        %v2351 = vadd.f32 %v1933, %v2319
        %v2352 = vadd.f32 %v1934, %v2320
        %v2353 = vadd.f32 %v1935, %v2321
        %v2354 = vadd.f32 %v1936, %v2322
        %v2355 = vadd.f32 %v1937, %v2323
        %v2356 = vadd.f32 %v1938, %v2324
        %v2357 = vadd.f32 %v1939, %v2325
        %v2358 = vadd.f32 %v1940, %v2326
        %v2359 = vadd.f32 %v1941, %v2327
        %v2360 = vadd.f32 %v1942, %v2328
        %v2361 = vadd.f32 %v1943, %v2329
        %v2362 = vadd.f32 %v1944, %v2330
        %v2363 = vadd.f32 %v1945, %v2331
        %v2364 = vadd.f32 %v1946, %v2332
        %v2365 = vadd.f32 %v1947, %v2333
        %v2366 = vadd.f32 %v1948, %v2334
        %v2367 = vmul.f32 %v2335, 0.25
        %v2368 = vmul.f32 %v2336, 0.25
        %v2369 = vmul.f32 %v2337, 0.25
        %v2370 = vmul.f32 %v2338, 0.25
        %v2371 = vmul.f32 %v2339, 0.25
        %v2372 = vmul.f32 %v2340, 0.25
        %v2373 = vmul.f32 %v2341, 0.25
        %v2374 = vmul.f32 %v2342, 0.25
        %v2375 = vmul.f32 %v2343, 0.25
        %v2376 = vmul.f32 %v2344, 0.25
        %v2377 = vmul.f32 %v2345, 0.25
        %v2378 = vmul.f32 %v2346, 0.25
        %v2379 = vmul.f32 %v2347, 0.25
        %v2380 = vmul.f32 %v2348, 0.25
        %v2381 = vmul.f32 %v2349, 0.25
        %v2382 = vmul.f32 %v2350, 0.25
        %v2383 = vmul.f32 %v2351, 0.25
        %v2384 = vmul.f32 %v2352, 0.25
        %v2385 = vmul.f32 %v2353, 0.25
        %v2386 = vmul.f32 %v2354, 0.25
        %v2387 = vmul.f32 %v2355, 0.25
        %v2388 = vmul.f32 %v2356, 0.25
        %v2389 = vmul.f32 %v2357, 0.25
        %v2390 = vmul.f32 %v2358, 0.25
        %v2391 = vmul.f32 %v2359, 0.25
        %v2392 = vmul.f32 %v2360, 0.25
        %v2393 = vmul.f32 %v2361, 0.25
        %v2394 = vmul.f32 %v2362, 0.25
        %v2395 = vmul.f32 %v2363, 0.25
        %v2396 = vmul.f32 %v2364, 0.25
        %v2397 = vmul.f32 %v2365, 0.25
        %v2398 = vmul.f32 %v2366, 0.25
        %2399 = vst [vmem:[%s714] sm:$0xff] %v2367
        %2400 = vst [vmem:[%s714 + $0x8] sm:$0xff] %v2368
        %2401 = vst [vmem:[%s714 + $0x10] sm:$0xff] %v2369
        %2402 = vst [vmem:[%s714 + $0x18] sm:$0xff] %v2370
        %2403 = vst [vmem:[%s714 + $0x20] sm:$0xff] %v2371
        %2404 = vst [vmem:[%s714 + $0x28] sm:$0xff] %v2372
        %2405 = vst [vmem:[%s714 + $0x30] sm:$0xff] %v2373
        %2406 = vst [vmem:[%s714 + $0x38] sm:$0xff] %v2374
        %2407 = vst [vmem:[%s714 + $0x40] sm:$0xff] %v2375
        %2408 = vst [vmem:[%s714 + $0x48] sm:$0xff] %v2376
        %2409 = vst [vmem:[%s714 + $0x50] sm:$0xff] %v2377
        %2410 = vst [vmem:[%s714 + $0x58] sm:$0xff] %v2378
        %2411 = vst [vmem:[%s714 + $0x60] sm:$0xff] %v2379
        %2412 = vst [vmem:[%s714 + $0x68] sm:$0xff] %v2380
        %2413 = vst [vmem:[%s714 + $0x70] sm:$0xff] %v2381
        %2414 = vst [vmem:[%s714 + $0x78] sm:$0xff] %v2382
        %2415 = vst [vmem:[%s714 + $0x80] sm:$0xff] %v2383
        %2416 = vst [vmem:[%s714 + $0x88] sm:$0xff] %v2384
        %2417 = vst [vmem:[%s714 + $0x90] sm:$0xff] %v2385
        %2418 = vst [vmem:[%s714 + $0x98] sm:$0xff] %v2386
        %2419 = vst [vmem:[%s714 + $0xa0] sm:$0xff] %v2387
        %2420 = vst [vmem:[%s714 + $0xa8] sm:$0xff] %v2388
        %2421 = vst [vmem:[%s714 + $0xb0] sm:$0xff] %v2389
        %2422 = vst [vmem:[%s714 + $0xb8] sm:$0xff] %v2390
        %2423 = vst [vmem:[%s714 + $0xc0] sm:$0xff] %v2391
        %2424 = vst [vmem:[%s714 + $0xc8] sm:$0xff] %v2392
        %2425 = vst [vmem:[%s714 + $0xd0] sm:$0xff] %v2393
        %2426 = vst [vmem:[%s714 + $0xd8] sm:$0xff] %v2394
        %2427 = vst [vmem:[%s714 + $0xe0] sm:$0xff] %v2395
        %2428 = vst [vmem:[%s714 + $0xe8] sm:$0xff] %v2396
        %2429 = vst [vmem:[%s714 + $0xf0] sm:$0xff] %v2397
        %2430 = vst [vmem:[%s714 + $0xf8] sm:$0xff] %v2398
        %s2431 = smul.u32 32, %s14
        %p2432 = scmp.lt.s32.totalorder %s2431, 63
        %s2433 = scalar_select %p2432, %s2431, 63
        %s2434 = smul.addr %s2433, 8
        %s2435 = scalar_lea.vmem %s3, %s2434
        // Predicated region
        $region71: #{lenet5_forward.3} parent=65 // pred_check
          %p2436 = pneg %p100
        $region72: #{lenet5_forward.3} parent=65 // pred_check_branch
          %2438 = sbr.rel (%p2436) target = $region74
        $region73: #{lenet5_forward.3} parent=65 // pred_region
          %s2439 = smul.u32 32, %s14
        $region74: #{lenet5_forward.3} parent=65 // pred_fallthru
          _
      $region66: #{lenet5_forward.3} parent=5 // pred_fallthru
        _
      %p2440 = scmp.le.s32.totalorder 2, %s9
      // Predicated region
      $region75: #{lenet5_forward.3} parent=5 // pred_check
        %p2441 = pneg %p2440
      $region76: #{lenet5_forward.3} parent=5 // pred_check_branch
        %2443 = sbr.rel (%p2441) target = $region78
      $region77: #{lenet5_forward.3} parent=5 // pred_region
        %s2444 = ssub.s32 %s9, 2
        // Predicated region
        $region79: #{lenet5_forward.3} parent=77 // pred_check
          %p2445 = pneg %p106
        $region80: #{lenet5_forward.3} parent=77 // pred_check_branch
          %2447 = sbr.rel (%p2445) target = $region82
        $region81: #{lenet5_forward.3} parent=77 // pred_region
          %s2448 = smul.u32 32, %s15
          %p2449 = scmp.lt.s32.totalorder %s2448, 63
          %s2450 = scalar_select %p2449, %s2448, 63
          %s2451 = smul.addr %s2450, 8
          %s2452 = scalar_lea.vmem %s3, %s2451
        $region82: #{lenet5_forward.3} parent=77 // pred_fallthru
          _
      $region78: #{lenet5_forward.3} parent=5 // pred_fallthru
        _
    $region6: #{lenet5_forward.3} parent=1 // loop_footer
      %s13 = sadd.s32 1, %s9
    $region7: #{lenet5_forward.3} parent=1 // loop_footer_branch
      %8 = sbr.rel target = $region3
    $region8: #{lenet5_forward.3} parent=1 // loop_exit
      _

// kernel: lenet5_forward.4
$region0: #{lenet5_forward.4}
  #allocation0 [shape = 'u32[]', space=smem, size = 0x4, offset = 0x4, fixed_abs, tag = 'smem constant byte address 0x4 - core index']
  #allocation1 [shape = 'u32[144,128]{1,0:T(1,128)}', space=vmem, size = 0x12000, scoped, tag = 'internal scratch']
  %s0 = inlined_call_operand.vmem [shape: f32[4,56,152], index: 0, kind: input, shape index: {}]
  %s1 = inlined_call_operand.vmem [shape: f32[152,128], index: 1, kind: input, shape index: {}]
  %s2 = inlined_call_operand.vmem [shape: f32[1,128], index: 2, kind: input, shape index: {}]
  %s3 = inlined_call_operand.vmem [shape: f32[56,128], index: 3, kind: output, shape index: {}]
  %s4 = sld [smem:[#allocation0]]
  $region22: #{lenet5_forward.4} parent=0
    _
  %s6 = ssub.s32 1, %s4
  %s7 = scalar_select 0, %s6, %s4
  // Predicated region
  $region2: #{lenet5_forward.4} parent=0 // pred_check
    _
  $region3: #{lenet5_forward.4} parent=0 // pred_check_branch
    %9 = sbr.rel (0) target = $region5
  $region4: #{lenet5_forward.4} parent=0 // pred_region
    _
  $region5: #{lenet5_forward.4} parent=0 // pred_fallthru
    _
  // Predicated region
  $region6: #{lenet5_forward.4} parent=0 // pred_check
    _
  $region7: #{lenet5_forward.4} parent=0 // pred_check_branch
    %11 = sbr.rel (0) target = $region9
  $region8: #{lenet5_forward.4} parent=0 // pred_region
    _
  $region9: #{lenet5_forward.4} parent=0 // pred_fallthru
    _
  // Predicated region
  $region10: #{lenet5_forward.4} parent=0 // pred_check
    _
  $region11: #{lenet5_forward.4} parent=0 // pred_check_branch
    %13 = sbr.rel (0) target = $region13
  $region12: #{lenet5_forward.4} parent=0 // pred_region
    _
  $region13: #{lenet5_forward.4} parent=0 // pred_fallthru
    _
  %v14 = vld [vmem:[%s1] sm:$0xff]
  %v15 = vld [vmem:[%s1 + $0x8] sm:$0xff]
  %v16 = vld [vmem:[%s1 + $0x10] sm:$0xff]
  %v17 = vld [vmem:[%s1 + $0x18] sm:$0xff]
  %v18 = vld [vmem:[%s1 + $0x20] sm:$0xff]
  %v19 = vld [vmem:[%s1 + $0x28] sm:$0xff]
  %v20 = vld [vmem:[%s1 + $0x30] sm:$0xff]
  %v21 = vld [vmem:[%s1 + $0x38] sm:$0xff]
  %v22 = vld [vmem:[%s1 + $0x40] sm:$0xff]
  %v23 = vld [vmem:[%s1 + $0x48] sm:$0xff]
  %v24 = vld [vmem:[%s1 + $0x50] sm:$0xff]
  %v25 = vld [vmem:[%s1 + $0x58] sm:$0xff]
  %v26 = vld [vmem:[%s1 + $0x60] sm:$0xff]
  %v27 = vld [vmem:[%s1 + $0x68] sm:$0xff]
  %v28 = vld [vmem:[%s1 + $0x70] sm:$0xff]
  %v29 = vld [vmem:[%s1 + $0x78] sm:$0xff]
  %v30 = vld [vmem:[%s1 + $0x80] sm:$0xff]
  %v31 = vld [vmem:[%s1 + $0x88] sm:$0xff]
  %v32 = vld [vmem:[%s1 + $0x90] sm:$0xff]
  %v33 = vld [vmem:[%s2] sm:$0x1]
  %v34 = vld [vmem:[%s0] sm:$0xff]
  %v35 = vld [vmem:[%s0 + $0x8] sm:$0xff]
  %v36 = vld [vmem:[%s0 + $0x10] sm:$0xff]
  %v37 = vld [vmem:[%s0 + $0x18] sm:$0xff]
  %v38 = vld [vmem:[%s0 + $0x20] sm:$0xff]
  %v39 = vld [vmem:[%s0 + $0x28] sm:$0xff]
  %v40 = vld [vmem:[%s0 + $0x30] sm:$0xff]
  %v41 = vld [vmem:[%s0 + $0x38] sm:$0xff]
  %v42 = vld [vmem:[%s0 + $0x40] sm:$0xff]
  %v43 = vld [vmem:[%s0 + $0x48] sm:$0xff]
  %v44 = vld [vmem:[%s0 + $0x50] sm:$0xff]
  %v45 = vld [vmem:[%s0 + $0x58] sm:$0xff]
  %v46 = vld [vmem:[%s0 + $0x60] sm:$0xff]
  %v47 = vld [vmem:[%s0 + $0x68] sm:$0xff]
  %v49 = vlaneseq
  %v50 = vshrl.u32 %v49, 7
  %v51 = vsub.s32 0, %v50
  %v52 = vrot.slane %v33, %v51
  %vm54 = vcmask 195584
  %v56 = vsel %vm54, %v35, 0
  %v59 = vsel %vm54, %v37, 0
  %v62 = vsel %vm54, %v39, 0
  %v65 = vsel %vm54, %v41, 0
  %v68 = vsel %vm54, %v43, 0
  %v71 = vsel %vm54, %v45, 0
  %v74 = vsel %vm54, %v47, 0
  %76 = vmatprep.subr.mxu0 0.0
  %77 = vmatpush1.msra.mxu0 %v14
  %78 = vmatprep.subr.mxu0 0.0
  %79 = vmatpush1.msra.mxu0 %v15
  %80 = vmatprep.subr.mxu0 0.0
  %81 = vmatpush1.msra.mxu0 %v16
  %82 = vmatprep.subr.mxu0 0.0
  %83 = vmatpush1.msra.mxu0 %v17
  %84 = vmatprep.subr.mxu0 0.0
  %85 = vmatpush1.msra.mxu0 %v18
  %86 = vmatprep.subr.mxu0 0.0
  %87 = vmatpush1.msra.mxu0 %v19
  %88 = vmatprep.subr.mxu0 0.0
  %89 = vmatpush1.msra.mxu0 %v20
  %90 = vmatprep.subr.mxu0 0.0
  %91 = vmatpush1.msra.mxu0 %v21
  %92 = vmatprep.subr.mxu0 0.0
  %93 = vmatpush1.msra.mxu0 %v22
  %94 = vmatprep.subr.mxu0 0.0
  %95 = vmatpush1.msra.mxu0 %v23
  %96 = vmatprep.subr.mxu0 0.0
  %97 = vmatpush1.msra.mxu0 %v24
  %98 = vmatprep.subr.mxu0 0.0
  %99 = vmatpush1.msra.mxu0 %v25
  %100 = vmatprep.subr.mxu0 0.0
  %101 = vmatpush1.msra.mxu0 %v26
  %102 = vmatprep.subr.mxu0 0.0
  %103 = vmatpush1.msra.mxu0 %v27
  %104 = vmatprep.subr.mxu0 0.0
  %105 = vmatpush1.msra.mxu0 %v28
  %106 = vmatprep.subr.mxu0 0.0
  %107 = vmatpush1.msra.mxu0 %v29
  %108 = vmatprep.subr.mxu0 0.0
  %109 = vmatpush1.msra.mxu0 %v30
  %110 = vmatprep.subr.mxu0 0.0
  %111 = vmatpush1.msra.mxu0 %v31
  %112 = vmatprep.subr.mxu0 0.0
  %113 = vmatpush1.msra.mxu0 %v32
  %114 = vmatprep.subr.mxu0 0.0
  %115 = vmatpush1.msra.mxu0 0.0
  %116 = vmatprep.subr.mxu0 0.0
  %117 = vmatpush1.msra.mxu0 0.0
  %118 = vmatprep.subr.mxu0 0.0
  %119 = vmatpush1.msra.mxu0 0.0
  %120 = vmatprep.subr.mxu0 0.0
  %121 = vmatpush1.msra.mxu0 0.0
  %122 = vmatprep.subr.mxu0 0.0
  %123 = vmatpush1.msra.mxu0 0.0
  %124 = vmatprep.subr.mxu0 0.0
  %125 = vmatpush1.msra.mxu0 0.0
  %126 = vmatprep.subr.mxu0 0.0
  %127 = vmatpush1.msra.mxu0 0.0
  %128 = vmatprep.subr.mxu0 0.0
  %129 = vmatpush1.msra.mxu0 0.0
  %130 = vmatprep.subr.mxu0 0.0
  %131 = vmatpush1.msra.mxu0 0.0
  %132 = vmatprep.subr.mxu0 0.0
  %133 = vmatpush1.msra.mxu0 0.0
  %134 = vmatprep.subr.mxu0 0.0
  %135 = vmatpush1.msra.mxu0 0.0
  %136 = vmatprep.subr.mxu0 0.0
  %137 = vmatpush1.msra.mxu0 0.0
  %138 = vmatprep.subr.mxu0 0.0
  %139 = vmatpush1.msra.mxu0 0.0
  %140 = vmatprep.mubr.f32.mxu0 %v56
  %141 = vmatmul.mubr.f32.gmra.mrb[0].mxu0 %v34
  %v142 = vpop.f32.mrb[0].mxu0
  %v143 = vadd.f32 %v52, %v142
  %v144 = vpop.f32.mrb[0].mxu0
  %145 = vmatprep.mubr.f32.mxu0 %v59
  %146 = vmatmul.mubr.f32.gmra.mrb[0].mxu0 %v36
  %v147 = vpop.f32.mrb[0].mxu0
  %v148 = vadd.f32 %v52, %v147
  %v149 = vpop.f32.mrb[0].mxu0
  %150 = vmatprep.mubr.f32.mxu0 %v62
  %151 = vmatmul.mubr.f32.gmra.mrb[0].mxu0 %v38
  %v152 = vpop.f32.mrb[0].mxu0
  %v153 = vadd.f32 %v52, %v152
  %v154 = vpop.f32.mrb[0].mxu0
  %155 = vmatprep.mubr.f32.mxu0 %v65
  %156 = vmatmul.mubr.f32.gmra.mrb[0].mxu0 %v40
  %v157 = vpop.f32.mrb[0].mxu0
  %v158 = vadd.f32 %v52, %v157
  %v159 = vpop.f32.mrb[0].mxu0
  %160 = vmatprep.mubr.f32.mxu0 %v68
  %161 = vmatmul.mubr.f32.gmra.mrb[0].mxu0 %v42
  %v162 = vpop.f32.mrb[0].mxu0
  %v163 = vadd.f32 %v52, %v162
  %v164 = vpop.f32.mrb[0].mxu0
  %165 = vmatprep.mubr.f32.mxu0 %v71
  %166 = vmatmul.mubr.f32.gmra.mrb[0].mxu0 %v44
  %v167 = vpop.f32.mrb[0].mxu0
  %v168 = vadd.f32 %v52, %v167
  %v169 = vpop.f32.mrb[0].mxu0
  %170 = vmatprep.mubr.f32.mxu0 %v74
  %171 = vmatmul.mubr.f32.gmra.mrb[0].mxu0 %v46
  %v172 = vpop.f32.mrb[0].mxu0
  %v173 = vadd.f32 %v52, %v172
  %v174 = vpop.f32.mrb[0].mxu0
  %175 = vdwg.mxu0
  %v176 = vmax.f32 %v143, 0.0
  %v177 = vmax.f32 %v148, 0.0
  %v178 = vmax.f32 %v153, 0.0
  %v179 = vmax.f32 %v158, 0.0
  %v180 = vmax.f32 %v163, 0.0
  %v181 = vmax.f32 %v168, 0.0
  %v182 = vmax.f32 %v173, 0.0
  %s183 = scalar_lea.vmem %s0, 112
  %v184 = vld [vmem:[%s183] sm:$0xff]
  %v185 = vld [vmem:[%s183 + $0x8] sm:$0xff]
  %v186 = vld [vmem:[%s183 + $0x10] sm:$0xff]
  %v187 = vld [vmem:[%s183 + $0x18] sm:$0xff]
  %v188 = vld [vmem:[%s183 + $0x20] sm:$0xff]
  %v189 = vld [vmem:[%s183 + $0x28] sm:$0xff]
  %v190 = vld [vmem:[%s183 + $0x30] sm:$0xff]
  %v191 = vld [vmem:[%s183 + $0x38] sm:$0xff]
  %v192 = vld [vmem:[%s183 + $0x40] sm:$0xff]
  %v193 = vld [vmem:[%s183 + $0x48] sm:$0xff]
  %v194 = vld [vmem:[%s183 + $0x50] sm:$0xff]
  %v195 = vld [vmem:[%s183 + $0x58] sm:$0xff]
  %v196 = vld [vmem:[%s183 + $0x60] sm:$0xff]
  %v197 = vld [vmem:[%s183 + $0x68] sm:$0xff]
  %v199 = vsel %vm54, %v185, 0
  %v202 = vsel %vm54, %v187, 0
  %v205 = vsel %vm54, %v189, 0
  %v208 = vsel %vm54, %v191, 0
  %v211 = vsel %vm54, %v193, 0
  %v214 = vsel %vm54, %v195, 0
  %v217 = vsel %vm54, %v197, 0
  %219 = vmatprep.subr.mxu0 0.0
  %220 = vmatpush1.msra.mxu0 %v14
  %221 = vmatprep.subr.mxu0 0.0
  %222 = vmatpush1.msra.mxu0 %v15
  %223 = vmatprep.subr.mxu0 0.0
  %224 = vmatpush1.msra.mxu0 %v16
  %225 = vmatprep.subr.mxu0 0.0
  %226 = vmatpush1.msra.mxu0 %v17
  %227 = vmatprep.subr.mxu0 0.0
  %228 = vmatpush1.msra.mxu0 %v18
  %229 = vmatprep.subr.mxu0 0.0
  %230 = vmatpush1.msra.mxu0 %v19
  %231 = vmatprep.subr.mxu0 0.0
  %232 = vmatpush1.msra.mxu0 %v20
  %233 = vmatprep.subr.mxu0 0.0
  %234 = vmatpush1.msra.mxu0 %v21
  %235 = vmatprep.subr.mxu0 0.0
  %236 = vmatpush1.msra.mxu0 %v22
  %237 = vmatprep.subr.mxu0 0.0
  %238 = vmatpush1.msra.mxu0 %v23
  %239 = vmatprep.subr.mxu0 0.0
  %240 = vmatpush1.msra.mxu0 %v24
  %241 = vmatprep.subr.mxu0 0.0
  %242 = vmatpush1.msra.mxu0 %v25
  %243 = vmatprep.subr.mxu0 0.0
  %244 = vmatpush1.msra.mxu0 %v26
  %245 = vmatprep.subr.mxu0 0.0
  %246 = vmatpush1.msra.mxu0 %v27
  %247 = vmatprep.subr.mxu0 0.0
  %248 = vmatpush1.msra.mxu0 %v28
  %249 = vmatprep.subr.mxu0 0.0
  %250 = vmatpush1.msra.mxu0 %v29
  %251 = vmatprep.subr.mxu0 0.0
  %252 = vmatpush1.msra.mxu0 %v30
  %253 = vmatprep.subr.mxu0 0.0
  %254 = vmatpush1.msra.mxu0 %v31
  %255 = vmatprep.subr.mxu0 0.0
  %256 = vmatpush1.msra.mxu0 %v32
  %257 = vmatprep.subr.mxu0 0.0
  %258 = vmatpush1.msra.mxu0 0.0
  %259 = vmatprep.subr.mxu0 0.0
  %260 = vmatpush1.msra.mxu0 0.0
  %261 = vmatprep.subr.mxu0 0.0
  %262 = vmatpush1.msra.mxu0 0.0
  %263 = vmatprep.subr.mxu0 0.0
  %264 = vmatpush1.msra.mxu0 0.0
  %265 = vmatprep.subr.mxu0 0.0
  %266 = vmatpush1.msra.mxu0 0.0
  %267 = vmatprep.subr.mxu0 0.0
  %268 = vmatpush1.msra.mxu0 0.0
  %269 = vmatprep.subr.mxu0 0.0
  %270 = vmatpush1.msra.mxu0 0.0
  %271 = vmatprep.subr.mxu0 0.0
  %272 = vmatpush1.msra.mxu0 0.0
  %273 = vmatprep.subr.mxu0 0.0
  %274 = vmatpush1.msra.mxu0 0.0
  %275 = vmatprep.subr.mxu0 0.0
  %276 = vmatpush1.msra.mxu0 0.0
  %277 = vmatprep.subr.mxu0 0.0
  %278 = vmatpush1.msra.mxu0 0.0
  %279 = vmatprep.subr.mxu0 0.0
  %280 = vmatpush1.msra.mxu0 0.0
  %281 = vmatprep.subr.mxu0 0.0
  %282 = vmatpush1.msra.mxu0 0.0
  %283 = vmatprep.mubr.f32.mxu0 %v199
  %284 = vmatmul.mubr.f32.gmra.mrb[0].mxu0 %v184
  %v285 = vpop.f32.mrb[0].mxu0
  %v286 = vadd.f32 %v52, %v285
  %v287 = vpop.f32.mrb[0].mxu0
  %288 = vmatprep.mubr.f32.mxu0 %v202
  %289 = vmatmul.mubr.f32.gmra.mrb[0].mxu0 %v186
  %v290 = vpop.f32.mrb[0].mxu0
  %v291 = vadd.f32 %v52, %v290
  %v292 = vpop.f32.mrb[0].mxu0
  %293 = vmatprep.mubr.f32.mxu0 %v205
  %294 = vmatmul.mubr.f32.gmra.mrb[0].mxu0 %v188
  %v295 = vpop.f32.mrb[0].mxu0
  %v296 = vadd.f32 %v52, %v295
  %v297 = vpop.f32.mrb[0].mxu0
  %298 = vmatprep.mubr.f32.mxu0 %v208
  %299 = vmatmul.mubr.f32.gmra.mrb[0].mxu0 %v190
  %v300 = vpop.f32.mrb[0].mxu0
  %v301 = vadd.f32 %v52, %v300
  %v302 = vpop.f32.mrb[0].mxu0
  %303 = vmatprep.mubr.f32.mxu0 %v211
  %304 = vmatmul.mubr.f32.gmra.mrb[0].mxu0 %v192
  %v305 = vpop.f32.mrb[0].mxu0
  %v306 = vadd.f32 %v52, %v305
  %v307 = vpop.f32.mrb[0].mxu0
  %308 = vmatprep.mubr.f32.mxu0 %v214
  %309 = vmatmul.mubr.f32.gmra.mrb[0].mxu0 %v194
  %v310 = vpop.f32.mrb[0].mxu0
  %v311 = vadd.f32 %v52, %v310
  %v312 = vpop.f32.mrb[0].mxu0
  %313 = vmatprep.mubr.f32.mxu0 %v217
  %314 = vmatmul.mubr.f32.gmra.mrb[0].mxu0 %v196
  %v315 = vpop.f32.mrb[0].mxu0
  %v316 = vadd.f32 %v52, %v315
  %v317 = vpop.f32.mrb[0].mxu0
  %318 = vdwg.mxu0
  %v319 = vmax.f32 %v286, 0.0
  %v320 = vmax.f32 %v291, 0.0
  %v321 = vmax.f32 %v296, 0.0
  %v322 = vmax.f32 %v301, 0.0
  %v323 = vmax.f32 %v306, 0.0
  %v324 = vmax.f32 %v311, 0.0
  %v325 = vmax.f32 %v316, 0.0
  %v326 = vadd.f32 %v176, %v319
  %v327 = vadd.f32 %v177, %v320
  %v328 = vadd.f32 %v178, %v321
  %v329 = vadd.f32 %v179, %v322
  %v330 = vadd.f32 %v180, %v323
  %v331 = vadd.f32 %v181, %v324
  %v332 = vadd.f32 %v182, %v325
  %s333 = scalar_lea.vmem %s0, 224
  %v334 = vld [vmem:[%s333] sm:$0xff]
  %v335 = vld [vmem:[%s333 + $0x8] sm:$0xff]
  %v336 = vld [vmem:[%s333 + $0x10] sm:$0xff]
  %v337 = vld [vmem:[%s333 + $0x18] sm:$0xff]
  %v338 = vld [vmem:[%s333 + $0x20] sm:$0xff]
  %v339 = vld [vmem:[%s333 + $0x28] sm:$0xff]
  %v340 = vld [vmem:[%s333 + $0x30] sm:$0xff]
  %v341 = vld [vmem:[%s333 + $0x38] sm:$0xff]
  %v342 = vld [vmem:[%s333 + $0x40] sm:$0xff]
  %v343 = vld [vmem:[%s333 + $0x48] sm:$0xff]
  %v344 = vld [vmem:[%s333 + $0x50] sm:$0xff]
  %v345 = vld [vmem:[%s333 + $0x58] sm:$0xff]
  %v346 = vld [vmem:[%s333 + $0x60] sm:$0xff]
  %v347 = vld [vmem:[%s333 + $0x68] sm:$0xff]
  %v349 = vsel %vm54, %v335, 0
  %v352 = vsel %vm54, %v337, 0
  %v355 = vsel %vm54, %v339, 0
  %v358 = vsel %vm54, %v341, 0
  %v361 = vsel %vm54, %v343, 0
  %v364 = vsel %vm54, %v345, 0
  %v367 = vsel %vm54, %v347, 0
  %369 = vmatprep.subr.mxu0 0.0
  %370 = vmatpush1.msra.mxu0 %v14
  %371 = vmatprep.subr.mxu0 0.0
  %372 = vmatpush1.msra.mxu0 %v15
  %373 = vmatprep.subr.mxu0 0.0
  %374 = vmatpush1.msra.mxu0 %v16
  %375 = vmatprep.subr.mxu0 0.0
  %376 = vmatpush1.msra.mxu0 %v17
  %377 = vmatprep.subr.mxu0 0.0
  %378 = vmatpush1.msra.mxu0 %v18
  %379 = vmatprep.subr.mxu0 0.0
  %380 = vmatpush1.msra.mxu0 %v19
  %381 = vmatprep.subr.mxu0 0.0
  %382 = vmatpush1.msra.mxu0 %v20
  %383 = vmatprep.subr.mxu0 0.0
  %384 = vmatpush1.msra.mxu0 %v21
  %385 = vmatprep.subr.mxu0 0.0
  %386 = vmatpush1.msra.mxu0 %v22
  %387 = vmatprep.subr.mxu0 0.0
  %388 = vmatpush1.msra.mxu0 %v23
  %389 = vmatprep.subr.mxu0 0.0
  %390 = vmatpush1.msra.mxu0 %v24
  %391 = vmatprep.subr.mxu0 0.0
  %392 = vmatpush1.msra.mxu0 %v25
  %393 = vmatprep.subr.mxu0 0.0
  %394 = vmatpush1.msra.mxu0 %v26
  %395 = vmatprep.subr.mxu0 0.0
  %396 = vmatpush1.msra.mxu0 %v27
  %397 = vmatprep.subr.mxu0 0.0
  %398 = vmatpush1.msra.mxu0 %v28
  %399 = vmatprep.subr.mxu0 0.0
  %400 = vmatpush1.msra.mxu0 %v29
  %401 = vmatprep.subr.mxu0 0.0
  %402 = vmatpush1.msra.mxu0 %v30
  %403 = vmatprep.subr.mxu0 0.0
  %404 = vmatpush1.msra.mxu0 %v31
  %405 = vmatprep.subr.mxu0 0.0
  %406 = vmatpush1.msra.mxu0 %v32
  %407 = vmatprep.subr.mxu0 0.0
  %408 = vmatpush1.msra.mxu0 0.0
  %409 = vmatprep.subr.mxu0 0.0
  %410 = vmatpush1.msra.mxu0 0.0
  %411 = vmatprep.subr.mxu0 0.0
  %412 = vmatpush1.msra.mxu0 0.0
  %413 = vmatprep.subr.mxu0 0.0
  %414 = vmatpush1.msra.mxu0 0.0
  %415 = vmatprep.subr.mxu0 0.0
  %416 = vmatpush1.msra.mxu0 0.0
  %417 = vmatprep.subr.mxu0 0.0
  %418 = vmatpush1.msra.mxu0 0.0
  %419 = vmatprep.subr.mxu0 0.0
  %420 = vmatpush1.msra.mxu0 0.0
  %421 = vmatprep.subr.mxu0 0.0
  %422 = vmatpush1.msra.mxu0 0.0
  %423 = vmatprep.subr.mxu0 0.0
  %424 = vmatpush1.msra.mxu0 0.0
  %425 = vmatprep.subr.mxu0 0.0
  %426 = vmatpush1.msra.mxu0 0.0
  %427 = vmatprep.subr.mxu0 0.0
  %428 = vmatpush1.msra.mxu0 0.0
  %429 = vmatprep.subr.mxu0 0.0
  %430 = vmatpush1.msra.mxu0 0.0
  %431 = vmatprep.subr.mxu0 0.0
  %432 = vmatpush1.msra.mxu0 0.0
  %433 = vmatprep.mubr.f32.mxu0 %v349
  %434 = vmatmul.mubr.f32.gmra.mrb[0].mxu0 %v334
  %v435 = vpop.f32.mrb[0].mxu0
  %v436 = vadd.f32 %v52, %v435
  %v437 = vpop.f32.mrb[0].mxu0
  %438 = vmatprep.mubr.f32.mxu0 %v352
  %439 = vmatmul.mubr.f32.gmra.mrb[0].mxu0 %v336
  %v440 = vpop.f32.mrb[0].mxu0
  %v441 = vadd.f32 %v52, %v440
  %v442 = vpop.f32.mrb[0].mxu0
  %443 = vmatprep.mubr.f32.mxu0 %v355
  %444 = vmatmul.mubr.f32.gmra.mrb[0].mxu0 %v338
  %v445 = vpop.f32.mrb[0].mxu0
  %v446 = vadd.f32 %v52, %v445
  %v447 = vpop.f32.mrb[0].mxu0
  %448 = vmatprep.mubr.f32.mxu0 %v358
  %449 = vmatmul.mubr.f32.gmra.mrb[0].mxu0 %v340
  %v450 = vpop.f32.mrb[0].mxu0
  %v451 = vadd.f32 %v52, %v450
  %v452 = vpop.f32.mrb[0].mxu0
  %453 = vmatprep.mubr.f32.mxu0 %v361
  %454 = vmatmul.mubr.f32.gmra.mrb[0].mxu0 %v342
  %v455 = vpop.f32.mrb[0].mxu0
  %v456 = vadd.f32 %v52, %v455
  %v457 = vpop.f32.mrb[0].mxu0
  %458 = vmatprep.mubr.f32.mxu0 %v364
  %459 = vmatmul.mubr.f32.gmra.mrb[0].mxu0 %v344
  %v460 = vpop.f32.mrb[0].mxu0
  %v461 = vadd.f32 %v52, %v460
  %v462 = vpop.f32.mrb[0].mxu0
  %463 = vmatprep.mubr.f32.mxu0 %v367
  %464 = vmatmul.mubr.f32.gmra.mrb[0].mxu0 %v346
  %v465 = vpop.f32.mrb[0].mxu0
  %v466 = vadd.f32 %v52, %v465
  %v467 = vpop.f32.mrb[0].mxu0
  %468 = vdwg.mxu0
  %v469 = vmax.f32 %v436, 0.0
  %v470 = vmax.f32 %v441, 0.0
  %v471 = vmax.f32 %v446, 0.0
  %v472 = vmax.f32 %v451, 0.0
  %v473 = vmax.f32 %v456, 0.0
  %v474 = vmax.f32 %v461, 0.0
  %v475 = vmax.f32 %v466, 0.0
  %v476 = vadd.f32 %v326, %v469
  %v477 = vadd.f32 %v327, %v470
  %v478 = vadd.f32 %v328, %v471
  %v479 = vadd.f32 %v329, %v472
  %v480 = vadd.f32 %v330, %v473
  %v481 = vadd.f32 %v331, %v474
  %v482 = vadd.f32 %v332, %v475
  %s483 = scalar_lea.vmem %s0, 336
  %v484 = vld [vmem:[%s483] sm:$0xff]
  %v485 = vld [vmem:[%s483 + $0x8] sm:$0xff]
  %v486 = vld [vmem:[%s483 + $0x10] sm:$0xff]
  %v487 = vld [vmem:[%s483 + $0x18] sm:$0xff]
  %v488 = vld [vmem:[%s483 + $0x20] sm:$0xff]
  %v489 = vld [vmem:[%s483 + $0x28] sm:$0xff]
  %v490 = vld [vmem:[%s483 + $0x30] sm:$0xff]
  %v491 = vld [vmem:[%s483 + $0x38] sm:$0xff]
  %v492 = vld [vmem:[%s483 + $0x40] sm:$0xff]
  %v493 = vld [vmem:[%s483 + $0x48] sm:$0xff]
  %v494 = vld [vmem:[%s483 + $0x50] sm:$0xff]
  %v495 = vld [vmem:[%s483 + $0x58] sm:$0xff]
  %v496 = vld [vmem:[%s483 + $0x60] sm:$0xff]
  %v497 = vld [vmem:[%s483 + $0x68] sm:$0xff]
  %v499 = vsel %vm54, %v485, 0
  %v502 = vsel %vm54, %v487, 0
  %v505 = vsel %vm54, %v489, 0
  %v508 = vsel %vm54, %v491, 0
  %v511 = vsel %vm54, %v493, 0
  %v514 = vsel %vm54, %v495, 0
  %v517 = vsel %vm54, %v497, 0
  %519 = vmatprep.subr.mxu0 0.0
  %520 = vmatpush1.msra.mxu0 %v14
  %521 = vmatprep.subr.mxu0 0.0
  %522 = vmatpush1.msra.mxu0 %v15
  %523 = vmatprep.subr.mxu0 0.0
  %524 = vmatpush1.msra.mxu0 %v16
  %525 = vmatprep.subr.mxu0 0.0
  %526 = vmatpush1.msra.mxu0 %v17
  %527 = vmatprep.subr.mxu0 0.0
  %528 = vmatpush1.msra.mxu0 %v18
  %529 = vmatprep.subr.mxu0 0.0
  %530 = vmatpush1.msra.mxu0 %v19
  %531 = vmatprep.subr.mxu0 0.0
  %532 = vmatpush1.msra.mxu0 %v20
  %533 = vmatprep.subr.mxu0 0.0
  %534 = vmatpush1.msra.mxu0 %v21
  %535 = vmatprep.subr.mxu0 0.0
  %536 = vmatpush1.msra.mxu0 %v22
  %537 = vmatprep.subr.mxu0 0.0
  %538 = vmatpush1.msra.mxu0 %v23
  %539 = vmatprep.subr.mxu0 0.0
  %540 = vmatpush1.msra.mxu0 %v24
  %541 = vmatprep.subr.mxu0 0.0
  %542 = vmatpush1.msra.mxu0 %v25
  %543 = vmatprep.subr.mxu0 0.0
  %544 = vmatpush1.msra.mxu0 %v26
  %545 = vmatprep.subr.mxu0 0.0
  %546 = vmatpush1.msra.mxu0 %v27
  %547 = vmatprep.subr.mxu0 0.0
  %548 = vmatpush1.msra.mxu0 %v28
  %549 = vmatprep.subr.mxu0 0.0
  %550 = vmatpush1.msra.mxu0 %v29
  %551 = vmatprep.subr.mxu0 0.0
  %552 = vmatpush1.msra.mxu0 %v30
  %553 = vmatprep.subr.mxu0 0.0
  %554 = vmatpush1.msra.mxu0 %v31
  %555 = vmatprep.subr.mxu0 0.0
  %556 = vmatpush1.msra.mxu0 %v32
  %557 = vmatprep.subr.mxu0 0.0
  %558 = vmatpush1.msra.mxu0 0.0
  %559 = vmatprep.subr.mxu0 0.0
  %560 = vmatpush1.msra.mxu0 0.0
  %561 = vmatprep.subr.mxu0 0.0
  %562 = vmatpush1.msra.mxu0 0.0
  %563 = vmatprep.subr.mxu0 0.0
  %564 = vmatpush1.msra.mxu0 0.0
  %565 = vmatprep.subr.mxu0 0.0
  %566 = vmatpush1.msra.mxu0 0.0
  %567 = vmatprep.subr.mxu0 0.0
  %568 = vmatpush1.msra.mxu0 0.0
  %569 = vmatprep.subr.mxu0 0.0
  %570 = vmatpush1.msra.mxu0 0.0
  %571 = vmatprep.subr.mxu0 0.0
  %572 = vmatpush1.msra.mxu0 0.0
  %573 = vmatprep.subr.mxu0 0.0
  %574 = vmatpush1.msra.mxu0 0.0
  %575 = vmatprep.subr.mxu0 0.0
  %576 = vmatpush1.msra.mxu0 0.0
  %577 = vmatprep.subr.mxu0 0.0
  %578 = vmatpush1.msra.mxu0 0.0
  %579 = vmatprep.subr.mxu0 0.0
  %580 = vmatpush1.msra.mxu0 0.0
  %581 = vmatprep.subr.mxu0 0.0
  %582 = vmatpush1.msra.mxu0 0.0
  %583 = vmatprep.mubr.f32.mxu0 %v499
  %584 = vmatmul.mubr.f32.gmra.mrb[0].mxu0 %v484
  %v585 = vpop.f32.mrb[0].mxu0
  %v586 = vadd.f32 %v52, %v585
  %v587 = vpop.f32.mrb[0].mxu0
  %588 = vmatprep.mubr.f32.mxu0 %v502
  %589 = vmatmul.mubr.f32.gmra.mrb[0].mxu0 %v486
  %v590 = vpop.f32.mrb[0].mxu0
  %v591 = vadd.f32 %v52, %v590
  %v592 = vpop.f32.mrb[0].mxu0
  %593 = vmatprep.mubr.f32.mxu0 %v505
  %594 = vmatmul.mubr.f32.gmra.mrb[0].mxu0 %v488
  %v595 = vpop.f32.mrb[0].mxu0
  %v596 = vadd.f32 %v52, %v595
  %v597 = vpop.f32.mrb[0].mxu0
  %598 = vmatprep.mubr.f32.mxu0 %v508
  %599 = vmatmul.mubr.f32.gmra.mrb[0].mxu0 %v490
  %v600 = vpop.f32.mrb[0].mxu0
  %v601 = vadd.f32 %v52, %v600
  %v602 = vpop.f32.mrb[0].mxu0
  %603 = vmatprep.mubr.f32.mxu0 %v511
  %604 = vmatmul.mubr.f32.gmra.mrb[0].mxu0 %v492
  %v605 = vpop.f32.mrb[0].mxu0
  %v606 = vadd.f32 %v52, %v605
  %v607 = vpop.f32.mrb[0].mxu0
  %608 = vmatprep.mubr.f32.mxu0 %v514
  %609 = vmatmul.mubr.f32.gmra.mrb[0].mxu0 %v494
  %v610 = vpop.f32.mrb[0].mxu0
  %v611 = vadd.f32 %v52, %v610
  %v612 = vpop.f32.mrb[0].mxu0
  %613 = vmatprep.mubr.f32.mxu0 %v517
  %614 = vmatmul.mubr.f32.gmra.mrb[0].mxu0 %v496
  %v615 = vpop.f32.mrb[0].mxu0
  %v616 = vadd.f32 %v52, %v615
  %v617 = vpop.f32.mrb[0].mxu0
  %618 = vdwg.mxu0
  %v619 = vmax.f32 %v586, 0.0
  %v620 = vmax.f32 %v591, 0.0
  %v621 = vmax.f32 %v596, 0.0
  %v622 = vmax.f32 %v601, 0.0
  %v623 = vmax.f32 %v606, 0.0
  %v624 = vmax.f32 %v611, 0.0
  %v625 = vmax.f32 %v616, 0.0
  %v626 = vadd.f32 %v476, %v619
  %v627 = vadd.f32 %v477, %v620
  %v628 = vadd.f32 %v478, %v621
  %v629 = vadd.f32 %v479, %v622
  %v630 = vadd.f32 %v480, %v623
  %v631 = vadd.f32 %v481, %v624
  %v632 = vadd.f32 %v482, %v625
  %v633 = vmul.f32 %v626, 0.25
  %v634 = vmul.f32 %v627, 0.25
  %v635 = vmul.f32 %v628, 0.25
  %v636 = vmul.f32 %v629, 0.25
  %v637 = vmul.f32 %v630, 0.25
  %v638 = vmul.f32 %v631, 0.25
  %v639 = vmul.f32 %v632, 0.25
  %640 = vst [vmem:[%s3] sm:$0xff] %v633
  %641 = vst [vmem:[%s3 + $0x8] sm:$0xff] %v634
  %642 = vst [vmem:[%s3 + $0x10] sm:$0xff] %v635
  %643 = vst [vmem:[%s3 + $0x18] sm:$0xff] %v636
  %644 = vst [vmem:[%s3 + $0x20] sm:$0xff] %v637
  %645 = vst [vmem:[%s3 + $0x28] sm:$0xff] %v638
  %646 = vst [vmem:[%s3 + $0x30] sm:$0xff] %v639
  // Predicated region
  $region14: #{lenet5_forward.4} parent=0 // pred_check
    _
  $region15: #{lenet5_forward.4} parent=0 // pred_check_branch
    %648 = sbr.rel (0) target = $region17
  $region16: #{lenet5_forward.4} parent=0 // pred_region
    _
  $region17: #{lenet5_forward.4} parent=0 // pred_fallthru
    _
  // Predicated region
  $region18: #{lenet5_forward.4} parent=0 // pred_check
    _
  $region19: #{lenet5_forward.4} parent=0 // pred_check_branch
    %650 = sbr.rel (0) target = $region21
  $region20: #{lenet5_forward.4} parent=0 // pred_region
    _
  $region21: #{lenet5_forward.4} parent=0 // pred_fallthru
    _

// kernel: lenet5_forward.5
$region0: #{lenet5_forward.5}
  #allocation0 [shape = 'u32[]', space=smem, size = 0x4, offset = 0x4, fixed_abs, tag = 'smem constant byte address 0x4 - core index']
  #allocation1 [shape = 'u32[144,128]{1,0:T(1,128)}', space=vmem, size = 0x12000, scoped, tag = 'internal scratch']
  %s0 = inlined_call_operand.vmem [shape: f32[8,400], index: 0, kind: input, shape index: {}]
  %s1 = inlined_call_operand.vmem [shape: f32[400,128], index: 1, kind: input, shape index: {}]
  %s2 = inlined_call_operand.vmem [shape: f32[1,128], index: 2, kind: input, shape index: {}]
  %s3 = inlined_call_operand.vmem [shape: f32[128,128], index: 3, kind: input, shape index: {}]
  %s4 = inlined_call_operand.vmem [shape: f32[1,128], index: 4, kind: input, shape index: {}]
  %s5 = inlined_call_operand.vmem [shape: f32[128,128], index: 5, kind: input, shape index: {}]
  %s6 = inlined_call_operand.vmem [shape: f32[1,128], index: 6, kind: input, shape index: {}]
  %s7 = inlined_call_operand.vmem [shape: f32[8,128], index: 7, kind: output, shape index: {}]
  %s8 = sld [smem:[#allocation0]]
  $region38: #{lenet5_forward.5} parent=0
    _
  %s10 = ssub.s32 1, %s8
  %s11 = scalar_select 0, %s10, %s8
  // Predicated region
  $region2: #{lenet5_forward.5} parent=0 // pred_check
    _
  $region3: #{lenet5_forward.5} parent=0 // pred_check_branch
    %13 = sbr.rel (0) target = $region5
  $region4: #{lenet5_forward.5} parent=0 // pred_region
    _
  $region5: #{lenet5_forward.5} parent=0 // pred_fallthru
    _
  // Predicated region
  $region6: #{lenet5_forward.5} parent=0 // pred_check
    _
  $region7: #{lenet5_forward.5} parent=0 // pred_check_branch
    %15 = sbr.rel (0) target = $region9
  $region8: #{lenet5_forward.5} parent=0 // pred_region
    _
  $region9: #{lenet5_forward.5} parent=0 // pred_fallthru
    _
  // Predicated region
  $region10: #{lenet5_forward.5} parent=0 // pred_check
    _
  $region11: #{lenet5_forward.5} parent=0 // pred_check_branch
    %17 = sbr.rel (0) target = $region13
  $region12: #{lenet5_forward.5} parent=0 // pred_region
    _
  $region13: #{lenet5_forward.5} parent=0 // pred_fallthru
    _
  // Predicated region
  $region14: #{lenet5_forward.5} parent=0 // pred_check
    _
  $region15: #{lenet5_forward.5} parent=0 // pred_check_branch
    %19 = sbr.rel (0) target = $region17
  $region16: #{lenet5_forward.5} parent=0 // pred_region
    _
  $region17: #{lenet5_forward.5} parent=0 // pred_fallthru
    _
  // Predicated region
  $region18: #{lenet5_forward.5} parent=0 // pred_check
    _
  $region19: #{lenet5_forward.5} parent=0 // pred_check_branch
    %21 = sbr.rel (0) target = $region21
  $region20: #{lenet5_forward.5} parent=0 // pred_region
    _
  $region21: #{lenet5_forward.5} parent=0 // pred_fallthru
    _
  // Predicated region
  $region22: #{lenet5_forward.5} parent=0 // pred_check
    _
  $region23: #{lenet5_forward.5} parent=0 // pred_check_branch
    %23 = sbr.rel (0) target = $region25
  $region24: #{lenet5_forward.5} parent=0 // pred_region
    _
  $region25: #{lenet5_forward.5} parent=0 // pred_fallthru
    _
  // Predicated region
  $region26: #{lenet5_forward.5} parent=0 // pred_check
    _
  $region27: #{lenet5_forward.5} parent=0 // pred_check_branch
    %25 = sbr.rel (0) target = $region29
  $region28: #{lenet5_forward.5} parent=0 // pred_region
    _
  $region29: #{lenet5_forward.5} parent=0 // pred_fallthru
    _
  %v26 = vld [vmem:[%s0] sm:$0xff]
  %v27 = vld [vmem:[%s0 + $0x8] sm:$0xff]
  %v28 = vld [vmem:[%s0 + $0x10] sm:$0xff]
  %v29 = vld [vmem:[%s0 + $0x18] sm:$0xff]
  %v30 = vld [vmem:[%s1] sm:$0xff]
  %v31 = vld [vmem:[%s1 + $0x8] sm:$0xff]
  %v32 = vld [vmem:[%s1 + $0x10] sm:$0xff]
  %v33 = vld [vmem:[%s1 + $0x18] sm:$0xff]
  %v34 = vld [vmem:[%s1 + $0x20] sm:$0xff]
  %v35 = vld [vmem:[%s1 + $0x28] sm:$0xff]
  %v36 = vld [vmem:[%s1 + $0x30] sm:$0xff]
  %v37 = vld [vmem:[%s1 + $0x38] sm:$0xff]
  %v38 = vld [vmem:[%s1 + $0x40] sm:$0xff]
  %v39 = vld [vmem:[%s1 + $0x48] sm:$0xff]
  %v40 = vld [vmem:[%s1 + $0x50] sm:$0xff]
  %v41 = vld [vmem:[%s1 + $0x58] sm:$0xff]
  %v42 = vld [vmem:[%s1 + $0x60] sm:$0xff]
  %v43 = vld [vmem:[%s1 + $0x68] sm:$0xff]
  %v44 = vld [vmem:[%s1 + $0x70] sm:$0xff]
  %v45 = vld [vmem:[%s1 + $0x78] sm:$0xff]
  %v46 = vld [vmem:[%s1 + $0x80] sm:$0xff]
  %v47 = vld [vmem:[%s1 + $0x88] sm:$0xff]
  %v48 = vld [vmem:[%s1 + $0x90] sm:$0xff]
  %v49 = vld [vmem:[%s1 + $0x98] sm:$0xff]
  %v50 = vld [vmem:[%s1 + $0xa0] sm:$0xff]
  %v51 = vld [vmem:[%s1 + $0xa8] sm:$0xff]
  %v52 = vld [vmem:[%s1 + $0xb0] sm:$0xff]
  %v53 = vld [vmem:[%s1 + $0xb8] sm:$0xff]
  %v54 = vld [vmem:[%s1 + $0xc0] sm:$0xff]
  %v55 = vld [vmem:[%s1 + $0xc8] sm:$0xff]
  %v56 = vld [vmem:[%s1 + $0xd0] sm:$0xff]
  %v57 = vld [vmem:[%s1 + $0xd8] sm:$0xff]
  %v58 = vld [vmem:[%s1 + $0xe0] sm:$0xff]
  %v59 = vld [vmem:[%s1 + $0xe8] sm:$0xff]
  %v60 = vld [vmem:[%s1 + $0xf0] sm:$0xff]
  %v61 = vld [vmem:[%s1 + $0xf8] sm:$0xff]
  %v62 = vld [vmem:[%s1 + $0x100] sm:$0xff]
  %v63 = vld [vmem:[%s1 + $0x108] sm:$0xff]
  %v64 = vld [vmem:[%s1 + $0x110] sm:$0xff]
  %v65 = vld [vmem:[%s1 + $0x118] sm:$0xff]
  %v66 = vld [vmem:[%s1 + $0x120] sm:$0xff]
  %v67 = vld [vmem:[%s1 + $0x128] sm:$0xff]
  %v68 = vld [vmem:[%s1 + $0x130] sm:$0xff]
  %v69 = vld [vmem:[%s1 + $0x138] sm:$0xff]
  %v70 = vld [vmem:[%s1 + $0x140] sm:$0xff]
  %v71 = vld [vmem:[%s1 + $0x148] sm:$0xff]
  %v72 = vld [vmem:[%s1 + $0x150] sm:$0xff]
  %v73 = vld [vmem:[%s1 + $0x158] sm:$0xff]
  %v74 = vld [vmem:[%s1 + $0x160] sm:$0xff]
  %v75 = vld [vmem:[%s1 + $0x168] sm:$0xff]
  %v76 = vld [vmem:[%s1 + $0x170] sm:$0xff]
  %v77 = vld [vmem:[%s1 + $0x178] sm:$0xff]
  %v78 = vld [vmem:[%s1 + $0x180] sm:$0xff]
  %v79 = vld [vmem:[%s1 + $0x188] sm:$0xff]
  %v80 = vld [vmem:[%s2] sm:$0x1]
  %v82 = vlaneseq
  %v83 = vshrl.u32 %v82, 7
  %v84 = vsub.s32 0, %v83
  %v85 = vrot.slane %v80, %v84
  %vm87 = vcmask 130048
  %v89 = vsel %vm87, %v29, 0
  %91 = vmatprep.subr.mxu0 0.0
  %92 = vmatpush1.msra.mxu0 %v30
  %93 = vmatprep.subr.mxu0 0.0
  %94 = vmatpush1.msra.mxu0 %v31
  %95 = vmatprep.subr.mxu0 0.0
  %96 = vmatpush1.msra.mxu0 %v32
  %97 = vmatprep.subr.mxu0 0.0
  %98 = vmatpush1.msra.mxu0 %v33
  %99 = vmatprep.subr.mxu0 0.0
  %100 = vmatpush1.msra.mxu0 %v34
  %101 = vmatprep.subr.mxu0 0.0
  %102 = vmatpush1.msra.mxu0 %v35
  %103 = vmatprep.subr.mxu0 0.0
  %104 = vmatpush1.msra.mxu0 %v36
  %105 = vmatprep.subr.mxu0 0.0
  %106 = vmatpush1.msra.mxu0 %v37
  %107 = vmatprep.subr.mxu0 0.0
  %108 = vmatpush1.msra.mxu0 %v38
  %109 = vmatprep.subr.mxu0 0.0
  %110 = vmatpush1.msra.mxu0 %v39
  %111 = vmatprep.subr.mxu0 0.0
  %112 = vmatpush1.msra.mxu0 %v40
  %113 = vmatprep.subr.mxu0 0.0
  %114 = vmatpush1.msra.mxu0 %v41
  %115 = vmatprep.subr.mxu0 0.0
  %116 = vmatpush1.msra.mxu0 %v42
  %117 = vmatprep.subr.mxu0 0.0
  %118 = vmatpush1.msra.mxu0 %v43
  %119 = vmatprep.subr.mxu0 0.0
  %120 = vmatpush1.msra.mxu0 %v44
  %121 = vmatprep.subr.mxu0 0.0
  %122 = vmatpush1.msra.mxu0 %v45
  %123 = vmatprep.subr.mxu0 0.0
  %124 = vmatpush1.msra.mxu0 %v46
  %125 = vmatprep.subr.mxu0 0.0
  %126 = vmatpush1.msra.mxu0 %v47
  %127 = vmatprep.subr.mxu0 0.0
  %128 = vmatpush1.msra.mxu0 %v48
  %129 = vmatprep.subr.mxu0 0.0
  %130 = vmatpush1.msra.mxu0 %v49
  %131 = vmatprep.subr.mxu0 0.0
  %132 = vmatpush1.msra.mxu0 %v50
  %133 = vmatprep.subr.mxu0 0.0
  %134 = vmatpush1.msra.mxu0 %v51
  %135 = vmatprep.subr.mxu0 0.0
  %136 = vmatpush1.msra.mxu0 %v52
  %137 = vmatprep.subr.mxu0 0.0
  %138 = vmatpush1.msra.mxu0 %v53
  %139 = vmatprep.subr.mxu0 0.0
  %140 = vmatpush1.msra.mxu0 %v54
  %141 = vmatprep.subr.mxu0 0.0
  %142 = vmatpush1.msra.mxu0 %v55
  %143 = vmatprep.subr.mxu0 0.0
  %144 = vmatpush1.msra.mxu0 %v56
  %145 = vmatprep.subr.mxu0 0.0
  %146 = vmatpush1.msra.mxu0 %v57
  %147 = vmatprep.subr.mxu0 0.0
  %148 = vmatpush1.msra.mxu0 %v58
  %149 = vmatprep.subr.mxu0 0.0
  %150 = vmatpush1.msra.mxu0 %v59
  %151 = vmatprep.subr.mxu0 0.0
  %152 = vmatpush1.msra.mxu0 %v60
  %153 = vmatprep.subr.mxu0 0.0
  %154 = vmatpush1.msra.mxu0 %v61
  %155 = vmatprep.mubr.f32.mxu0 %v27
  %156 = vmatmul.mubr.f32.gmra.mrb[0].mxu0 %v26
  %v157 = vpop.f32.mrb[0].mxu0
  %v158 = vadd.f32 %v85, %v157
  %v159 = vpop.f32.mrb[0].mxu0
  %160 = vdwg.mxu0
  %161 = vmatprep.subr.mxu0 0.0
  %162 = vmatpush1.msra.mxu0 %v62
  %163 = vmatprep.subr.mxu0 0.0
  %164 = vmatpush1.msra.mxu0 %v63
  %165 = vmatprep.subr.mxu0 0.0
  %166 = vmatpush1.msra.mxu0 %v64
  %167 = vmatprep.subr.mxu0 0.0
  %168 = vmatpush1.msra.mxu0 %v65
  %169 = vmatprep.subr.mxu0 0.0
  %170 = vmatpush1.msra.mxu0 %v66
  %171 = vmatprep.subr.mxu0 0.0
  %172 = vmatpush1.msra.mxu0 %v67
  %173 = vmatprep.subr.mxu0 0.0
  %174 = vmatpush1.msra.mxu0 %v68
  %175 = vmatprep.subr.mxu0 0.0
  %176 = vmatpush1.msra.mxu0 %v69
  %177 = vmatprep.subr.mxu0 0.0
  %178 = vmatpush1.msra.mxu0 %v70
  %179 = vmatprep.subr.mxu0 0.0
  %180 = vmatpush1.msra.mxu0 %v71
  %181 = vmatprep.subr.mxu0 0.0
  %182 = vmatpush1.msra.mxu0 %v72
  %183 = vmatprep.subr.mxu0 0.0
  %184 = vmatpush1.msra.mxu0 %v73
  %185 = vmatprep.subr.mxu0 0.0
  %186 = vmatpush1.msra.mxu0 %v74
  %187 = vmatprep.subr.mxu0 0.0
  %188 = vmatpush1.msra.mxu0 %v75
  %189 = vmatprep.subr.mxu0 0.0
  %190 = vmatpush1.msra.mxu0 %v76
  %191 = vmatprep.subr.mxu0 0.0
  %192 = vmatpush1.msra.mxu0 %v77
  %193 = vmatprep.subr.mxu0 0.0
  %194 = vmatpush1.msra.mxu0 %v78
  %195 = vmatprep.subr.mxu0 0.0
  %196 = vmatpush1.msra.mxu0 %v79
  %197 = vmatprep.subr.mxu0 0.0
  %198 = vmatpush1.msra.mxu0 0.0
  %199 = vmatprep.subr.mxu0 0.0
  %200 = vmatpush1.msra.mxu0 0.0
  %201 = vmatprep.subr.mxu0 0.0
  %202 = vmatpush1.msra.mxu0 0.0
  %203 = vmatprep.subr.mxu0 0.0
  %204 = vmatpush1.msra.mxu0 0.0
  %205 = vmatprep.subr.mxu0 0.0
  %206 = vmatpush1.msra.mxu0 0.0
  %207 = vmatprep.subr.mxu0 0.0
  %208 = vmatpush1.msra.mxu0 0.0
  %209 = vmatprep.subr.mxu0 0.0
  %210 = vmatpush1.msra.mxu0 0.0
  %211 = vmatprep.subr.mxu0 0.0
  %212 = vmatpush1.msra.mxu0 0.0
  %213 = vmatprep.subr.mxu0 0.0
  %214 = vmatpush1.msra.mxu0 0.0
  %215 = vmatprep.subr.mxu0 0.0
  %216 = vmatpush1.msra.mxu0 0.0
  %217 = vmatprep.subr.mxu0 0.0
  %218 = vmatpush1.msra.mxu0 0.0
  %219 = vmatprep.subr.mxu0 0.0
  %220 = vmatpush1.msra.mxu0 0.0
  %221 = vmatprep.subr.mxu0 0.0
  %222 = vmatpush1.msra.mxu0 0.0
  %223 = vmatprep.subr.mxu0 0.0
  %224 = vmatpush1.msra.mxu0 0.0
  %225 = vmatprep.mubr.f32.mxu0 %v89
  %226 = vmatmul.mubr.f32.gmra.mrb[0].mxu0 %v28
  %v227 = vpop.f32.mrb[0].mxu0
  %v228 = vadd.f32 %v158, %v227
  %v229 = vpop.f32.mrb[0].mxu0
  %230 = vdwg.mxu0
  %v231 = vmax.f32 %v228, 0.0
  %v232 = vld [vmem:[%s3] sm:$0xff]
  %v233 = vld [vmem:[%s3 + $0x8] sm:$0xff]
  %v234 = vld [vmem:[%s3 + $0x10] sm:$0xff]
  %v235 = vld [vmem:[%s3 + $0x18] sm:$0xff]
  %v236 = vld [vmem:[%s3 + $0x20] sm:$0xff]
  %v237 = vld [vmem:[%s3 + $0x28] sm:$0xff]
  %v238 = vld [vmem:[%s3 + $0x30] sm:$0xff]
  %v239 = vld [vmem:[%s3 + $0x38] sm:$0xff]
  %v240 = vld [vmem:[%s3 + $0x40] sm:$0xff]
  %v241 = vld [vmem:[%s3 + $0x48] sm:$0xff]
  %v242 = vld [vmem:[%s3 + $0x50] sm:$0xff]
  %v243 = vld [vmem:[%s3 + $0x58] sm:$0xff]
  %v244 = vld [vmem:[%s3 + $0x60] sm:$0xff]
  %v245 = vld [vmem:[%s3 + $0x68] sm:$0xff]
  %v246 = vld [vmem:[%s3 + $0x70] sm:$0xff]
  %v247 = vld [vmem:[%s3 + $0x78] sm:$0xff]
  %v248 = vld [vmem:[%s4] sm:$0x1]
  %v250 = vlaneseq
  %v251 = vshrl.u32 %v250, 7
  %v252 = vsub.s32 0, %v251
  %v253 = vrot.slane %v248, %v252
  %255 = vmatprep.subr.mxu0 0.0
  %256 = vmatpush1.msra.mxu0 %v232
  %257 = vmatprep.subr.mxu0 0.0
  %258 = vmatpush1.msra.mxu0 %v233
  %259 = vmatprep.subr.mxu0 0.0
  %260 = vmatpush1.msra.mxu0 %v234
  %261 = vmatprep.subr.mxu0 0.0
  %262 = vmatpush1.msra.mxu0 %v235
  %263 = vmatprep.subr.mxu0 0.0
  %264 = vmatpush1.msra.mxu0 %v236
  %265 = vmatprep.subr.mxu0 0.0
  %266 = vmatpush1.msra.mxu0 %v237
  %267 = vmatprep.subr.mxu0 0.0
  %268 = vmatpush1.msra.mxu0 %v238
  %269 = vmatprep.subr.mxu0 0.0
  %270 = vmatpush1.msra.mxu0 %v239
  %271 = vmatprep.subr.mxu0 0.0
  %272 = vmatpush1.msra.mxu0 %v240
  %273 = vmatprep.subr.mxu0 0.0
  %274 = vmatpush1.msra.mxu0 %v241
  %275 = vmatprep.subr.mxu0 0.0
  %276 = vmatpush1.msra.mxu0 %v242
  %277 = vmatprep.subr.mxu0 0.0
  %278 = vmatpush1.msra.mxu0 %v243
  %279 = vmatprep.subr.mxu0 0.0
  %280 = vmatpush1.msra.mxu0 %v244
  %281 = vmatprep.subr.mxu0 0.0
  %282 = vmatpush1.msra.mxu0 %v245
  %283 = vmatprep.subr.mxu0 0.0
  %284 = vmatpush1.msra.mxu0 %v246
  %285 = vmatprep.subr.mxu0 0.0
  %286 = vmatpush1.msra.mxu0 %v247
  %287 = vmatprep.subr.mxu0 0.0
  %288 = vmatpush1.msra.mxu0 0.0
  %289 = vmatprep.subr.mxu0 0.0
  %290 = vmatpush1.msra.mxu0 0.0
  %291 = vmatprep.subr.mxu0 0.0
  %292 = vmatpush1.msra.mxu0 0.0
  %293 = vmatprep.subr.mxu0 0.0
  %294 = vmatpush1.msra.mxu0 0.0
  %295 = vmatprep.subr.mxu0 0.0
  %296 = vmatpush1.msra.mxu0 0.0
  %297 = vmatprep.subr.mxu0 0.0
  %298 = vmatpush1.msra.mxu0 0.0
  %299 = vmatprep.subr.mxu0 0.0
  %300 = vmatpush1.msra.mxu0 0.0
  %301 = vmatprep.subr.mxu0 0.0
  %302 = vmatpush1.msra.mxu0 0.0
  %303 = vmatprep.subr.mxu0 0.0
  %304 = vmatpush1.msra.mxu0 0.0
  %305 = vmatprep.subr.mxu0 0.0
  %306 = vmatpush1.msra.mxu0 0.0
  %307 = vmatprep.subr.mxu0 0.0
  %308 = vmatpush1.msra.mxu0 0.0
  %309 = vmatprep.subr.mxu0 0.0
  %310 = vmatpush1.msra.mxu0 0.0
  %311 = vmatprep.subr.mxu0 0.0
  %312 = vmatpush1.msra.mxu0 0.0
  %313 = vmatprep.subr.mxu0 0.0
  %314 = vmatpush1.msra.mxu0 0.0
  %315 = vmatprep.subr.mxu0 0.0
  %316 = vmatpush1.msra.mxu0 0.0
  %317 = vmatprep.subr.mxu0 0.0
  %318 = vmatpush1.msra.mxu0 0.0
  %319 = vmatprep.mubr.f32.mxu0 0.0
  %320 = vmatmul.mubr.f32.gmra.mrb[0].mxu0 %v231
  %v321 = vpop.f32.mrb[0].mxu0
  %v322 = vadd.f32 %v253, %v321
  %v323 = vpop.f32.mrb[0].mxu0
  %324 = vdwg.mxu0
  %v325 = vmax.f32 %v322, 0.0
  %v326 = vld [vmem:[%s5] sm:$0xff]
  %v327 = vld [vmem:[%s5 + $0x8] sm:$0xff]
  %v328 = vld [vmem:[%s5 + $0x10] sm:$0xff]
  %v329 = vld [vmem:[%s5 + $0x18] sm:$0xff]
  %v330 = vld [vmem:[%s5 + $0x20] sm:$0xff]
  %v331 = vld [vmem:[%s5 + $0x28] sm:$0xff]
  %v332 = vld [vmem:[%s5 + $0x30] sm:$0xff]
  %v333 = vld [vmem:[%s5 + $0x38] sm:$0xff]
  %v334 = vld [vmem:[%s5 + $0x40] sm:$0xff]
  %v335 = vld [vmem:[%s5 + $0x48] sm:$0xff]
  %v336 = vld [vmem:[%s5 + $0x50] sm:$0xff]
  %v337 = vld [vmem:[%s5 + $0x58] sm:$0xff]
  %v338 = vld [vmem:[%s5 + $0x60] sm:$0xff]
  %v339 = vld [vmem:[%s5 + $0x68] sm:$0xff]
  %v340 = vld [vmem:[%s5 + $0x70] sm:$0xff]
  %v341 = vld [vmem:[%s5 + $0x78] sm:$0xff]
  %v342 = vld [vmem:[%s6] sm:$0x1]
  %v344 = vlaneseq
  %v345 = vshrl.u32 %v344, 7
  %v346 = vsub.s32 0, %v345
  %v347 = vrot.slane %v342, %v346
  %349 = vmatprep.subr.mxu0 0.0
  %350 = vmatpush1.msra.mxu0 %v326
  %351 = vmatprep.subr.mxu0 0.0
  %352 = vmatpush1.msra.mxu0 %v327
  %353 = vmatprep.subr.mxu0 0.0
  %354 = vmatpush1.msra.mxu0 %v328
  %355 = vmatprep.subr.mxu0 0.0
  %356 = vmatpush1.msra.mxu0 %v329
  %357 = vmatprep.subr.mxu0 0.0
  %358 = vmatpush1.msra.mxu0 %v330
  %359 = vmatprep.subr.mxu0 0.0
  %360 = vmatpush1.msra.mxu0 %v331
  %361 = vmatprep.subr.mxu0 0.0
  %362 = vmatpush1.msra.mxu0 %v332
  %363 = vmatprep.subr.mxu0 0.0
  %364 = vmatpush1.msra.mxu0 %v333
  %365 = vmatprep.subr.mxu0 0.0
  %366 = vmatpush1.msra.mxu0 %v334
  %367 = vmatprep.subr.mxu0 0.0
  %368 = vmatpush1.msra.mxu0 %v335
  %369 = vmatprep.subr.mxu0 0.0
  %370 = vmatpush1.msra.mxu0 %v336
  %371 = vmatprep.subr.mxu0 0.0
  %372 = vmatpush1.msra.mxu0 %v337
  %373 = vmatprep.subr.mxu0 0.0
  %374 = vmatpush1.msra.mxu0 %v338
  %375 = vmatprep.subr.mxu0 0.0
  %376 = vmatpush1.msra.mxu0 %v339
  %377 = vmatprep.subr.mxu0 0.0
  %378 = vmatpush1.msra.mxu0 %v340
  %379 = vmatprep.subr.mxu0 0.0
  %380 = vmatpush1.msra.mxu0 %v341
  %381 = vmatprep.subr.mxu0 0.0
  %382 = vmatpush1.msra.mxu0 0.0
  %383 = vmatprep.subr.mxu0 0.0
  %384 = vmatpush1.msra.mxu0 0.0
  %385 = vmatprep.subr.mxu0 0.0
  %386 = vmatpush1.msra.mxu0 0.0
  %387 = vmatprep.subr.mxu0 0.0
  %388 = vmatpush1.msra.mxu0 0.0
  %389 = vmatprep.subr.mxu0 0.0
  %390 = vmatpush1.msra.mxu0 0.0
  %391 = vmatprep.subr.mxu0 0.0
  %392 = vmatpush1.msra.mxu0 0.0
  %393 = vmatprep.subr.mxu0 0.0
  %394 = vmatpush1.msra.mxu0 0.0
  %395 = vmatprep.subr.mxu0 0.0
  %396 = vmatpush1.msra.mxu0 0.0
  %397 = vmatprep.subr.mxu0 0.0
  %398 = vmatpush1.msra.mxu0 0.0
  %399 = vmatprep.subr.mxu0 0.0
  %400 = vmatpush1.msra.mxu0 0.0
  %401 = vmatprep.subr.mxu0 0.0
  %402 = vmatpush1.msra.mxu0 0.0
  %403 = vmatprep.subr.mxu0 0.0
  %404 = vmatpush1.msra.mxu0 0.0
  %405 = vmatprep.subr.mxu0 0.0
  %406 = vmatpush1.msra.mxu0 0.0
  %407 = vmatprep.subr.mxu0 0.0
  %408 = vmatpush1.msra.mxu0 0.0
  %409 = vmatprep.subr.mxu0 0.0
  %410 = vmatpush1.msra.mxu0 0.0
  %411 = vmatprep.subr.mxu0 0.0
  %412 = vmatpush1.msra.mxu0 0.0
  %413 = vmatprep.mubr.f32.mxu0 0.0
  %414 = vmatmul.mubr.f32.gmra.mrb[0].mxu0 %v325
  %v415 = vpop.f32.mrb[0].mxu0
  %v416 = vadd.f32 %v347, %v415
  %v417 = vpop.f32.mrb[0].mxu0
  %418 = vdwg.mxu0
  %419 = vst [vmem:[%s7] sm:$0xff] %v416
  // Predicated region
  $region30: #{lenet5_forward.5} parent=0 // pred_check
    _
  $region31: #{lenet5_forward.5} parent=0 // pred_check_branch
    %421 = sbr.rel (0) target = $region33
  $region32: #{lenet5_forward.5} parent=0 // pred_region
    _
  $region33: #{lenet5_forward.5} parent=0 // pred_fallthru
    _
  // Predicated region
  $region34: #{lenet5_forward.5} parent=0 // pred_check
    _
  $region35: #{lenet5_forward.5} parent=0 // pred_check_branch
    %423 = sbr.rel (0) target = $region37
  $region36: #{lenet5_forward.5} parent=0 // pred_region
    _
  $region37: #{lenet5_forward.5} parent=0 // pred_fallthru
    _

</llo_original>
